<compile_context>
chip_gen: v5e
topology: v5e:2x2
jax: 0.10.0
libtpu: 0.0.40
codegen_flags: <defaults>
</compile_context>

<pallas_src>
import numpy as np
import jax
import jax.numpy as jnp
from jax import lax
from jax.experimental import pallas as pl
from jax.experimental.pallas import tpu as pltpu

# ------------------------- model sizes (small test config) -------------------------
B = 8            # batch
T = 8            # max sequence length
E = 32           # embed_size
H = 32           # num_hiddens
NUM_LAYERS = 3
LABELS = 2
VOCAB = 50
BIDIRECTIONAL = True


# ------------------------------ fused forward kernel --------------------------------
def fused_rnn_kernel(tok_ref, len_ref, emb_ref,
                     wx0_ref, wh0_ref, b0_ref,
                     wx1_ref, wh1_ref, b1_ref,
                     wx2_ref, wh2_ref, b2_ref,
                     dw1_ref, db1_ref, dw2_ref, db2_ref,
                     out_ref,
                     act_a, act_b, pre_ref, feat_ref):
    """Single invocation, no grid.

    tok_ref : (T*B, 1) int32 time-major token ids; len_ref: (B, 1) int32 lengths.
    emb_ref : (VOCAB, E) frozen embedding table.
    wx{l}   : (D_l, 8H) input->gates weights, interleaved gate columns
              [i_f i_r | f_f f_r | g_f g_r | o_f o_r] (g columns pre-scaled 2x).
    wh{l}   : (2H, 8H) block-diagonal recurrent weights, same column layout.
    b{l}    : (1, 8H) fused biases (b_ih + b_hh, g columns pre-scaled 2x).
    dw1/db1/dw2/db2: decoder MLP (dw1 rows pre-permuted to block c_n layout).
    Scratch: act_a/act_b (T*B, 2H) ping-pong layer outputs, pre_ref (T*B, 8H)
             bulk pre-activations, feat_ref (B, 10H) decoder feature vector.
    """
    Bn = len_ref.shape[0]
    TB = tok_ref.shape[0]
    Tn = TB // Bn
    lens = len_ref[...]                                   # (B, 1) int32

    # ---- frozen-embedding lookup folded into the kernel (one-hot matmul) ----
    tok = tok_ref[...]                                    # (T*B, 1) int32
    onehot = (lax.broadcasted_iota(jnp.int32, (TB, VOCAB), 1) == tok
              ).astype(jnp.float32)
    x_flat = jnp.dot(onehot, emb_ref[...],
                     preferred_element_type=jnp.float32)  # (T*B, E)

    # Hoisted column masks: fwd vs rev positions of the combined state / gates.
    is_fwd = lax.broadcasted_iota(jnp.int32, (Bn, 2 * H), 1) < H       # (B, 2H)
    gcol = lax.broadcasted_iota(jnp.int32, (Bn, 8 * H), 1)
    is_fwd_g = (gcol & (2 * H - 1)) < H                                # (B, 8H)

    wx_refs = (wx0_ref, wx1_ref, wx2_ref)
    wh_refs = (wh0_ref, wh1_ref, wh2_ref)
    b_refs = (b0_ref, b1_ref, b2_ref)
    slabs = (act_a, act_b)

    in_flat = x_flat                                      # (T*B, D) layer input
    for layer in range(NUM_LAYERS):
        out_buf = slabs[layer % 2]                        # (T*B, 2H)
        wh = wh_refs[layer][...]                          # (2H, 8H), hoisted load

        # Bulk input projection for all timesteps & both directions:
        # one (T*B, D) @ (D, 8H) GEMM + bias, off the serial critical path.
        pre_ref[...] = (jnp.dot(in_flat, wx_refs[layer][...],
                                preferred_element_type=jnp.float32)
                        + b_refs[layer][...])

        def step(t, carry):
            h, c = carry                                  # (B, 2H) = [fwd | rev]
            tr = Tn - 1 - t
            # fwd gate columns need the input at t, rev columns the input at T-1-t.
            pre_f = pre_ref[pl.ds(t * Bn, Bn), :]
            pre_r = pre_ref[pl.ds(tr * Bn, Bn), :]
            pre = jnp.where(is_fwd_g, pre_f, pre_r)       # (B, 8H)
            gates = pre + jnp.dot(h, wh, preferred_element_type=jnp.float32)

            # Single-sigmoid trick: g columns of W/b were scaled by 2 at init,
            # so tanh(x) == 2*sigmoid(2x) - 1 falls out of one sigmoid pass.
            s = jax.nn.sigmoid(gates)
            i_g = s[:, 0:2 * H]
            f_g = s[:, 2 * H:4 * H]
            g_g = 2.0 * s[:, 4 * H:6 * H] - 1.0
            o_g = s[:, 6 * H:8 * H]
            c_new = f_g * c + i_g * g_g
            h_new = o_g * jnp.tanh(c_new)

            # Per-direction activity mask: fwd active iff t < len, rev iff tr < len.
            t_col = jnp.where(is_fwd, t, tr)              # (B, 2H) int32
            mask = t_col < lens                           # (B, 2H) bool

            # Outputs at padded steps are 0 (pad_packed padding_value=0).
            out_val = jnp.where(mask, h_new, 0.0)
            out_buf[pl.ds(t * Bn, Bn), 0:H] = out_val[:, 0:H]
            out_buf[pl.ds(tr * Bn, Bn), H:2 * H] = out_val[:, H:2 * H]

            # Freeze state past the sequence length (packed-sequence semantics;
            # valid because initial h/c are zero and stay zero while frozen).
            return (jnp.where(mask, h_new, h), jnp.where(mask, c_new, c))

        zeros = jnp.zeros((Bn, 2 * H), jnp.float32)
        _, c_fin = lax.fori_loop(0, Tn, step, (zeros, zeros), unroll=True)

        # c_n block for this layer: [c_fwd | c_rev] -> feat cols [2H*l, 2H*(l+1)).
        feat_ref[:, layer * 2 * H:(layer + 1) * 2 * H] = c_fin
        in_flat = out_buf[...]                            # next layer input (T*B, 2H)

    # ------------------------------- pooling head ----------------------------------
    # adaptive_{max,avg}_pool1d over the zero-padded time axis (padding included,
    # intentional parity with the reference pad_packed + adaptive pooling).
    top = in_flat                                         # (T*B, 2H) top-layer outputs
    mx = top[0:Bn, :]
    sm = top[0:Bn, :]
    for t in range(1, Tn):
        chunk = top[t * Bn:(t + 1) * Bn, :]
        mx = jnp.maximum(mx, chunk)
        sm = sm + chunk
    feat_ref[:, 6 * H:8 * H] = mx
    feat_ref[:, 8 * H:10 * H] = sm * (1.0 / Tn)

    # --------------------------------- decoder -------------------------------------
    feat = feat_ref[...]                                  # (B, 10H)
    h1 = jnp.maximum(
        jnp.dot(feat, dw1_ref[...], preferred_element_type=jnp.float32)
        + db1_ref[...], 0.0)
    out = (jnp.dot(h1, dw2_ref[...], preferred_element_type=jnp.float32)
           + db2_ref[...])
    out_ref[...] = jnp.maximum(out, 0.0)


# ------------------------------- parameter init --------------------------------------
def init_params(key):
    params = {}
    key, k_emb = jax.random.split(key)
    params["embedding"] = jax.random.normal(k_emb, (VOCAB, E), jnp.float32)

    wx_l, wh_l, b_l = [], [], []
    for layer in range(NUM_LAYERS):
        d_in = E if layer == 0 else 2 * H
        wx = np.zeros((d_in, 8 * H), np.float32)
        wh = np.zeros((2 * H, 8 * H), np.float32)
        bb = np.zeros((1, 8 * H), np.float32)
        for d in range(2 if BIDIRECTIONAL else 1):
            key, k1, k2, k3, k4 = jax.random.split(key, 5)
            w_ih = 0.1 * np.asarray(jax.random.normal(k1, (d_in, 4 * H), jnp.float32))
            w_hh = 0.1 * np.asarray(jax.random.normal(k2, (H, 4 * H), jnp.float32))
            b_ih = 0.1 * np.asarray(jax.random.normal(k3, (4 * H,), jnp.float32))
            b_hh = 0.1 * np.asarray(jax.random.normal(k4, (4 * H,), jnp.float32))
            for gate in range(4):                        # PyTorch gate order i,f,g,o
                scale = 2.0 if gate == 2 else 1.0        # single-sigmoid g pre-scale
                c0 = gate * 2 * H + d * H                # interleaved [gate_f gate_r]
                wx[:, c0:c0 + H] = scale * w_ih[:, gate * H:(gate + 1) * H]
                wh[d * H:(d + 1) * H, c0:c0 + H] = \
                    scale * w_hh[:, gate * H:(gate + 1) * H]
                bb[0, c0:c0 + H] = scale * (b_ih[gate * H:(gate + 1) * H]
                                            + b_hh[gate * H:(gate + 1) * H])
        wx_l.append(jnp.asarray(wx))
        wh_l.append(jnp.asarray(wh))
        b_l.append(jnp.asarray(bb))
    params["wx"], params["wh"], params["b"] = wx_l, wh_l, b_l

    key, k1, k2, k3, k4 = jax.random.split(key, 5)
    dec_w1 = 0.1 * np.asarray(jax.random.normal(k1, (10 * H, 50), jnp.float32))
    # Reference hid layout: hid[b, h*6 + k] = c_n[k, b, h] (k = layer*2 + dir).
    # Kernel feat has c_n in block order [cols k*H:(k+1)*H]; permute the first
    # 6H rows of dec_w1 so feat @ dec_w1_eff == reference hid @ dec_w1.
    kk = np.repeat(np.arange(2 * NUM_LAYERS), H)
    hh = np.tile(np.arange(H), 2 * NUM_LAYERS)
    src = hh * (2 * NUM_LAYERS) + kk
    dec_w1_eff = np.concatenate([dec_w1[src], dec_w1[6 * H:]], axis=0)
    params["dec_w1"] = jnp.asarray(dec_w1_eff)
    params["dec_b1"] = 0.1 * jax.random.normal(k2, (1, 50), jnp.float32)
    params["dec_w2"] = 0.1 * jax.random.normal(k3, (50, LABELS), jnp.float32)
    params["dec_b2"] = 0.1 * jax.random.normal(k4, (1, LABELS), jnp.float32)
    return params


# ------------------------------- full forward ---------------------------------------
def rnn_forward(inputs, sorted_length, params):
    """inputs: (B, T) int32; sorted_length: length-B numpy array (descending)."""
    bsz = inputs.shape[0]
    lengths = np.asarray(sorted_length).astype(np.int32)
    t_eff = int(lengths.max())                            # pad_packed max length
    # Time-major flat token ids: row index = t*B + b (gather happens in-kernel).
    tok = jnp.transpose(inputs[:, :t_eff]).reshape(t_eff * bsz, 1).astype(jnp.int32)
    lens = jnp.asarray(lengths).reshape(bsz, 1)

    return pl.pallas_call(
        fused_rnn_kernel,
        out_shape=jax.ShapeDtypeStruct((bsz, LABELS), jnp.float32),
        scratch_shapes=[
            pltpu.VMEM((t_eff * bsz, 2 * H), jnp.float32),   # layer output slab A
            pltpu.VMEM((t_eff * bsz, 2 * H), jnp.float32),   # layer output slab B
            pltpu.VMEM((t_eff * bsz, 8 * H), jnp.float32),   # bulk pre-activations
            pltpu.VMEM((bsz, 10 * H), jnp.float32),          # decoder feature vector
        ],
    )(tok, lens, params["embedding"],
      params["wx"][0], params["wh"][0], params["b"][0],
      params["wx"][1], params["wh"][1], params["b"][1],
      params["wx"][2], params["wh"][2], params["b"][2],
      params["dec_w1"], params["dec_b1"], params["dec_w2"], params["dec_b2"])


# ----------------------------------- main --------------------------------------------
if __name__ == "__main__":
    key = jax.random.PRNGKey(0)
    params = init_params(key)

    key, k_tok = jax.random.split(key)
    inputs = jax.random.randint(k_tok, (B, T), 0, VOCAB, dtype=jnp.int32)
    sorted_length = np.array([8, 8, 7, 6, 5, 4, 3, 2], dtype=np.int32)  # descending

    out = rnn_forward(inputs, sorted_length, params)
    jax.block_until_ready(out)
    assert out.shape == (B, LABELS) and out.dtype == jnp.float32
    print("KERNEL_OK")
</pallas_src>

<mosaic_0001>
module attributes {stable_mosaic.version = 11 : i64} {
  func.func @fused_rnn_kernel(%arg0: memref<64x1xi32, #tpu.memory_space<vmem>>, %arg1: memref<8x1xi32, #tpu.memory_space<vmem>>, %arg2: memref<50x32xf32, #tpu.memory_space<vmem>>, %arg3: memref<32x256xf32, #tpu.memory_space<vmem>>, %arg4: memref<64x256xf32, #tpu.memory_space<vmem>>, %arg5: memref<1x256xf32, #tpu.memory_space<vmem>>, %arg6: memref<64x256xf32, #tpu.memory_space<vmem>>, %arg7: memref<64x256xf32, #tpu.memory_space<vmem>>, %arg8: memref<1x256xf32, #tpu.memory_space<vmem>>, %arg9: memref<64x256xf32, #tpu.memory_space<vmem>>, %arg10: memref<64x256xf32, #tpu.memory_space<vmem>>, %arg11: memref<1x256xf32, #tpu.memory_space<vmem>>, %arg12: memref<320x50xf32, #tpu.memory_space<vmem>>, %arg13: memref<1x50xf32, #tpu.memory_space<vmem>>, %arg14: memref<50x2xf32, #tpu.memory_space<vmem>>, %arg15: memref<1x2xf32, #tpu.memory_space<vmem>>, %arg16: memref<8x2xf32, #tpu.memory_space<vmem>>, %arg17: memref<64x64xf32, #tpu.memory_space<vmem>>, %arg18: memref<64x64xf32, #tpu.memory_space<vmem>>, %arg19: memref<64x256xf32, #tpu.memory_space<vmem>>, %arg20: memref<8x320xf32, #tpu.memory_space<vmem>>) attributes {dimension_semantics = [], scalar_prefetch = 0 : i64, scratch_operands = 4 : i64, tpu.core_type = #tpu.core_type<tc>} {
    %c0 = arith.constant 0 : index
    %c0_0 = arith.constant 0 : index
    %0 = vector.load %arg1[%c0, %c0_0] : memref<8x1xi32, #tpu.memory_space<vmem>>, vector<8x1xi32>
    %c0_1 = arith.constant 0 : index
    %c0_2 = arith.constant 0 : index
    %1 = vector.load %arg0[%c0_1, %c0_2] : memref<64x1xi32, #tpu.memory_space<vmem>>, vector<64x1xi32>
    %2 = tpu.iota {dimensions = array<i32: 1>} : vector<64x50xi32>
    %3 = vector.broadcast %1 : vector<64x1xi32> to vector<64x50xi32>
    %4 = arith.cmpi eq, %2, %3 : vector<64x50xi32>
    %5 = arith.extui %4 : vector<64x50xi1> to vector<64x50xi32>
    %6 = arith.sitofp %5 : vector<64x50xi32> to vector<64x50xf32>
    %c0_3 = arith.constant 0 : index
    %c0_4 = arith.constant 0 : index
    %7 = vector.load %arg2[%c0_3, %c0_4] : memref<50x32xf32, #tpu.memory_space<vmem>>, vector<50x32xf32>
    %cst = arith.constant dense<0.000000e+00> : vector<64x32xf32>
    %8 = tpu.matmul %6, %7, %cst {dimension_numbers = #tpu.dot_dimension_numbers<[1], [0], [0], [1], [0, 0, 1, 1], [], []>} : vector<64x50xf32>, vector<50x32xf32>, vector<64x32xf32> -> vector<64x32xf32>
    %9 = tpu.iota {dimensions = array<i32: 1>} : vector<8x64xi32>
    %c32_i32 = arith.constant 32 : i32
    %10 = vector.broadcast %c32_i32 : i32 to vector<8x64xi32>
    %11 = arith.cmpi slt, %9, %10 : vector<8x64xi32>
    %12 = tpu.iota {dimensions = array<i32: 1>} : vector<8x256xi32>
    %c63_i32 = arith.constant 63 : i32
    %13 = vector.broadcast %c63_i32 : i32 to vector<8x256xi32>
    %14 = arith.andi %12, %13 : vector<8x256xi32>
    %c32_i32_5 = arith.constant 32 : i32
    %15 = vector.broadcast %c32_i32_5 : i32 to vector<8x256xi32>
    %16 = arith.cmpi slt, %14, %15 : vector<8x256xi32>
    %c0_6 = arith.constant 0 : index
    %c0_7 = arith.constant 0 : index
    %17 = vector.load %arg4[%c0_6, %c0_7] : memref<64x256xf32, #tpu.memory_space<vmem>>, vector<64x256xf32>
    %c0_8 = arith.constant 0 : index
    %c0_9 = arith.constant 0 : index
    %18 = vector.load %arg3[%c0_8, %c0_9] : memref<32x256xf32, #tpu.memory_space<vmem>>, vector<32x256xf32>
    %cst_10 = arith.constant dense<0.000000e+00> : vector<64x256xf32>
    %19 = tpu.matmul %8, %18, %cst_10 {dimension_numbers = #tpu.dot_dimension_numbers<[1], [0], [0], [1], [0, 0, 1, 1], [], []>} : vector<64x32xf32>, vector<32x256xf32>, vector<64x256xf32> -> vector<64x256xf32>
    %c0_11 = arith.constant 0 : index
    %c0_12 = arith.constant 0 : index
    %20 = vector.load %arg5[%c0_11, %c0_12] : memref<1x256xf32, #tpu.memory_space<vmem>>, vector<1x256xf32>
    %21 = vector.broadcast %20 : vector<1x256xf32> to vector<64x256xf32>
    %22 = arith.addf %19, %21 : vector<64x256xf32>
    %c0_13 = arith.constant 0 : index
    %c0_14 = arith.constant 0 : index
    %23 = vector.load %arg19[%c0_13, %c0_14] : memref<64x256xf32, #tpu.memory_space<vmem>>, vector<64x256xf32>
    tpu.vector_store %arg19[%c0_13, %c0_14], %22 {strides = array<i32>} : memref<64x256xf32, #tpu.memory_space<vmem>>, vector<64x256xf32>,
    %cst_15 = arith.constant 0.000000e+00 : f32
    %24 = vector.broadcast %cst_15 : f32 to vector<8x64xf32>
    %c0_i32 = arith.constant 0 : i32
    %c7_i32 = arith.constant 7 : i32
    %25 = arith.subi %c7_i32, %c0_i32 : i32
    %c8_i32 = arith.constant 8 : i32
    %26 = arith.muli %c0_i32, %c8_i32 : i32
    %27 = arith.index_cast %26 : i32 to index
    %c0_16 = arith.constant 0 : index
    %28 = vector.load %arg19[%27, %c0_16] : memref<64x256xf32, #tpu.memory_space<vmem>>, vector<8x256xf32>
    %c8_i32_17 = arith.constant 8 : i32
    %29 = arith.muli %25, %c8_i32_17 : i32
    %30 = arith.index_cast %29 : i32 to index
    %c0_18 = arith.constant 0 : index
    %31 = vector.load %arg19[%30, %c0_18] : memref<64x256xf32, #tpu.memory_space<vmem>>, vector<8x256xf32>
    %32 = arith.select %16, %28, %31 : vector<8x256xi1>, vector<8x256xf32>
    %cst_19 = arith.constant dense<0.000000e+00> : vector<8x256xf32>
    %33 = tpu.matmul %24, %17, %cst_19 {dimension_numbers = #tpu.dot_dimension_numbers<[1], [0], [0], [1], [0, 0, 1, 1], [], []>} : vector<8x64xf32>, vector<64x256xf32>, vector<8x256xf32> -> vector<8x256xf32>
    %34 = arith.addf %32, %33 : vector<8x256xf32>
    %35 = arith.negf %34 : vector<8x256xf32>
    %36 = math.exp %35 : vector<8x256xf32>
    %cst_20 = arith.constant 1.000000e+00 : f32
    %37 = vector.broadcast %cst_20 : f32 to vector<8x256xf32>
    %38 = arith.addf %37, %36 : vector<8x256xf32>
    %39 = arith.divf %37, %38 : vector<8x256xf32>
    %40 = vector.extract_strided_slice %39 {offsets = [0, 0], sizes = [8, 64], strides = [1, 1]} : vector<8x256xf32> to vector<8x64xf32>
    %41 = vector.extract_strided_slice %39 {offsets = [0, 64], sizes = [8, 64], strides = [1, 1]} : vector<8x256xf32> to vector<8x64xf32>
    %42 = vector.extract_strided_slice %39 {offsets = [0, 128], sizes = [8, 64], strides = [1, 1]} : vector<8x256xf32> to vector<8x64xf32>
    %cst_21 = arith.constant 2.000000e+00 : f32
    %43 = vector.broadcast %cst_21 : f32 to vector<8x64xf32>
    %44 = arith.mulf %43, %42 : vector<8x64xf32>
    %cst_22 = arith.constant 1.000000e+00 : f32
    %45 = vector.broadcast %cst_22 : f32 to vector<8x64xf32>
    %46 = arith.subf %44, %45 : vector<8x64xf32>
    %47 = vector.extract_strided_slice %39 {offsets = [0, 192], sizes = [8, 64], strides = [1, 1]} : vector<8x256xf32> to vector<8x64xf32>
    %48 = arith.mulf %41, %24 : vector<8x64xf32>
    %49 = arith.mulf %40, %46 : vector<8x64xf32>
    %50 = arith.addf %48, %49 : vector<8x64xf32>
    %51 = math.tanh %50 : vector<8x64xf32>
    %52 = arith.mulf %47, %51 : vector<8x64xf32>
    %53 = vector.broadcast %c0_i32 : i32 to vector<8x64xi32>
    %54 = vector.broadcast %25 : i32 to vector<8x64xi32>
    %55 = arith.select %11, %53, %54 : vector<8x64xi1>, vector<8x64xi32>
    %56 = vector.broadcast %0 : vector<8x1xi32> to vector<8x64xi32>
    %57 = arith.cmpi slt, %55, %56 : vector<8x64xi32>
    %cst_23 = arith.constant 0.000000e+00 : f32
    %58 = vector.broadcast %cst_23 : f32 to vector<8x64xf32>
    %59 = arith.select %57, %52, %58 : vector<8x64xi1>, vector<8x64xf32>
    %60 = vector.extract_strided_slice %59 {offsets = [0, 0], sizes = [8, 32], strides = [1, 1]} : vector<8x64xf32> to vector<8x32xf32>
    %c8_i32_24 = arith.constant 8 : i32
    %61 = arith.muli %c0_i32, %c8_i32_24 : i32
    %62 = arith.index_cast %61 : i32 to index
    %c0_25 = arith.constant 0 : index
    %63 = vector.load %arg17[%62, %c0_25] : memref<64x64xf32, #tpu.memory_space<vmem>>, vector<8x32xf32>
    tpu.vector_store %arg17[%62, %c0_25], %60 {strides = array<i32>} : memref<64x64xf32, #tpu.memory_space<vmem>>, vector<8x32xf32>,
    %64 = vector.extract_strided_slice %59 {offsets = [0, 32], sizes = [8, 32], strides = [1, 1]} : vector<8x64xf32> to vector<8x32xf32>
    %c8_i32_26 = arith.constant 8 : i32
    %65 = arith.muli %25, %c8_i32_26 : i32
    %66 = arith.index_cast %65 : i32 to index
    %c32 = arith.constant 32 : index
    %67 = vector.load %arg17[%66, %c32] : memref<64x64xf32, #tpu.memory_space<vmem>>, vector<8x32xf32>
    tpu.vector_store %arg17[%66, %c32], %64 {strides = array<i32>} : memref<64x64xf32, #tpu.memory_space<vmem>>, vector<8x32xf32>,
    %68 = arith.select %57, %52, %24 : vector<8x64xi1>, vector<8x64xf32>
    %69 = arith.select %57, %50, %24 : vector<8x64xi1>, vector<8x64xf32>
    %c1_i32 = arith.constant 1 : i32
    %c7_i32_27 = arith.constant 7 : i32
    %70 = arith.subi %c7_i32_27, %c1_i32 : i32
    %c8_i32_28 = arith.constant 8 : i32
    %71 = arith.muli %c1_i32, %c8_i32_28 : i32
    %72 = arith.index_cast %71 : i32 to index
    %c0_29 = arith.constant 0 : index
    %73 = vector.load %arg19[%72, %c0_29] : memref<64x256xf32, #tpu.memory_space<vmem>>, vector<8x256xf32>
    %c8_i32_30 = arith.constant 8 : i32
    %74 = arith.muli %70, %c8_i32_30 : i32
    %75 = arith.index_cast %74 : i32 to index
    %c0_31 = arith.constant 0 : index
    %76 = vector.load %arg19[%75, %c0_31] : memref<64x256xf32, #tpu.memory_space<vmem>>, vector<8x256xf32>
    %77 = arith.select %16, %73, %76 : vector<8x256xi1>, vector<8x256xf32>
    %cst_32 = arith.constant dense<0.000000e+00> : vector<8x256xf32>
    %78 = tpu.matmul %68, %17, %cst_32 {dimension_numbers = #tpu.dot_dimension_numbers<[1], [0], [0], [1], [0, 0, 1, 1], [], []>} : vector<8x64xf32>, vector<64x256xf32>, vector<8x256xf32> -> vector<8x256xf32>
    %79 = arith.addf %77, %78 : vector<8x256xf32>
    %80 = arith.negf %79 : vector<8x256xf32>
    %81 = math.exp %80 : vector<8x256xf32>
    %cst_33 = arith.constant 1.000000e+00 : f32
    %82 = vector.broadcast %cst_33 : f32 to vector<8x256xf32>
    %83 = arith.addf %82, %81 : vector<8x256xf32>
    %84 = arith.divf %82, %83 : vector<8x256xf32>
    %85 = vector.extract_strided_slice %84 {offsets = [0, 0], sizes = [8, 64], strides = [1, 1]} : vector<8x256xf32> to vector<8x64xf32>
    %86 = vector.extract_strided_slice %84 {offsets = [0, 64], sizes = [8, 64], strides = [1, 1]} : vector<8x256xf32> to vector<8x64xf32>
    %87 = vector.extract_strided_slice %84 {offsets = [0, 128], sizes = [8, 64], strides = [1, 1]} : vector<8x256xf32> to vector<8x64xf32>
    %cst_34 = arith.constant 2.000000e+00 : f32
    %88 = vector.broadcast %cst_34 : f32 to vector<8x64xf32>
    %89 = arith.mulf %88, %87 : vector<8x64xf32>
    %cst_35 = arith.constant 1.000000e+00 : f32
    %90 = vector.broadcast %cst_35 : f32 to vector<8x64xf32>
    %91 = arith.subf %89, %90 : vector<8x64xf32>
    %92 = vector.extract_strided_slice %84 {offsets = [0, 192], sizes = [8, 64], strides = [1, 1]} : vector<8x256xf32> to vector<8x64xf32>
    %93 = arith.mulf %86, %69 : vector<8x64xf32>
    %94 = arith.mulf %85, %91 : vector<8x64xf32>
    %95 = arith.addf %93, %94 : vector<8x64xf32>
    %96 = math.tanh %95 : vector<8x64xf32>
    %97 = arith.mulf %92, %96 : vector<8x64xf32>
    %98 = vector.broadcast %c1_i32 : i32 to vector<8x64xi32>
    %99 = vector.broadcast %70 : i32 to vector<8x64xi32>
    %100 = arith.select %11, %98, %99 : vector<8x64xi1>, vector<8x64xi32>
    %101 = vector.broadcast %0 : vector<8x1xi32> to vector<8x64xi32>
    %102 = arith.cmpi slt, %100, %101 : vector<8x64xi32>
    %cst_36 = arith.constant 0.000000e+00 : f32
    %103 = vector.broadcast %cst_36 : f32 to vector<8x64xf32>
    %104 = arith.select %102, %97, %103 : vector<8x64xi1>, vector<8x64xf32>
    %105 = vector.extract_strided_slice %104 {offsets = [0, 0], sizes = [8, 32], strides = [1, 1]} : vector<8x64xf32> to vector<8x32xf32>
    %c8_i32_37 = arith.constant 8 : i32
    %106 = arith.muli %c1_i32, %c8_i32_37 : i32
    %107 = arith.index_cast %106 : i32 to index
    %c0_38 = arith.constant 0 : index
    %108 = vector.load %arg17[%107, %c0_38] : memref<64x64xf32, #tpu.memory_space<vmem>>, vector<8x32xf32>
    tpu.vector_store %arg17[%107, %c0_38], %105 {strides = array<i32>} : memref<64x64xf32, #tpu.memory_space<vmem>>, vector<8x32xf32>,
    %109 = vector.extract_strided_slice %104 {offsets = [0, 32], sizes = [8, 32], strides = [1, 1]} : vector<8x64xf32> to vector<8x32xf32>
    %c8_i32_39 = arith.constant 8 : i32
    %110 = arith.muli %70, %c8_i32_39 : i32
    %111 = arith.index_cast %110 : i32 to index
    %c32_40 = arith.constant 32 : index
    %112 = vector.load %arg17[%111, %c32_40] : memref<64x64xf32, #tpu.memory_space<vmem>>, vector<8x32xf32>
    tpu.vector_store %arg17[%111, %c32_40], %109 {strides = array<i32>} : memref<64x64xf32, #tpu.memory_space<vmem>>, vector<8x32xf32>,
    %113 = arith.select %102, %97, %68 : vector<8x64xi1>, vector<8x64xf32>
    %114 = arith.select %102, %95, %69 : vector<8x64xi1>, vector<8x64xf32>
    %c2_i32 = arith.constant 2 : i32
    %c7_i32_41 = arith.constant 7 : i32
    %115 = arith.subi %c7_i32_41, %c2_i32 : i32
    %c8_i32_42 = arith.constant 8 : i32
    %116 = arith.muli %c2_i32, %c8_i32_42 : i32
    %117 = arith.index_cast %116 : i32 to index
    %c0_43 = arith.constant 0 : index
    %118 = vector.load %arg19[%117, %c0_43] : memref<64x256xf32, #tpu.memory_space<vmem>>, vector<8x256xf32>
    %c8_i32_44 = arith.constant 8 : i32
    %119 = arith.muli %115, %c8_i32_44 : i32
    %120 = arith.index_cast %119 : i32 to index
    %c0_45 = arith.constant 0 : index
    %121 = vector.load %arg19[%120, %c0_45] : memref<64x256xf32, #tpu.memory_space<vmem>>, vector<8x256xf32>
    %122 = arith.select %16, %118, %121 : vector<8x256xi1>, vector<8x256xf32>
    %cst_46 = arith.constant dense<0.000000e+00> : vector<8x256xf32>
    %123 = tpu.matmul %113, %17, %cst_46 {dimension_numbers = #tpu.dot_dimension_numbers<[1], [0], [0], [1], [0, 0, 1, 1], [], []>} : vector<8x64xf32>, vector<64x256xf32>, vector<8x256xf32> -> vector<8x256xf32>
    %124 = arith.addf %122, %123 : vector<8x256xf32>
    %125 = arith.negf %124 : vector<8x256xf32>
    %126 = math.exp %125 : vector<8x256xf32>
    %cst_47 = arith.constant 1.000000e+00 : f32
    %127 = vector.broadcast %cst_47 : f32 to vector<8x256xf32>
    %128 = arith.addf %127, %126 : vector<8x256xf32>
    %129 = arith.divf %127, %128 : vector<8x256xf32>
    %130 = vector.extract_strided_slice %129 {offsets = [0, 0], sizes = [8, 64], strides = [1, 1]} : vector<8x256xf32> to vector<8x64xf32>
    %131 = vector.extract_strided_slice %129 {offsets = [0, 64], sizes = [8, 64], strides = [1, 1]} : vector<8x256xf32> to vector<8x64xf32>
    %132 = vector.extract_strided_slice %129 {offsets = [0, 128], sizes = [8, 64], strides = [1, 1]} : vector<8x256xf32> to vector<8x64xf32>
    %cst_48 = arith.constant 2.000000e+00 : f32
    %133 = vector.broadcast %cst_48 : f32 to vector<8x64xf32>
    %134 = arith.mulf %133, %132 : vector<8x64xf32>
    %cst_49 = arith.constant 1.000000e+00 : f32
    %135 = vector.broadcast %cst_49 : f32 to vector<8x64xf32>
    %136 = arith.subf %134, %135 : vector<8x64xf32>
    %137 = vector.extract_strided_slice %129 {offsets = [0, 192], sizes = [8, 64], strides = [1, 1]} : vector<8x256xf32> to vector<8x64xf32>
    %138 = arith.mulf %131, %114 : vector<8x64xf32>
    %139 = arith.mulf %130, %136 : vector<8x64xf32>
    %140 = arith.addf %138, %139 : vector<8x64xf32>
    %141 = math.tanh %140 : vector<8x64xf32>
    %142 = arith.mulf %137, %141 : vector<8x64xf32>
    %143 = vector.broadcast %c2_i32 : i32 to vector<8x64xi32>
    %144 = vector.broadcast %115 : i32 to vector<8x64xi32>
    %145 = arith.select %11, %143, %144 : vector<8x64xi1>, vector<8x64xi32>
    %146 = vector.broadcast %0 : vector<8x1xi32> to vector<8x64xi32>
    %147 = arith.cmpi slt, %145, %146 : vector<8x64xi32>
    %cst_50 = arith.constant 0.000000e+00 : f32
    %148 = vector.broadcast %cst_50 : f32 to vector<8x64xf32>
    %149 = arith.select %147, %142, %148 : vector<8x64xi1>, vector<8x64xf32>
    %150 = vector.extract_strided_slice %149 {offsets = [0, 0], sizes = [8, 32], strides = [1, 1]} : vector<8x64xf32> to vector<8x32xf32>
    %c8_i32_51 = arith.constant 8 : i32
    %151 = arith.muli %c2_i32, %c8_i32_51 : i32
    %152 = arith.index_cast %151 : i32 to index
    %c0_52 = arith.constant 0 : index
    %153 = vector.load %arg17[%152, %c0_52] : memref<64x64xf32, #tpu.memory_space<vmem>>, vector<8x32xf32>
    tpu.vector_store %arg17[%152, %c0_52], %150 {strides = array<i32>} : memref<64x64xf32, #tpu.memory_space<vmem>>, vector<8x32xf32>,
    %154 = vector.extract_strided_slice %149 {offsets = [0, 32], sizes = [8, 32], strides = [1, 1]} : vector<8x64xf32> to vector<8x32xf32>
    %c8_i32_53 = arith.constant 8 : i32
    %155 = arith.muli %115, %c8_i32_53 : i32
    %156 = arith.index_cast %155 : i32 to index
    %c32_54 = arith.constant 32 : index
    %157 = vector.load %arg17[%156, %c32_54] : memref<64x64xf32, #tpu.memory_space<vmem>>, vector<8x32xf32>
    tpu.vector_store %arg17[%156, %c32_54], %154 {strides = array<i32>} : memref<64x64xf32, #tpu.memory_space<vmem>>, vector<8x32xf32>,
    %158 = arith.select %147, %142, %113 : vector<8x64xi1>, vector<8x64xf32>
    %159 = arith.select %147, %140, %114 : vector<8x64xi1>, vector<8x64xf32>
    %c3_i32 = arith.constant 3 : i32
    %c7_i32_55 = arith.constant 7 : i32
    %160 = arith.subi %c7_i32_55, %c3_i32 : i32
    %c8_i32_56 = arith.constant 8 : i32
    %161 = arith.muli %c3_i32, %c8_i32_56 : i32
    %162 = arith.index_cast %161 : i32 to index
    %c0_57 = arith.constant 0 : index
    %163 = vector.load %arg19[%162, %c0_57] : memref<64x256xf32, #tpu.memory_space<vmem>>, vector<8x256xf32>
    %c8_i32_58 = arith.constant 8 : i32
    %164 = arith.muli %160, %c8_i32_58 : i32
    %165 = arith.index_cast %164 : i32 to index
    %c0_59 = arith.constant 0 : index
    %166 = vector.load %arg19[%165, %c0_59] : memref<64x256xf32, #tpu.memory_space<vmem>>, vector<8x256xf32>
    %167 = arith.select %16, %163, %166 : vector<8x256xi1>, vector<8x256xf32>
    %cst_60 = arith.constant dense<0.000000e+00> : vector<8x256xf32>
    %168 = tpu.matmul %158, %17, %cst_60 {dimension_numbers = #tpu.dot_dimension_numbers<[1], [0], [0], [1], [0, 0, 1, 1], [], []>} : vector<8x64xf32>, vector<64x256xf32>, vector<8x256xf32> -> vector<8x256xf32>
    %169 = arith.addf %167, %168 : vector<8x256xf32>
    %170 = arith.negf %169 : vector<8x256xf32>
    %171 = math.exp %170 : vector<8x256xf32>
    %cst_61 = arith.constant 1.000000e+00 : f32
    %172 = vector.broadcast %cst_61 : f32 to vector<8x256xf32>
    %173 = arith.addf %172, %171 : vector<8x256xf32>
    %174 = arith.divf %172, %173 : vector<8x256xf32>
    %175 = vector.extract_strided_slice %174 {offsets = [0, 0], sizes = [8, 64], strides = [1, 1]} : vector<8x256xf32> to vector<8x64xf32>
    %176 = vector.extract_strided_slice %174 {offsets = [0, 64], sizes = [8, 64], strides = [1, 1]} : vector<8x256xf32> to vector<8x64xf32>
    %177 = vector.extract_strided_slice %174 {offsets = [0, 128], sizes = [8, 64], strides = [1, 1]} : vector<8x256xf32> to vector<8x64xf32>
    %cst_62 = arith.constant 2.000000e+00 : f32
    %178 = vector.broadcast %cst_62 : f32 to vector<8x64xf32>
    %179 = arith.mulf %178, %177 : vector<8x64xf32>
    %cst_63 = arith.constant 1.000000e+00 : f32
    %180 = vector.broadcast %cst_63 : f32 to vector<8x64xf32>
    %181 = arith.subf %179, %180 : vector<8x64xf32>
    %182 = vector.extract_strided_slice %174 {offsets = [0, 192], sizes = [8, 64], strides = [1, 1]} : vector<8x256xf32> to vector<8x64xf32>
    %183 = arith.mulf %176, %159 : vector<8x64xf32>
    %184 = arith.mulf %175, %181 : vector<8x64xf32>
    %185 = arith.addf %183, %184 : vector<8x64xf32>
    %186 = math.tanh %185 : vector<8x64xf32>
    %187 = arith.mulf %182, %186 : vector<8x64xf32>
    %188 = vector.broadcast %c3_i32 : i32 to vector<8x64xi32>
    %189 = vector.broadcast %160 : i32 to vector<8x64xi32>
    %190 = arith.select %11, %188, %189 : vector<8x64xi1>, vector<8x64xi32>
    %191 = vector.broadcast %0 : vector<8x1xi32> to vector<8x64xi32>
    %192 = arith.cmpi slt, %190, %191 : vector<8x64xi32>
    %cst_64 = arith.constant 0.000000e+00 : f32
    %193 = vector.broadcast %cst_64 : f32 to vector<8x64xf32>
    %194 = arith.select %192, %187, %193 : vector<8x64xi1>, vector<8x64xf32>
    %195 = vector.extract_strided_slice %194 {offsets = [0, 0], sizes = [8, 32], strides = [1, 1]} : vector<8x64xf32> to vector<8x32xf32>
    %c8_i32_65 = arith.constant 8 : i32
    %196 = arith.muli %c3_i32, %c8_i32_65 : i32
    %197 = arith.index_cast %196 : i32 to index
    %c0_66 = arith.constant 0 : index
    %198 = vector.load %arg17[%197, %c0_66] : memref<64x64xf32, #tpu.memory_space<vmem>>, vector<8x32xf32>
    tpu.vector_store %arg17[%197, %c0_66], %195 {strides = array<i32>} : memref<64x64xf32, #tpu.memory_space<vmem>>, vector<8x32xf32>,
    %199 = vector.extract_strided_slice %194 {offsets = [0, 32], sizes = [8, 32], strides = [1, 1]} : vector<8x64xf32> to vector<8x32xf32>
    %c8_i32_67 = arith.constant 8 : i32
    %200 = arith.muli %160, %c8_i32_67 : i32
    %201 = arith.index_cast %200 : i32 to index
    %c32_68 = arith.constant 32 : index
    %202 = vector.load %arg17[%201, %c32_68] : memref<64x64xf32, #tpu.memory_space<vmem>>, vector<8x32xf32>
    tpu.vector_store %arg17[%201, %c32_68], %199 {strides = array<i32>} : memref<64x64xf32, #tpu.memory_space<vmem>>, vector<8x32xf32>,
    %203 = arith.select %192, %187, %158 : vector<8x64xi1>, vector<8x64xf32>
    %204 = arith.select %192, %185, %159 : vector<8x64xi1>, vector<8x64xf32>
    %c4_i32 = arith.constant 4 : i32
    %c7_i32_69 = arith.constant 7 : i32
    %205 = arith.subi %c7_i32_69, %c4_i32 : i32
    %c8_i32_70 = arith.constant 8 : i32
    %206 = arith.muli %c4_i32, %c8_i32_70 : i32
    %207 = arith.index_cast %206 : i32 to index
    %c0_71 = arith.constant 0 : index
    %208 = vector.load %arg19[%207, %c0_71] : memref<64x256xf32, #tpu.memory_space<vmem>>, vector<8x256xf32>
    %c8_i32_72 = arith.constant 8 : i32
    %209 = arith.muli %205, %c8_i32_72 : i32
    %210 = arith.index_cast %209 : i32 to index
    %c0_73 = arith.constant 0 : index
    %211 = vector.load %arg19[%210, %c0_73] : memref<64x256xf32, #tpu.memory_space<vmem>>, vector<8x256xf32>
    %212 = arith.select %16, %208, %211 : vector<8x256xi1>, vector<8x256xf32>
    %cst_74 = arith.constant dense<0.000000e+00> : vector<8x256xf32>
    %213 = tpu.matmul %203, %17, %cst_74 {dimension_numbers = #tpu.dot_dimension_numbers<[1], [0], [0], [1], [0, 0, 1, 1], [], []>} : vector<8x64xf32>, vector<64x256xf32>, vector<8x256xf32> -> vector<8x256xf32>
    %214 = arith.addf %212, %213 : vector<8x256xf32>
    %215 = arith.negf %214 : vector<8x256xf32>
    %216 = math.exp %215 : vector<8x256xf32>
    %cst_75 = arith.constant 1.000000e+00 : f32
    %217 = vector.broadcast %cst_75 : f32 to vector<8x256xf32>
    %218 = arith.addf %217, %216 : vector<8x256xf32>
    %219 = arith.divf %217, %218 : vector<8x256xf32>
    %220 = vector.extract_strided_slice %219 {offsets = [0, 0], sizes = [8, 64], strides = [1, 1]} : vector<8x256xf32> to vector<8x64xf32>
    %221 = vector.extract_strided_slice %219 {offsets = [0, 64], sizes = [8, 64], strides = [1, 1]} : vector<8x256xf32> to vector<8x64xf32>
    %222 = vector.extract_strided_slice %219 {offsets = [0, 128], sizes = [8, 64], strides = [1, 1]} : vector<8x256xf32> to vector<8x64xf32>
    %cst_76 = arith.constant 2.000000e+00 : f32
    %223 = vector.broadcast %cst_76 : f32 to vector<8x64xf32>
    %224 = arith.mulf %223, %222 : vector<8x64xf32>
    %cst_77 = arith.constant 1.000000e+00 : f32
    %225 = vector.broadcast %cst_77 : f32 to vector<8x64xf32>
    %226 = arith.subf %224, %225 : vector<8x64xf32>
    %227 = vector.extract_strided_slice %219 {offsets = [0, 192], sizes = [8, 64], strides = [1, 1]} : vector<8x256xf32> to vector<8x64xf32>
    %228 = arith.mulf %221, %204 : vector<8x64xf32>
    %229 = arith.mulf %220, %226 : vector<8x64xf32>
    %230 = arith.addf %228, %229 : vector<8x64xf32>
    %231 = math.tanh %230 : vector<8x64xf32>
    %232 = arith.mulf %227, %231 : vector<8x64xf32>
    %233 = vector.broadcast %c4_i32 : i32 to vector<8x64xi32>
    %234 = vector.broadcast %205 : i32 to vector<8x64xi32>
    %235 = arith.select %11, %233, %234 : vector<8x64xi1>, vector<8x64xi32>
    %236 = vector.broadcast %0 : vector<8x1xi32> to vector<8x64xi32>
    %237 = arith.cmpi slt, %235, %236 : vector<8x64xi32>
    %cst_78 = arith.constant 0.000000e+00 : f32
    %238 = vector.broadcast %cst_78 : f32 to vector<8x64xf32>
    %239 = arith.select %237, %232, %238 : vector<8x64xi1>, vector<8x64xf32>
    %240 = vector.extract_strided_slice %239 {offsets = [0, 0], sizes = [8, 32], strides = [1, 1]} : vector<8x64xf32> to vector<8x32xf32>
    %c8_i32_79 = arith.constant 8 : i32
    %241 = arith.muli %c4_i32, %c8_i32_79 : i32
    %242 = arith.index_cast %241 : i32 to index
    %c0_80 = arith.constant 0 : index
    %243 = vector.load %arg17[%242, %c0_80] : memref<64x64xf32, #tpu.memory_space<vmem>>, vector<8x32xf32>
    tpu.vector_store %arg17[%242, %c0_80], %240 {strides = array<i32>} : memref<64x64xf32, #tpu.memory_space<vmem>>, vector<8x32xf32>,
    %244 = vector.extract_strided_slice %239 {offsets = [0, 32], sizes = [8, 32], strides = [1, 1]} : vector<8x64xf32> to vector<8x32xf32>
    %c8_i32_81 = arith.constant 8 : i32
    %245 = arith.muli %205, %c8_i32_81 : i32
    %246 = arith.index_cast %245 : i32 to index
    %c32_82 = arith.constant 32 : index
    %247 = vector.load %arg17[%246, %c32_82] : memref<64x64xf32, #tpu.memory_space<vmem>>, vector<8x32xf32>
    tpu.vector_store %arg17[%246, %c32_82], %244 {strides = array<i32>} : memref<64x64xf32, #tpu.memory_space<vmem>>, vector<8x32xf32>,
    %248 = arith.select %237, %232, %203 : vector<8x64xi1>, vector<8x64xf32>
    %249 = arith.select %237, %230, %204 : vector<8x64xi1>, vector<8x64xf32>
    %c5_i32 = arith.constant 5 : i32
    %c7_i32_83 = arith.constant 7 : i32
    %250 = arith.subi %c7_i32_83, %c5_i32 : i32
    %c8_i32_84 = arith.constant 8 : i32
    %251 = arith.muli %c5_i32, %c8_i32_84 : i32
    %252 = arith.index_cast %251 : i32 to index
    %c0_85 = arith.constant 0 : index
    %253 = vector.load %arg19[%252, %c0_85] : memref<64x256xf32, #tpu.memory_space<vmem>>, vector<8x256xf32>
    %c8_i32_86 = arith.constant 8 : i32
    %254 = arith.muli %250, %c8_i32_86 : i32
    %255 = arith.index_cast %254 : i32 to index
    %c0_87 = arith.constant 0 : index
    %256 = vector.load %arg19[%255, %c0_87] : memref<64x256xf32, #tpu.memory_space<vmem>>, vector<8x256xf32>
    %257 = arith.select %16, %253, %256 : vector<8x256xi1>, vector<8x256xf32>
    %cst_88 = arith.constant dense<0.000000e+00> : vector<8x256xf32>
    %258 = tpu.matmul %248, %17, %cst_88 {dimension_numbers = #tpu.dot_dimension_numbers<[1], [0], [0], [1], [0, 0, 1, 1], [], []>} : vector<8x64xf32>, vector<64x256xf32>, vector<8x256xf32> -> vector<8x256xf32>
    %259 = arith.addf %257, %258 : vector<8x256xf32>
    %260 = arith.negf %259 : vector<8x256xf32>
    %261 = math.exp %260 : vector<8x256xf32>
    %cst_89 = arith.constant 1.000000e+00 : f32
    %262 = vector.broadcast %cst_89 : f32 to vector<8x256xf32>
    %263 = arith.addf %262, %261 : vector<8x256xf32>
    %264 = arith.divf %262, %263 : vector<8x256xf32>
    %265 = vector.extract_strided_slice %264 {offsets = [0, 0], sizes = [8, 64], strides = [1, 1]} : vector<8x256xf32> to vector<8x64xf32>
    %266 = vector.extract_strided_slice %264 {offsets = [0, 64], sizes = [8, 64], strides = [1, 1]} : vector<8x256xf32> to vector<8x64xf32>
    %267 = vector.extract_strided_slice %264 {offsets = [0, 128], sizes = [8, 64], strides = [1, 1]} : vector<8x256xf32> to vector<8x64xf32>
    %cst_90 = arith.constant 2.000000e+00 : f32
    %268 = vector.broadcast %cst_90 : f32 to vector<8x64xf32>
    %269 = arith.mulf %268, %267 : vector<8x64xf32>
    %cst_91 = arith.constant 1.000000e+00 : f32
    %270 = vector.broadcast %cst_91 : f32 to vector<8x64xf32>
    %271 = arith.subf %269, %270 : vector<8x64xf32>
    %272 = vector.extract_strided_slice %264 {offsets = [0, 192], sizes = [8, 64], strides = [1, 1]} : vector<8x256xf32> to vector<8x64xf32>
    %273 = arith.mulf %266, %249 : vector<8x64xf32>
    %274 = arith.mulf %265, %271 : vector<8x64xf32>
    %275 = arith.addf %273, %274 : vector<8x64xf32>
    %276 = math.tanh %275 : vector<8x64xf32>
    %277 = arith.mulf %272, %276 : vector<8x64xf32>
    %278 = vector.broadcast %c5_i32 : i32 to vector<8x64xi32>
    %279 = vector.broadcast %250 : i32 to vector<8x64xi32>
    %280 = arith.select %11, %278, %279 : vector<8x64xi1>, vector<8x64xi32>
    %281 = vector.broadcast %0 : vector<8x1xi32> to vector<8x64xi32>
    %282 = arith.cmpi slt, %280, %281 : vector<8x64xi32>
    %cst_92 = arith.constant 0.000000e+00 : f32
    %283 = vector.broadcast %cst_92 : f32 to vector<8x64xf32>
    %284 = arith.select %282, %277, %283 : vector<8x64xi1>, vector<8x64xf32>
    %285 = vector.extract_strided_slice %284 {offsets = [0, 0], sizes = [8, 32], strides = [1, 1]} : vector<8x64xf32> to vector<8x32xf32>
    %c8_i32_93 = arith.constant 8 : i32
    %286 = arith.muli %c5_i32, %c8_i32_93 : i32
    %287 = arith.index_cast %286 : i32 to index
    %c0_94 = arith.constant 0 : index
    %288 = vector.load %arg17[%287, %c0_94] : memref<64x64xf32, #tpu.memory_space<vmem>>, vector<8x32xf32>
    tpu.vector_store %arg17[%287, %c0_94], %285 {strides = array<i32>} : memref<64x64xf32, #tpu.memory_space<vmem>>, vector<8x32xf32>,
    %289 = vector.extract_strided_slice %284 {offsets = [0, 32], sizes = [8, 32], strides = [1, 1]} : vector<8x64xf32> to vector<8x32xf32>
    %c8_i32_95 = arith.constant 8 : i32
    %290 = arith.muli %250, %c8_i32_95 : i32
    %291 = arith.index_cast %290 : i32 to index
    %c32_96 = arith.constant 32 : index
    %292 = vector.load %arg17[%291, %c32_96] : memref<64x64xf32, #tpu.memory_space<vmem>>, vector<8x32xf32>
    tpu.vector_store %arg17[%291, %c32_96], %289 {strides = array<i32>} : memref<64x64xf32, #tpu.memory_space<vmem>>, vector<8x32xf32>,
    %293 = arith.select %282, %277, %248 : vector<8x64xi1>, vector<8x64xf32>
    %294 = arith.select %282, %275, %249 : vector<8x64xi1>, vector<8x64xf32>
    %c6_i32 = arith.constant 6 : i32
    %c7_i32_97 = arith.constant 7 : i32
    %295 = arith.subi %c7_i32_97, %c6_i32 : i32
    %c8_i32_98 = arith.constant 8 : i32
    %296 = arith.muli %c6_i32, %c8_i32_98 : i32
    %297 = arith.index_cast %296 : i32 to index
    %c0_99 = arith.constant 0 : index
    %298 = vector.load %arg19[%297, %c0_99] : memref<64x256xf32, #tpu.memory_space<vmem>>, vector<8x256xf32>
    %c8_i32_100 = arith.constant 8 : i32
    %299 = arith.muli %295, %c8_i32_100 : i32
    %300 = arith.index_cast %299 : i32 to index
    %c0_101 = arith.constant 0 : index
    %301 = vector.load %arg19[%300, %c0_101] : memref<64x256xf32, #tpu.memory_space<vmem>>, vector<8x256xf32>
    %302 = arith.select %16, %298, %301 : vector<8x256xi1>, vector<8x256xf32>
    %cst_102 = arith.constant dense<0.000000e+00> : vector<8x256xf32>
    %303 = tpu.matmul %293, %17, %cst_102 {dimension_numbers = #tpu.dot_dimension_numbers<[1], [0], [0], [1], [0, 0, 1, 1], [], []>} : vector<8x64xf32>, vector<64x256xf32>, vector<8x256xf32> -> vector<8x256xf32>
    %304 = arith.addf %302, %303 : vector<8x256xf32>
    %305 = arith.negf %304 : vector<8x256xf32>
    %306 = math.exp %305 : vector<8x256xf32>
    %cst_103 = arith.constant 1.000000e+00 : f32
    %307 = vector.broadcast %cst_103 : f32 to vector<8x256xf32>
    %308 = arith.addf %307, %306 : vector<8x256xf32>
    %309 = arith.divf %307, %308 : vector<8x256xf32>
    %310 = vector.extract_strided_slice %309 {offsets = [0, 0], sizes = [8, 64], strides = [1, 1]} : vector<8x256xf32> to vector<8x64xf32>
    %311 = vector.extract_strided_slice %309 {offsets = [0, 64], sizes = [8, 64], strides = [1, 1]} : vector<8x256xf32> to vector<8x64xf32>
    %312 = vector.extract_strided_slice %309 {offsets = [0, 128], sizes = [8, 64], strides = [1, 1]} : vector<8x256xf32> to vector<8x64xf32>
    %cst_104 = arith.constant 2.000000e+00 : f32
    %313 = vector.broadcast %cst_104 : f32 to vector<8x64xf32>
    %314 = arith.mulf %313, %312 : vector<8x64xf32>
    %cst_105 = arith.constant 1.000000e+00 : f32
    %315 = vector.broadcast %cst_105 : f32 to vector<8x64xf32>
    %316 = arith.subf %314, %315 : vector<8x64xf32>
    %317 = vector.extract_strided_slice %309 {offsets = [0, 192], sizes = [8, 64], strides = [1, 1]} : vector<8x256xf32> to vector<8x64xf32>
    %318 = arith.mulf %311, %294 : vector<8x64xf32>
    %319 = arith.mulf %310, %316 : vector<8x64xf32>
    %320 = arith.addf %318, %319 : vector<8x64xf32>
    %321 = math.tanh %320 : vector<8x64xf32>
    %322 = arith.mulf %317, %321 : vector<8x64xf32>
    %323 = vector.broadcast %c6_i32 : i32 to vector<8x64xi32>
    %324 = vector.broadcast %295 : i32 to vector<8x64xi32>
    %325 = arith.select %11, %323, %324 : vector<8x64xi1>, vector<8x64xi32>
    %326 = vector.broadcast %0 : vector<8x1xi32> to vector<8x64xi32>
    %327 = arith.cmpi slt, %325, %326 : vector<8x64xi32>
    %cst_106 = arith.constant 0.000000e+00 : f32
    %328 = vector.broadcast %cst_106 : f32 to vector<8x64xf32>
    %329 = arith.select %327, %322, %328 : vector<8x64xi1>, vector<8x64xf32>
    %330 = vector.extract_strided_slice %329 {offsets = [0, 0], sizes = [8, 32], strides = [1, 1]} : vector<8x64xf32> to vector<8x32xf32>
    %c8_i32_107 = arith.constant 8 : i32
    %331 = arith.muli %c6_i32, %c8_i32_107 : i32
    %332 = arith.index_cast %331 : i32 to index
    %c0_108 = arith.constant 0 : index
    %333 = vector.load %arg17[%332, %c0_108] : memref<64x64xf32, #tpu.memory_space<vmem>>, vector<8x32xf32>
    tpu.vector_store %arg17[%332, %c0_108], %330 {strides = array<i32>} : memref<64x64xf32, #tpu.memory_space<vmem>>, vector<8x32xf32>,
    %334 = vector.extract_strided_slice %329 {offsets = [0, 32], sizes = [8, 32], strides = [1, 1]} : vector<8x64xf32> to vector<8x32xf32>
    %c8_i32_109 = arith.constant 8 : i32
    %335 = arith.muli %295, %c8_i32_109 : i32
    %336 = arith.index_cast %335 : i32 to index
    %c32_110 = arith.constant 32 : index
    %337 = vector.load %arg17[%336, %c32_110] : memref<64x64xf32, #tpu.memory_space<vmem>>, vector<8x32xf32>
    tpu.vector_store %arg17[%336, %c32_110], %334 {strides = array<i32>} : memref<64x64xf32, #tpu.memory_space<vmem>>, vector<8x32xf32>,
    %338 = arith.select %327, %322, %293 : vector<8x64xi1>, vector<8x64xf32>
    %339 = arith.select %327, %320, %294 : vector<8x64xi1>, vector<8x64xf32>
    %c7_i32_111 = arith.constant 7 : i32
    %c7_i32_112 = arith.constant 7 : i32
    %340 = arith.subi %c7_i32_112, %c7_i32_111 : i32
    %c8_i32_113 = arith.constant 8 : i32
    %341 = arith.muli %c7_i32_111, %c8_i32_113 : i32
    %342 = arith.index_cast %341 : i32 to index
    %c0_114 = arith.constant 0 : index
    %343 = vector.load %arg19[%342, %c0_114] : memref<64x256xf32, #tpu.memory_space<vmem>>, vector<8x256xf32>
    %c8_i32_115 = arith.constant 8 : i32
    %344 = arith.muli %340, %c8_i32_115 : i32
    %345 = arith.index_cast %344 : i32 to index
    %c0_116 = arith.constant 0 : index
    %346 = vector.load %arg19[%345, %c0_116] : memref<64x256xf32, #tpu.memory_space<vmem>>, vector<8x256xf32>
    %347 = arith.select %16, %343, %346 : vector<8x256xi1>, vector<8x256xf32>
    %cst_117 = arith.constant dense<0.000000e+00> : vector<8x256xf32>
    %348 = tpu.matmul %338, %17, %cst_117 {dimension_numbers = #tpu.dot_dimension_numbers<[1], [0], [0], [1], [0, 0, 1, 1], [], []>} : vector<8x64xf32>, vector<64x256xf32>, vector<8x256xf32> -> vector<8x256xf32>
    %349 = arith.addf %347, %348 : vector<8x256xf32>
    %350 = arith.negf %349 : vector<8x256xf32>
    %351 = math.exp %350 : vector<8x256xf32>
    %cst_118 = arith.constant 1.000000e+00 : f32
    %352 = vector.broadcast %cst_118 : f32 to vector<8x256xf32>
    %353 = arith.addf %352, %351 : vector<8x256xf32>
    %354 = arith.divf %352, %353 : vector<8x256xf32>
    %355 = vector.extract_strided_slice %354 {offsets = [0, 0], sizes = [8, 64], strides = [1, 1]} : vector<8x256xf32> to vector<8x64xf32>
    %356 = vector.extract_strided_slice %354 {offsets = [0, 64], sizes = [8, 64], strides = [1, 1]} : vector<8x256xf32> to vector<8x64xf32>
    %357 = vector.extract_strided_slice %354 {offsets = [0, 128], sizes = [8, 64], strides = [1, 1]} : vector<8x256xf32> to vector<8x64xf32>
    %cst_119 = arith.constant 2.000000e+00 : f32
    %358 = vector.broadcast %cst_119 : f32 to vector<8x64xf32>
    %359 = arith.mulf %358, %357 : vector<8x64xf32>
    %cst_120 = arith.constant 1.000000e+00 : f32
    %360 = vector.broadcast %cst_120 : f32 to vector<8x64xf32>
    %361 = arith.subf %359, %360 : vector<8x64xf32>
    %362 = vector.extract_strided_slice %354 {offsets = [0, 192], sizes = [8, 64], strides = [1, 1]} : vector<8x256xf32> to vector<8x64xf32>
    %363 = arith.mulf %356, %339 : vector<8x64xf32>
    %364 = arith.mulf %355, %361 : vector<8x64xf32>
    %365 = arith.addf %363, %364 : vector<8x64xf32>
    %366 = math.tanh %365 : vector<8x64xf32>
    %367 = arith.mulf %362, %366 : vector<8x64xf32>
    %368 = vector.broadcast %c7_i32_111 : i32 to vector<8x64xi32>
    %369 = vector.broadcast %340 : i32 to vector<8x64xi32>
    %370 = arith.select %11, %368, %369 : vector<8x64xi1>, vector<8x64xi32>
    %371 = vector.broadcast %0 : vector<8x1xi32> to vector<8x64xi32>
    %372 = arith.cmpi slt, %370, %371 : vector<8x64xi32>
    %cst_121 = arith.constant 0.000000e+00 : f32
    %373 = vector.broadcast %cst_121 : f32 to vector<8x64xf32>
    %374 = arith.select %372, %367, %373 : vector<8x64xi1>, vector<8x64xf32>
    %375 = vector.extract_strided_slice %374 {offsets = [0, 0], sizes = [8, 32], strides = [1, 1]} : vector<8x64xf32> to vector<8x32xf32>
    %c8_i32_122 = arith.constant 8 : i32
    %376 = arith.muli %c7_i32_111, %c8_i32_122 : i32
    %377 = arith.index_cast %376 : i32 to index
    %c0_123 = arith.constant 0 : index
    %378 = vector.load %arg17[%377, %c0_123] : memref<64x64xf32, #tpu.memory_space<vmem>>, vector<8x32xf32>
    tpu.vector_store %arg17[%377, %c0_123], %375 {strides = array<i32>} : memref<64x64xf32, #tpu.memory_space<vmem>>, vector<8x32xf32>,
    %379 = vector.extract_strided_slice %374 {offsets = [0, 32], sizes = [8, 32], strides = [1, 1]} : vector<8x64xf32> to vector<8x32xf32>
    %c8_i32_124 = arith.constant 8 : i32
    %380 = arith.muli %340, %c8_i32_124 : i32
    %381 = arith.index_cast %380 : i32 to index
    %c32_125 = arith.constant 32 : index
    %382 = vector.load %arg17[%381, %c32_125] : memref<64x64xf32, #tpu.memory_space<vmem>>, vector<8x32xf32>
    tpu.vector_store %arg17[%381, %c32_125], %379 {strides = array<i32>} : memref<64x64xf32, #tpu.memory_space<vmem>>, vector<8x32xf32>,
    %383 = arith.select %372, %367, %338 : vector<8x64xi1>, vector<8x64xf32>
    %384 = arith.select %372, %365, %339 : vector<8x64xi1>, vector<8x64xf32>
    %c8_i32_126 = arith.constant 8 : i32
    %c0_127 = arith.constant 0 : index
    %c0_128 = arith.constant 0 : index
    %385 = vector.load %arg20[%c0_127, %c0_128] : memref<8x320xf32, #tpu.memory_space<vmem>>, vector<8x64xf32>
    tpu.vector_store %arg20[%c0_127, %c0_128], %384 {strides = array<i32>} : memref<8x320xf32, #tpu.memory_space<vmem>>, vector<8x64xf32>,
    %c0_129 = arith.constant 0 : index
    %c0_130 = arith.constant 0 : index
    %386 = vector.load %arg17[%c0_129, %c0_130] : memref<64x64xf32, #tpu.memory_space<vmem>>, vector<64x64xf32>
    %c0_131 = arith.constant 0 : index
    %c0_132 = arith.constant 0 : index
    %387 = vector.load %arg7[%c0_131, %c0_132] : memref<64x256xf32, #tpu.memory_space<vmem>>, vector<64x256xf32>
    %c0_133 = arith.constant 0 : index
    %c0_134 = arith.constant 0 : index
    %388 = vector.load %arg6[%c0_133, %c0_134] : memref<64x256xf32, #tpu.memory_space<vmem>>, vector<64x256xf32>
    %cst_135 = arith.constant dense<0.000000e+00> : vector<64x256xf32>
    %389 = tpu.matmul %386, %388, %cst_135 {dimension_numbers = #tpu.dot_dimension_numbers<[1], [0], [0], [1], [0, 0, 1, 1], [], []>} : vector<64x64xf32>, vector<64x256xf32>, vector<64x256xf32> -> vector<64x256xf32>
    %c0_136 = arith.constant 0 : index
    %c0_137 = arith.constant 0 : index
    %390 = vector.load %arg8[%c0_136, %c0_137] : memref<1x256xf32, #tpu.memory_space<vmem>>, vector<1x256xf32>
    %391 = vector.broadcast %390 : vector<1x256xf32> to vector<64x256xf32>
    %392 = arith.addf %389, %391 : vector<64x256xf32>
    %c0_138 = arith.constant 0 : index
    %c0_139 = arith.constant 0 : index
    %393 = vector.load %arg19[%c0_138, %c0_139] : memref<64x256xf32, #tpu.memory_space<vmem>>, vector<64x256xf32>
    tpu.vector_store %arg19[%c0_138, %c0_139], %392 {strides = array<i32>} : memref<64x256xf32, #tpu.memory_space<vmem>>, vector<64x256xf32>,
    %cst_140 = arith.constant 0.000000e+00 : f32
    %394 = vector.broadcast %cst_140 : f32 to vector<8x64xf32>
    %c0_i32_141 = arith.constant 0 : i32
    %c7_i32_142 = arith.constant 7 : i32
    %395 = arith.subi %c7_i32_142, %c0_i32_141 : i32
    %c8_i32_143 = arith.constant 8 : i32
    %396 = arith.muli %c0_i32_141, %c8_i32_143 : i32
    %397 = arith.index_cast %396 : i32 to index
    %c0_144 = arith.constant 0 : index
    %398 = vector.load %arg19[%397, %c0_144] : memref<64x256xf32, #tpu.memory_space<vmem>>, vector<8x256xf32>
    %c8_i32_145 = arith.constant 8 : i32
    %399 = arith.muli %395, %c8_i32_145 : i32
    %400 = arith.index_cast %399 : i32 to index
    %c0_146 = arith.constant 0 : index
    %401 = vector.load %arg19[%400, %c0_146] : memref<64x256xf32, #tpu.memory_space<vmem>>, vector<8x256xf32>
    %402 = arith.select %16, %398, %401 : vector<8x256xi1>, vector<8x256xf32>
    %cst_147 = arith.constant dense<0.000000e+00> : vector<8x256xf32>
    %403 = tpu.matmul %394, %387, %cst_147 {dimension_numbers = #tpu.dot_dimension_numbers<[1], [0], [0], [1], [0, 0, 1, 1], [], []>} : vector<8x64xf32>, vector<64x256xf32>, vector<8x256xf32> -> vector<8x256xf32>
    %404 = arith.addf %402, %403 : vector<8x256xf32>
    %405 = arith.negf %404 : vector<8x256xf32>
    %406 = math.exp %405 : vector<8x256xf32>
    %cst_148 = arith.constant 1.000000e+00 : f32
    %407 = vector.broadcast %cst_148 : f32 to vector<8x256xf32>
    %408 = arith.addf %407, %406 : vector<8x256xf32>
    %409 = arith.divf %407, %408 : vector<8x256xf32>
    %410 = vector.extract_strided_slice %409 {offsets = [0, 0], sizes = [8, 64], strides = [1, 1]} : vector<8x256xf32> to vector<8x64xf32>
    %411 = vector.extract_strided_slice %409 {offsets = [0, 64], sizes = [8, 64], strides = [1, 1]} : vector<8x256xf32> to vector<8x64xf32>
    %412 = vector.extract_strided_slice %409 {offsets = [0, 128], sizes = [8, 64], strides = [1, 1]} : vector<8x256xf32> to vector<8x64xf32>
    %cst_149 = arith.constant 2.000000e+00 : f32
    %413 = vector.broadcast %cst_149 : f32 to vector<8x64xf32>
    %414 = arith.mulf %413, %412 : vector<8x64xf32>
    %cst_150 = arith.constant 1.000000e+00 : f32
    %415 = vector.broadcast %cst_150 : f32 to vector<8x64xf32>
    %416 = arith.subf %414, %415 : vector<8x64xf32>
    %417 = vector.extract_strided_slice %409 {offsets = [0, 192], sizes = [8, 64], strides = [1, 1]} : vector<8x256xf32> to vector<8x64xf32>
    %418 = arith.mulf %411, %394 : vector<8x64xf32>
    %419 = arith.mulf %410, %416 : vector<8x64xf32>
    %420 = arith.addf %418, %419 : vector<8x64xf32>
    %421 = math.tanh %420 : vector<8x64xf32>
    %422 = arith.mulf %417, %421 : vector<8x64xf32>
    %423 = vector.broadcast %c0_i32_141 : i32 to vector<8x64xi32>
    %424 = vector.broadcast %395 : i32 to vector<8x64xi32>
    %425 = arith.select %11, %423, %424 : vector<8x64xi1>, vector<8x64xi32>
    %426 = vector.broadcast %0 : vector<8x1xi32> to vector<8x64xi32>
    %427 = arith.cmpi slt, %425, %426 : vector<8x64xi32>
    %cst_151 = arith.constant 0.000000e+00 : f32
    %428 = vector.broadcast %cst_151 : f32 to vector<8x64xf32>
    %429 = arith.select %427, %422, %428 : vector<8x64xi1>, vector<8x64xf32>
    %430 = vector.extract_strided_slice %429 {offsets = [0, 0], sizes = [8, 32], strides = [1, 1]} : vector<8x64xf32> to vector<8x32xf32>
    %c8_i32_152 = arith.constant 8 : i32
    %431 = arith.muli %c0_i32_141, %c8_i32_152 : i32
    %432 = arith.index_cast %431 : i32 to index
    %c0_153 = arith.constant 0 : index
    %433 = vector.load %arg18[%432, %c0_153] : memref<64x64xf32, #tpu.memory_space<vmem>>, vector<8x32xf32>
    tpu.vector_store %arg18[%432, %c0_153], %430 {strides = array<i32>} : memref<64x64xf32, #tpu.memory_space<vmem>>, vector<8x32xf32>,
    %434 = vector.extract_strided_slice %429 {offsets = [0, 32], sizes = [8, 32], strides = [1, 1]} : vector<8x64xf32> to vector<8x32xf32>
    %c8_i32_154 = arith.constant 8 : i32
    %435 = arith.muli %395, %c8_i32_154 : i32
    %436 = arith.index_cast %435 : i32 to index
    %c32_155 = arith.constant 32 : index
    %437 = vector.load %arg18[%436, %c32_155] : memref<64x64xf32, #tpu.memory_space<vmem>>, vector<8x32xf32>
    tpu.vector_store %arg18[%436, %c32_155], %434 {strides = array<i32>} : memref<64x64xf32, #tpu.memory_space<vmem>>, vector<8x32xf32>,
    %438 = arith.select %427, %422, %394 : vector<8x64xi1>, vector<8x64xf32>
    %439 = arith.select %427, %420, %394 : vector<8x64xi1>, vector<8x64xf32>
    %c1_i32_156 = arith.constant 1 : i32
    %c7_i32_157 = arith.constant 7 : i32
    %440 = arith.subi %c7_i32_157, %c1_i32_156 : i32
    %c8_i32_158 = arith.constant 8 : i32
    %441 = arith.muli %c1_i32_156, %c8_i32_158 : i32
    %442 = arith.index_cast %441 : i32 to index
    %c0_159 = arith.constant 0 : index
    %443 = vector.load %arg19[%442, %c0_159] : memref<64x256xf32, #tpu.memory_space<vmem>>, vector<8x256xf32>
    %c8_i32_160 = arith.constant 8 : i32
    %444 = arith.muli %440, %c8_i32_160 : i32
    %445 = arith.index_cast %444 : i32 to index
    %c0_161 = arith.constant 0 : index
    %446 = vector.load %arg19[%445, %c0_161] : memref<64x256xf32, #tpu.memory_space<vmem>>, vector<8x256xf32>
    %447 = arith.select %16, %443, %446 : vector<8x256xi1>, vector<8x256xf32>
    %cst_162 = arith.constant dense<0.000000e+00> : vector<8x256xf32>
    %448 = tpu.matmul %438, %387, %cst_162 {dimension_numbers = #tpu.dot_dimension_numbers<[1], [0], [0], [1], [0, 0, 1, 1], [], []>} : vector<8x64xf32>, vector<64x256xf32>, vector<8x256xf32> -> vector<8x256xf32>
    %449 = arith.addf %447, %448 : vector<8x256xf32>
    %450 = arith.negf %449 : vector<8x256xf32>
    %451 = math.exp %450 : vector<8x256xf32>
    %cst_163 = arith.constant 1.000000e+00 : f32
    %452 = vector.broadcast %cst_163 : f32 to vector<8x256xf32>
    %453 = arith.addf %452, %451 : vector<8x256xf32>
    %454 = arith.divf %452, %453 : vector<8x256xf32>
    %455 = vector.extract_strided_slice %454 {offsets = [0, 0], sizes = [8, 64], strides = [1, 1]} : vector<8x256xf32> to vector<8x64xf32>
    %456 = vector.extract_strided_slice %454 {offsets = [0, 64], sizes = [8, 64], strides = [1, 1]} : vector<8x256xf32> to vector<8x64xf32>
    %457 = vector.extract_strided_slice %454 {offsets = [0, 128], sizes = [8, 64], strides = [1, 1]} : vector<8x256xf32> to vector<8x64xf32>
    %cst_164 = arith.constant 2.000000e+00 : f32
    %458 = vector.broadcast %cst_164 : f32 to vector<8x64xf32>
    %459 = arith.mulf %458, %457 : vector<8x64xf32>
    %cst_165 = arith.constant 1.000000e+00 : f32
    %460 = vector.broadcast %cst_165 : f32 to vector<8x64xf32>
    %461 = arith.subf %459, %460 : vector<8x64xf32>
    %462 = vector.extract_strided_slice %454 {offsets = [0, 192], sizes = [8, 64], strides = [1, 1]} : vector<8x256xf32> to vector<8x64xf32>
    %463 = arith.mulf %456, %439 : vector<8x64xf32>
    %464 = arith.mulf %455, %461 : vector<8x64xf32>
    %465 = arith.addf %463, %464 : vector<8x64xf32>
    %466 = math.tanh %465 : vector<8x64xf32>
    %467 = arith.mulf %462, %466 : vector<8x64xf32>
    %468 = vector.broadcast %c1_i32_156 : i32 to vector<8x64xi32>
    %469 = vector.broadcast %440 : i32 to vector<8x64xi32>
    %470 = arith.select %11, %468, %469 : vector<8x64xi1>, vector<8x64xi32>
    %471 = vector.broadcast %0 : vector<8x1xi32> to vector<8x64xi32>
    %472 = arith.cmpi slt, %470, %471 : vector<8x64xi32>
    %cst_166 = arith.constant 0.000000e+00 : f32
    %473 = vector.broadcast %cst_166 : f32 to vector<8x64xf32>
    %474 = arith.select %472, %467, %473 : vector<8x64xi1>, vector<8x64xf32>
    %475 = vector.extract_strided_slice %474 {offsets = [0, 0], sizes = [8, 32], strides = [1, 1]} : vector<8x64xf32> to vector<8x32xf32>
    %c8_i32_167 = arith.constant 8 : i32
    %476 = arith.muli %c1_i32_156, %c8_i32_167 : i32
    %477 = arith.index_cast %476 : i32 to index
    %c0_168 = arith.constant 0 : index
    %478 = vector.load %arg18[%477, %c0_168] : memref<64x64xf32, #tpu.memory_space<vmem>>, vector<8x32xf32>
    tpu.vector_store %arg18[%477, %c0_168], %475 {strides = array<i32>} : memref<64x64xf32, #tpu.memory_space<vmem>>, vector<8x32xf32>,
    %479 = vector.extract_strided_slice %474 {offsets = [0, 32], sizes = [8, 32], strides = [1, 1]} : vector<8x64xf32> to vector<8x32xf32>
    %c8_i32_169 = arith.constant 8 : i32
    %480 = arith.muli %440, %c8_i32_169 : i32
    %481 = arith.index_cast %480 : i32 to index
    %c32_170 = arith.constant 32 : index
    %482 = vector.load %arg18[%481, %c32_170] : memref<64x64xf32, #tpu.memory_space<vmem>>, vector<8x32xf32>
    tpu.vector_store %arg18[%481, %c32_170], %479 {strides = array<i32>} : memref<64x64xf32, #tpu.memory_space<vmem>>, vector<8x32xf32>,
    %483 = arith.select %472, %467, %438 : vector<8x64xi1>, vector<8x64xf32>
    %484 = arith.select %472, %465, %439 : vector<8x64xi1>, vector<8x64xf32>
    %c2_i32_171 = arith.constant 2 : i32
    %c7_i32_172 = arith.constant 7 : i32
    %485 = arith.subi %c7_i32_172, %c2_i32_171 : i32
    %c8_i32_173 = arith.constant 8 : i32
    %486 = arith.muli %c2_i32_171, %c8_i32_173 : i32
    %487 = arith.index_cast %486 : i32 to index
    %c0_174 = arith.constant 0 : index
    %488 = vector.load %arg19[%487, %c0_174] : memref<64x256xf32, #tpu.memory_space<vmem>>, vector<8x256xf32>
    %c8_i32_175 = arith.constant 8 : i32
    %489 = arith.muli %485, %c8_i32_175 : i32
    %490 = arith.index_cast %489 : i32 to index
    %c0_176 = arith.constant 0 : index
    %491 = vector.load %arg19[%490, %c0_176] : memref<64x256xf32, #tpu.memory_space<vmem>>, vector<8x256xf32>
    %492 = arith.select %16, %488, %491 : vector<8x256xi1>, vector<8x256xf32>
    %cst_177 = arith.constant dense<0.000000e+00> : vector<8x256xf32>
    %493 = tpu.matmul %483, %387, %cst_177 {dimension_numbers = #tpu.dot_dimension_numbers<[1], [0], [0], [1], [0, 0, 1, 1], [], []>} : vector<8x64xf32>, vector<64x256xf32>, vector<8x256xf32> -> vector<8x256xf32>
    %494 = arith.addf %492, %493 : vector<8x256xf32>
    %495 = arith.negf %494 : vector<8x256xf32>
    %496 = math.exp %495 : vector<8x256xf32>
    %cst_178 = arith.constant 1.000000e+00 : f32
    %497 = vector.broadcast %cst_178 : f32 to vector<8x256xf32>
    %498 = arith.addf %497, %496 : vector<8x256xf32>
    %499 = arith.divf %497, %498 : vector<8x256xf32>
    %500 = vector.extract_strided_slice %499 {offsets = [0, 0], sizes = [8, 64], strides = [1, 1]} : vector<8x256xf32> to vector<8x64xf32>
    %501 = vector.extract_strided_slice %499 {offsets = [0, 64], sizes = [8, 64], strides = [1, 1]} : vector<8x256xf32> to vector<8x64xf32>
    %502 = vector.extract_strided_slice %499 {offsets = [0, 128], sizes = [8, 64], strides = [1, 1]} : vector<8x256xf32> to vector<8x64xf32>
    %cst_179 = arith.constant 2.000000e+00 : f32
    %503 = vector.broadcast %cst_179 : f32 to vector<8x64xf32>
    %504 = arith.mulf %503, %502 : vector<8x64xf32>
    %cst_180 = arith.constant 1.000000e+00 : f32
    %505 = vector.broadcast %cst_180 : f32 to vector<8x64xf32>
    %506 = arith.subf %504, %505 : vector<8x64xf32>
    %507 = vector.extract_strided_slice %499 {offsets = [0, 192], sizes = [8, 64], strides = [1, 1]} : vector<8x256xf32> to vector<8x64xf32>
    %508 = arith.mulf %501, %484 : vector<8x64xf32>
    %509 = arith.mulf %500, %506 : vector<8x64xf32>
    %510 = arith.addf %508, %509 : vector<8x64xf32>
    %511 = math.tanh %510 : vector<8x64xf32>
    %512 = arith.mulf %507, %511 : vector<8x64xf32>
    %513 = vector.broadcast %c2_i32_171 : i32 to vector<8x64xi32>
    %514 = vector.broadcast %485 : i32 to vector<8x64xi32>
    %515 = arith.select %11, %513, %514 : vector<8x64xi1>, vector<8x64xi32>
    %516 = vector.broadcast %0 : vector<8x1xi32> to vector<8x64xi32>
    %517 = arith.cmpi slt, %515, %516 : vector<8x64xi32>
    %cst_181 = arith.constant 0.000000e+00 : f32
    %518 = vector.broadcast %cst_181 : f32 to vector<8x64xf32>
    %519 = arith.select %517, %512, %518 : vector<8x64xi1>, vector<8x64xf32>
    %520 = vector.extract_strided_slice %519 {offsets = [0, 0], sizes = [8, 32], strides = [1, 1]} : vector<8x64xf32> to vector<8x32xf32>
    %c8_i32_182 = arith.constant 8 : i32
    %521 = arith.muli %c2_i32_171, %c8_i32_182 : i32
    %522 = arith.index_cast %521 : i32 to index
    %c0_183 = arith.constant 0 : index
    %523 = vector.load %arg18[%522, %c0_183] : memref<64x64xf32, #tpu.memory_space<vmem>>, vector<8x32xf32>
    tpu.vector_store %arg18[%522, %c0_183], %520 {strides = array<i32>} : memref<64x64xf32, #tpu.memory_space<vmem>>, vector<8x32xf32>,
    %524 = vector.extract_strided_slice %519 {offsets = [0, 32], sizes = [8, 32], strides = [1, 1]} : vector<8x64xf32> to vector<8x32xf32>
    %c8_i32_184 = arith.constant 8 : i32
    %525 = arith.muli %485, %c8_i32_184 : i32
    %526 = arith.index_cast %525 : i32 to index
    %c32_185 = arith.constant 32 : index
    %527 = vector.load %arg18[%526, %c32_185] : memref<64x64xf32, #tpu.memory_space<vmem>>, vector<8x32xf32>
    tpu.vector_store %arg18[%526, %c32_185], %524 {strides = array<i32>} : memref<64x64xf32, #tpu.memory_space<vmem>>, vector<8x32xf32>,
    %528 = arith.select %517, %512, %483 : vector<8x64xi1>, vector<8x64xf32>
    %529 = arith.select %517, %510, %484 : vector<8x64xi1>, vector<8x64xf32>
    %c3_i32_186 = arith.constant 3 : i32
    %c7_i32_187 = arith.constant 7 : i32
    %530 = arith.subi %c7_i32_187, %c3_i32_186 : i32
    %c8_i32_188 = arith.constant 8 : i32
    %531 = arith.muli %c3_i32_186, %c8_i32_188 : i32
    %532 = arith.index_cast %531 : i32 to index
    %c0_189 = arith.constant 0 : index
    %533 = vector.load %arg19[%532, %c0_189] : memref<64x256xf32, #tpu.memory_space<vmem>>, vector<8x256xf32>
    %c8_i32_190 = arith.constant 8 : i32
    %534 = arith.muli %530, %c8_i32_190 : i32
    %535 = arith.index_cast %534 : i32 to index
    %c0_191 = arith.constant 0 : index
    %536 = vector.load %arg19[%535, %c0_191] : memref<64x256xf32, #tpu.memory_space<vmem>>, vector<8x256xf32>
    %537 = arith.select %16, %533, %536 : vector<8x256xi1>, vector<8x256xf32>
    %cst_192 = arith.constant dense<0.000000e+00> : vector<8x256xf32>
    %538 = tpu.matmul %528, %387, %cst_192 {dimension_numbers = #tpu.dot_dimension_numbers<[1], [0], [0], [1], [0, 0, 1, 1], [], []>} : vector<8x64xf32>, vector<64x256xf32>, vector<8x256xf32> -> vector<8x256xf32>
    %539 = arith.addf %537, %538 : vector<8x256xf32>
    %540 = arith.negf %539 : vector<8x256xf32>
    %541 = math.exp %540 : vector<8x256xf32>
    %cst_193 = arith.constant 1.000000e+00 : f32
    %542 = vector.broadcast %cst_193 : f32 to vector<8x256xf32>
    %543 = arith.addf %542, %541 : vector<8x256xf32>
    %544 = arith.divf %542, %543 : vector<8x256xf32>
    %545 = vector.extract_strided_slice %544 {offsets = [0, 0], sizes = [8, 64], strides = [1, 1]} : vector<8x256xf32> to vector<8x64xf32>
    %546 = vector.extract_strided_slice %544 {offsets = [0, 64], sizes = [8, 64], strides = [1, 1]} : vector<8x256xf32> to vector<8x64xf32>
    %547 = vector.extract_strided_slice %544 {offsets = [0, 128], sizes = [8, 64], strides = [1, 1]} : vector<8x256xf32> to vector<8x64xf32>
    %cst_194 = arith.constant 2.000000e+00 : f32
    %548 = vector.broadcast %cst_194 : f32 to vector<8x64xf32>
    %549 = arith.mulf %548, %547 : vector<8x64xf32>
    %cst_195 = arith.constant 1.000000e+00 : f32
    %550 = vector.broadcast %cst_195 : f32 to vector<8x64xf32>
    %551 = arith.subf %549, %550 : vector<8x64xf32>
    %552 = vector.extract_strided_slice %544 {offsets = [0, 192], sizes = [8, 64], strides = [1, 1]} : vector<8x256xf32> to vector<8x64xf32>
    %553 = arith.mulf %546, %529 : vector<8x64xf32>
    %554 = arith.mulf %545, %551 : vector<8x64xf32>
    %555 = arith.addf %553, %554 : vector<8x64xf32>
    %556 = math.tanh %555 : vector<8x64xf32>
    %557 = arith.mulf %552, %556 : vector<8x64xf32>
    %558 = vector.broadcast %c3_i32_186 : i32 to vector<8x64xi32>
    %559 = vector.broadcast %530 : i32 to vector<8x64xi32>
    %560 = arith.select %11, %558, %559 : vector<8x64xi1>, vector<8x64xi32>
    %561 = vector.broadcast %0 : vector<8x1xi32> to vector<8x64xi32>
    %562 = arith.cmpi slt, %560, %561 : vector<8x64xi32>
    %cst_196 = arith.constant 0.000000e+00 : f32
    %563 = vector.broadcast %cst_196 : f32 to vector<8x64xf32>
    %564 = arith.select %562, %557, %563 : vector<8x64xi1>, vector<8x64xf32>
    %565 = vector.extract_strided_slice %564 {offsets = [0, 0], sizes = [8, 32], strides = [1, 1]} : vector<8x64xf32> to vector<8x32xf32>
    %c8_i32_197 = arith.constant 8 : i32
    %566 = arith.muli %c3_i32_186, %c8_i32_197 : i32
    %567 = arith.index_cast %566 : i32 to index
    %c0_198 = arith.constant 0 : index
    %568 = vector.load %arg18[%567, %c0_198] : memref<64x64xf32, #tpu.memory_space<vmem>>, vector<8x32xf32>
    tpu.vector_store %arg18[%567, %c0_198], %565 {strides = array<i32>} : memref<64x64xf32, #tpu.memory_space<vmem>>, vector<8x32xf32>,
    %569 = vector.extract_strided_slice %564 {offsets = [0, 32], sizes = [8, 32], strides = [1, 1]} : vector<8x64xf32> to vector<8x32xf32>
    %c8_i32_199 = arith.constant 8 : i32
    %570 = arith.muli %530, %c8_i32_199 : i32
    %571 = arith.index_cast %570 : i32 to index
    %c32_200 = arith.constant 32 : index
    %572 = vector.load %arg18[%571, %c32_200] : memref<64x64xf32, #tpu.memory_space<vmem>>, vector<8x32xf32>
    tpu.vector_store %arg18[%571, %c32_200], %569 {strides = array<i32>} : memref<64x64xf32, #tpu.memory_space<vmem>>, vector<8x32xf32>,
    %573 = arith.select %562, %557, %528 : vector<8x64xi1>, vector<8x64xf32>
    %574 = arith.select %562, %555, %529 : vector<8x64xi1>, vector<8x64xf32>
    %c4_i32_201 = arith.constant 4 : i32
    %c7_i32_202 = arith.constant 7 : i32
    %575 = arith.subi %c7_i32_202, %c4_i32_201 : i32
    %c8_i32_203 = arith.constant 8 : i32
    %576 = arith.muli %c4_i32_201, %c8_i32_203 : i32
    %577 = arith.index_cast %576 : i32 to index
    %c0_204 = arith.constant 0 : index
    %578 = vector.load %arg19[%577, %c0_204] : memref<64x256xf32, #tpu.memory_space<vmem>>, vector<8x256xf32>
    %c8_i32_205 = arith.constant 8 : i32
    %579 = arith.muli %575, %c8_i32_205 : i32
    %580 = arith.index_cast %579 : i32 to index
    %c0_206 = arith.constant 0 : index
    %581 = vector.load %arg19[%580, %c0_206] : memref<64x256xf32, #tpu.memory_space<vmem>>, vector<8x256xf32>
    %582 = arith.select %16, %578, %581 : vector<8x256xi1>, vector<8x256xf32>
    %cst_207 = arith.constant dense<0.000000e+00> : vector<8x256xf32>
    %583 = tpu.matmul %573, %387, %cst_207 {dimension_numbers = #tpu.dot_dimension_numbers<[1], [0], [0], [1], [0, 0, 1, 1], [], []>} : vector<8x64xf32>, vector<64x256xf32>, vector<8x256xf32> -> vector<8x256xf32>
    %584 = arith.addf %582, %583 : vector<8x256xf32>
    %585 = arith.negf %584 : vector<8x256xf32>
    %586 = math.exp %585 : vector<8x256xf32>
    %cst_208 = arith.constant 1.000000e+00 : f32
    %587 = vector.broadcast %cst_208 : f32 to vector<8x256xf32>
    %588 = arith.addf %587, %586 : vector<8x256xf32>
    %589 = arith.divf %587, %588 : vector<8x256xf32>
    %590 = vector.extract_strided_slice %589 {offsets = [0, 0], sizes = [8, 64], strides = [1, 1]} : vector<8x256xf32> to vector<8x64xf32>
    %591 = vector.extract_strided_slice %589 {offsets = [0, 64], sizes = [8, 64], strides = [1, 1]} : vector<8x256xf32> to vector<8x64xf32>
    %592 = vector.extract_strided_slice %589 {offsets = [0, 128], sizes = [8, 64], strides = [1, 1]} : vector<8x256xf32> to vector<8x64xf32>
    %cst_209 = arith.constant 2.000000e+00 : f32
    %593 = vector.broadcast %cst_209 : f32 to vector<8x64xf32>
    %594 = arith.mulf %593, %592 : vector<8x64xf32>
    %cst_210 = arith.constant 1.000000e+00 : f32
    %595 = vector.broadcast %cst_210 : f32 to vector<8x64xf32>
    %596 = arith.subf %594, %595 : vector<8x64xf32>
    %597 = vector.extract_strided_slice %589 {offsets = [0, 192], sizes = [8, 64], strides = [1, 1]} : vector<8x256xf32> to vector<8x64xf32>
    %598 = arith.mulf %591, %574 : vector<8x64xf32>
    %599 = arith.mulf %590, %596 : vector<8x64xf32>
    %600 = arith.addf %598, %599 : vector<8x64xf32>
    %601 = math.tanh %600 : vector<8x64xf32>
    %602 = arith.mulf %597, %601 : vector<8x64xf32>
    %603 = vector.broadcast %c4_i32_201 : i32 to vector<8x64xi32>
    %604 = vector.broadcast %575 : i32 to vector<8x64xi32>
    %605 = arith.select %11, %603, %604 : vector<8x64xi1>, vector<8x64xi32>
    %606 = vector.broadcast %0 : vector<8x1xi32> to vector<8x64xi32>
    %607 = arith.cmpi slt, %605, %606 : vector<8x64xi32>
    %cst_211 = arith.constant 0.000000e+00 : f32
    %608 = vector.broadcast %cst_211 : f32 to vector<8x64xf32>
    %609 = arith.select %607, %602, %608 : vector<8x64xi1>, vector<8x64xf32>
    %610 = vector.extract_strided_slice %609 {offsets = [0, 0], sizes = [8, 32], strides = [1, 1]} : vector<8x64xf32> to vector<8x32xf32>
    %c8_i32_212 = arith.constant 8 : i32
    %611 = arith.muli %c4_i32_201, %c8_i32_212 : i32
    %612 = arith.index_cast %611 : i32 to index
    %c0_213 = arith.constant 0 : index
    %613 = vector.load %arg18[%612, %c0_213] : memref<64x64xf32, #tpu.memory_space<vmem>>, vector<8x32xf32>
    tpu.vector_store %arg18[%612, %c0_213], %610 {strides = array<i32>} : memref<64x64xf32, #tpu.memory_space<vmem>>, vector<8x32xf32>,
    %614 = vector.extract_strided_slice %609 {offsets = [0, 32], sizes = [8, 32], strides = [1, 1]} : vector<8x64xf32> to vector<8x32xf32>
    %c8_i32_214 = arith.constant 8 : i32
    %615 = arith.muli %575, %c8_i32_214 : i32
    %616 = arith.index_cast %615 : i32 to index
    %c32_215 = arith.constant 32 : index
    %617 = vector.load %arg18[%616, %c32_215] : memref<64x64xf32, #tpu.memory_space<vmem>>, vector<8x32xf32>
    tpu.vector_store %arg18[%616, %c32_215], %614 {strides = array<i32>} : memref<64x64xf32, #tpu.memory_space<vmem>>, vector<8x32xf32>,
    %618 = arith.select %607, %602, %573 : vector<8x64xi1>, vector<8x64xf32>
    %619 = arith.select %607, %600, %574 : vector<8x64xi1>, vector<8x64xf32>
    %c5_i32_216 = arith.constant 5 : i32
    %c7_i32_217 = arith.constant 7 : i32
    %620 = arith.subi %c7_i32_217, %c5_i32_216 : i32
    %c8_i32_218 = arith.constant 8 : i32
    %621 = arith.muli %c5_i32_216, %c8_i32_218 : i32
    %622 = arith.index_cast %621 : i32 to index
    %c0_219 = arith.constant 0 : index
    %623 = vector.load %arg19[%622, %c0_219] : memref<64x256xf32, #tpu.memory_space<vmem>>, vector<8x256xf32>
    %c8_i32_220 = arith.constant 8 : i32
    %624 = arith.muli %620, %c8_i32_220 : i32
    %625 = arith.index_cast %624 : i32 to index
    %c0_221 = arith.constant 0 : index
    %626 = vector.load %arg19[%625, %c0_221] : memref<64x256xf32, #tpu.memory_space<vmem>>, vector<8x256xf32>
    %627 = arith.select %16, %623, %626 : vector<8x256xi1>, vector<8x256xf32>
    %cst_222 = arith.constant dense<0.000000e+00> : vector<8x256xf32>
    %628 = tpu.matmul %618, %387, %cst_222 {dimension_numbers = #tpu.dot_dimension_numbers<[1], [0], [0], [1], [0, 0, 1, 1], [], []>} : vector<8x64xf32>, vector<64x256xf32>, vector<8x256xf32> -> vector<8x256xf32>
    %629 = arith.addf %627, %628 : vector<8x256xf32>
    %630 = arith.negf %629 : vector<8x256xf32>
    %631 = math.exp %630 : vector<8x256xf32>
    %cst_223 = arith.constant 1.000000e+00 : f32
    %632 = vector.broadcast %cst_223 : f32 to vector<8x256xf32>
    %633 = arith.addf %632, %631 : vector<8x256xf32>
    %634 = arith.divf %632, %633 : vector<8x256xf32>
    %635 = vector.extract_strided_slice %634 {offsets = [0, 0], sizes = [8, 64], strides = [1, 1]} : vector<8x256xf32> to vector<8x64xf32>
    %636 = vector.extract_strided_slice %634 {offsets = [0, 64], sizes = [8, 64], strides = [1, 1]} : vector<8x256xf32> to vector<8x64xf32>
    %637 = vector.extract_strided_slice %634 {offsets = [0, 128], sizes = [8, 64], strides = [1, 1]} : vector<8x256xf32> to vector<8x64xf32>
    %cst_224 = arith.constant 2.000000e+00 : f32
    %638 = vector.broadcast %cst_224 : f32 to vector<8x64xf32>
    %639 = arith.mulf %638, %637 : vector<8x64xf32>
    %cst_225 = arith.constant 1.000000e+00 : f32
    %640 = vector.broadcast %cst_225 : f32 to vector<8x64xf32>
    %641 = arith.subf %639, %640 : vector<8x64xf32>
    %642 = vector.extract_strided_slice %634 {offsets = [0, 192], sizes = [8, 64], strides = [1, 1]} : vector<8x256xf32> to vector<8x64xf32>
    %643 = arith.mulf %636, %619 : vector<8x64xf32>
    %644 = arith.mulf %635, %641 : vector<8x64xf32>
    %645 = arith.addf %643, %644 : vector<8x64xf32>
    %646 = math.tanh %645 : vector<8x64xf32>
    %647 = arith.mulf %642, %646 : vector<8x64xf32>
    %648 = vector.broadcast %c5_i32_216 : i32 to vector<8x64xi32>
    %649 = vector.broadcast %620 : i32 to vector<8x64xi32>
    %650 = arith.select %11, %648, %649 : vector<8x64xi1>, vector<8x64xi32>
    %651 = vector.broadcast %0 : vector<8x1xi32> to vector<8x64xi32>
    %652 = arith.cmpi slt, %650, %651 : vector<8x64xi32>
    %cst_226 = arith.constant 0.000000e+00 : f32
    %653 = vector.broadcast %cst_226 : f32 to vector<8x64xf32>
    %654 = arith.select %652, %647, %653 : vector<8x64xi1>, vector<8x64xf32>
    %655 = vector.extract_strided_slice %654 {offsets = [0, 0], sizes = [8, 32], strides = [1, 1]} : vector<8x64xf32> to vector<8x32xf32>
    %c8_i32_227 = arith.constant 8 : i32
    %656 = arith.muli %c5_i32_216, %c8_i32_227 : i32
    %657 = arith.index_cast %656 : i32 to index
    %c0_228 = arith.constant 0 : index
    %658 = vector.load %arg18[%657, %c0_228] : memref<64x64xf32, #tpu.memory_space<vmem>>, vector<8x32xf32>
    tpu.vector_store %arg18[%657, %c0_228], %655 {strides = array<i32>} : memref<64x64xf32, #tpu.memory_space<vmem>>, vector<8x32xf32>,
    %659 = vector.extract_strided_slice %654 {offsets = [0, 32], sizes = [8, 32], strides = [1, 1]} : vector<8x64xf32> to vector<8x32xf32>
    %c8_i32_229 = arith.constant 8 : i32
    %660 = arith.muli %620, %c8_i32_229 : i32
    %661 = arith.index_cast %660 : i32 to index
    %c32_230 = arith.constant 32 : index
    %662 = vector.load %arg18[%661, %c32_230] : memref<64x64xf32, #tpu.memory_space<vmem>>, vector<8x32xf32>
    tpu.vector_store %arg18[%661, %c32_230], %659 {strides = array<i32>} : memref<64x64xf32, #tpu.memory_space<vmem>>, vector<8x32xf32>,
    %663 = arith.select %652, %647, %618 : vector<8x64xi1>, vector<8x64xf32>
    %664 = arith.select %652, %645, %619 : vector<8x64xi1>, vector<8x64xf32>
    %c6_i32_231 = arith.constant 6 : i32
    %c7_i32_232 = arith.constant 7 : i32
    %665 = arith.subi %c7_i32_232, %c6_i32_231 : i32
    %c8_i32_233 = arith.constant 8 : i32
    %666 = arith.muli %c6_i32_231, %c8_i32_233 : i32
    %667 = arith.index_cast %666 : i32 to index
    %c0_234 = arith.constant 0 : index
    %668 = vector.load %arg19[%667, %c0_234] : memref<64x256xf32, #tpu.memory_space<vmem>>, vector<8x256xf32>
    %c8_i32_235 = arith.constant 8 : i32
    %669 = arith.muli %665, %c8_i32_235 : i32
    %670 = arith.index_cast %669 : i32 to index
    %c0_236 = arith.constant 0 : index
    %671 = vector.load %arg19[%670, %c0_236] : memref<64x256xf32, #tpu.memory_space<vmem>>, vector<8x256xf32>
    %672 = arith.select %16, %668, %671 : vector<8x256xi1>, vector<8x256xf32>
    %cst_237 = arith.constant dense<0.000000e+00> : vector<8x256xf32>
    %673 = tpu.matmul %663, %387, %cst_237 {dimension_numbers = #tpu.dot_dimension_numbers<[1], [0], [0], [1], [0, 0, 1, 1], [], []>} : vector<8x64xf32>, vector<64x256xf32>, vector<8x256xf32> -> vector<8x256xf32>
    %674 = arith.addf %672, %673 : vector<8x256xf32>
    %675 = arith.negf %674 : vector<8x256xf32>
    %676 = math.exp %675 : vector<8x256xf32>
    %cst_238 = arith.constant 1.000000e+00 : f32
    %677 = vector.broadcast %cst_238 : f32 to vector<8x256xf32>
    %678 = arith.addf %677, %676 : vector<8x256xf32>
    %679 = arith.divf %677, %678 : vector<8x256xf32>
    %680 = vector.extract_strided_slice %679 {offsets = [0, 0], sizes = [8, 64], strides = [1, 1]} : vector<8x256xf32> to vector<8x64xf32>
    %681 = vector.extract_strided_slice %679 {offsets = [0, 64], sizes = [8, 64], strides = [1, 1]} : vector<8x256xf32> to vector<8x64xf32>
    %682 = vector.extract_strided_slice %679 {offsets = [0, 128], sizes = [8, 64], strides = [1, 1]} : vector<8x256xf32> to vector<8x64xf32>
    %cst_239 = arith.constant 2.000000e+00 : f32
    %683 = vector.broadcast %cst_239 : f32 to vector<8x64xf32>
    %684 = arith.mulf %683, %682 : vector<8x64xf32>
    %cst_240 = arith.constant 1.000000e+00 : f32
    %685 = vector.broadcast %cst_240 : f32 to vector<8x64xf32>
    %686 = arith.subf %684, %685 : vector<8x64xf32>
    %687 = vector.extract_strided_slice %679 {offsets = [0, 192], sizes = [8, 64], strides = [1, 1]} : vector<8x256xf32> to vector<8x64xf32>
    %688 = arith.mulf %681, %664 : vector<8x64xf32>
    %689 = arith.mulf %680, %686 : vector<8x64xf32>
    %690 = arith.addf %688, %689 : vector<8x64xf32>
    %691 = math.tanh %690 : vector<8x64xf32>
    %692 = arith.mulf %687, %691 : vector<8x64xf32>
    %693 = vector.broadcast %c6_i32_231 : i32 to vector<8x64xi32>
    %694 = vector.broadcast %665 : i32 to vector<8x64xi32>
    %695 = arith.select %11, %693, %694 : vector<8x64xi1>, vector<8x64xi32>
    %696 = vector.broadcast %0 : vector<8x1xi32> to vector<8x64xi32>
    %697 = arith.cmpi slt, %695, %696 : vector<8x64xi32>
    %cst_241 = arith.constant 0.000000e+00 : f32
    %698 = vector.broadcast %cst_241 : f32 to vector<8x64xf32>
    %699 = arith.select %697, %692, %698 : vector<8x64xi1>, vector<8x64xf32>
    %700 = vector.extract_strided_slice %699 {offsets = [0, 0], sizes = [8, 32], strides = [1, 1]} : vector<8x64xf32> to vector<8x32xf32>
    %c8_i32_242 = arith.constant 8 : i32
    %701 = arith.muli %c6_i32_231, %c8_i32_242 : i32
    %702 = arith.index_cast %701 : i32 to index
    %c0_243 = arith.constant 0 : index
    %703 = vector.load %arg18[%702, %c0_243] : memref<64x64xf32, #tpu.memory_space<vmem>>, vector<8x32xf32>
    tpu.vector_store %arg18[%702, %c0_243], %700 {strides = array<i32>} : memref<64x64xf32, #tpu.memory_space<vmem>>, vector<8x32xf32>,
    %704 = vector.extract_strided_slice %699 {offsets = [0, 32], sizes = [8, 32], strides = [1, 1]} : vector<8x64xf32> to vector<8x32xf32>
    %c8_i32_244 = arith.constant 8 : i32
    %705 = arith.muli %665, %c8_i32_244 : i32
    %706 = arith.index_cast %705 : i32 to index
    %c32_245 = arith.constant 32 : index
    %707 = vector.load %arg18[%706, %c32_245] : memref<64x64xf32, #tpu.memory_space<vmem>>, vector<8x32xf32>
    tpu.vector_store %arg18[%706, %c32_245], %704 {strides = array<i32>} : memref<64x64xf32, #tpu.memory_space<vmem>>, vector<8x32xf32>,
    %708 = arith.select %697, %692, %663 : vector<8x64xi1>, vector<8x64xf32>
    %709 = arith.select %697, %690, %664 : vector<8x64xi1>, vector<8x64xf32>
    %c7_i32_246 = arith.constant 7 : i32
    %c7_i32_247 = arith.constant 7 : i32
    %710 = arith.subi %c7_i32_247, %c7_i32_246 : i32
    %c8_i32_248 = arith.constant 8 : i32
    %711 = arith.muli %c7_i32_246, %c8_i32_248 : i32
    %712 = arith.index_cast %711 : i32 to index
    %c0_249 = arith.constant 0 : index
    %713 = vector.load %arg19[%712, %c0_249] : memref<64x256xf32, #tpu.memory_space<vmem>>, vector<8x256xf32>
    %c8_i32_250 = arith.constant 8 : i32
    %714 = arith.muli %710, %c8_i32_250 : i32
    %715 = arith.index_cast %714 : i32 to index
    %c0_251 = arith.constant 0 : index
    %716 = vector.load %arg19[%715, %c0_251] : memref<64x256xf32, #tpu.memory_space<vmem>>, vector<8x256xf32>
    %717 = arith.select %16, %713, %716 : vector<8x256xi1>, vector<8x256xf32>
    %cst_252 = arith.constant dense<0.000000e+00> : vector<8x256xf32>
    %718 = tpu.matmul %708, %387, %cst_252 {dimension_numbers = #tpu.dot_dimension_numbers<[1], [0], [0], [1], [0, 0, 1, 1], [], []>} : vector<8x64xf32>, vector<64x256xf32>, vector<8x256xf32> -> vector<8x256xf32>
    %719 = arith.addf %717, %718 : vector<8x256xf32>
    %720 = arith.negf %719 : vector<8x256xf32>
    %721 = math.exp %720 : vector<8x256xf32>
    %cst_253 = arith.constant 1.000000e+00 : f32
    %722 = vector.broadcast %cst_253 : f32 to vector<8x256xf32>
    %723 = arith.addf %722, %721 : vector<8x256xf32>
    %724 = arith.divf %722, %723 : vector<8x256xf32>
    %725 = vector.extract_strided_slice %724 {offsets = [0, 0], sizes = [8, 64], strides = [1, 1]} : vector<8x256xf32> to vector<8x64xf32>
    %726 = vector.extract_strided_slice %724 {offsets = [0, 64], sizes = [8, 64], strides = [1, 1]} : vector<8x256xf32> to vector<8x64xf32>
    %727 = vector.extract_strided_slice %724 {offsets = [0, 128], sizes = [8, 64], strides = [1, 1]} : vector<8x256xf32> to vector<8x64xf32>
    %cst_254 = arith.constant 2.000000e+00 : f32
    %728 = vector.broadcast %cst_254 : f32 to vector<8x64xf32>
    %729 = arith.mulf %728, %727 : vector<8x64xf32>
    %cst_255 = arith.constant 1.000000e+00 : f32
    %730 = vector.broadcast %cst_255 : f32 to vector<8x64xf32>
    %731 = arith.subf %729, %730 : vector<8x64xf32>
    %732 = vector.extract_strided_slice %724 {offsets = [0, 192], sizes = [8, 64], strides = [1, 1]} : vector<8x256xf32> to vector<8x64xf32>
    %733 = arith.mulf %726, %709 : vector<8x64xf32>
    %734 = arith.mulf %725, %731 : vector<8x64xf32>
    %735 = arith.addf %733, %734 : vector<8x64xf32>
    %736 = math.tanh %735 : vector<8x64xf32>
    %737 = arith.mulf %732, %736 : vector<8x64xf32>
    %738 = vector.broadcast %c7_i32_246 : i32 to vector<8x64xi32>
    %739 = vector.broadcast %710 : i32 to vector<8x64xi32>
    %740 = arith.select %11, %738, %739 : vector<8x64xi1>, vector<8x64xi32>
    %741 = vector.broadcast %0 : vector<8x1xi32> to vector<8x64xi32>
    %742 = arith.cmpi slt, %740, %741 : vector<8x64xi32>
    %cst_256 = arith.constant 0.000000e+00 : f32
    %743 = vector.broadcast %cst_256 : f32 to vector<8x64xf32>
    %744 = arith.select %742, %737, %743 : vector<8x64xi1>, vector<8x64xf32>
    %745 = vector.extract_strided_slice %744 {offsets = [0, 0], sizes = [8, 32], strides = [1, 1]} : vector<8x64xf32> to vector<8x32xf32>
    %c8_i32_257 = arith.constant 8 : i32
    %746 = arith.muli %c7_i32_246, %c8_i32_257 : i32
    %747 = arith.index_cast %746 : i32 to index
    %c0_258 = arith.constant 0 : index
    %748 = vector.load %arg18[%747, %c0_258] : memref<64x64xf32, #tpu.memory_space<vmem>>, vector<8x32xf32>
    tpu.vector_store %arg18[%747, %c0_258], %745 {strides = array<i32>} : memref<64x64xf32, #tpu.memory_space<vmem>>, vector<8x32xf32>,
    %749 = vector.extract_strided_slice %744 {offsets = [0, 32], sizes = [8, 32], strides = [1, 1]} : vector<8x64xf32> to vector<8x32xf32>
    %c8_i32_259 = arith.constant 8 : i32
    %750 = arith.muli %710, %c8_i32_259 : i32
    %751 = arith.index_cast %750 : i32 to index
    %c32_260 = arith.constant 32 : index
    %752 = vector.load %arg18[%751, %c32_260] : memref<64x64xf32, #tpu.memory_space<vmem>>, vector<8x32xf32>
    tpu.vector_store %arg18[%751, %c32_260], %749 {strides = array<i32>} : memref<64x64xf32, #tpu.memory_space<vmem>>, vector<8x32xf32>,
    %753 = arith.select %742, %737, %708 : vector<8x64xi1>, vector<8x64xf32>
    %754 = arith.select %742, %735, %709 : vector<8x64xi1>, vector<8x64xf32>
    %c8_i32_261 = arith.constant 8 : i32
    %c0_262 = arith.constant 0 : index
    %c64 = arith.constant 64 : index
    %755 = vector.load %arg20[%c0_262, %c64] : memref<8x320xf32, #tpu.memory_space<vmem>>, vector<8x64xf32>
    tpu.vector_store %arg20[%c0_262, %c64], %754 {strides = array<i32>} : memref<8x320xf32, #tpu.memory_space<vmem>>, vector<8x64xf32>,
    %c0_263 = arith.constant 0 : index
    %c0_264 = arith.constant 0 : index
    %756 = vector.load %arg18[%c0_263, %c0_264] : memref<64x64xf32, #tpu.memory_space<vmem>>, vector<64x64xf32>
    %c0_265 = arith.constant 0 : index
    %c0_266 = arith.constant 0 : index
    %757 = vector.load %arg10[%c0_265, %c0_266] : memref<64x256xf32, #tpu.memory_space<vmem>>, vector<64x256xf32>
    %c0_267 = arith.constant 0 : index
    %c0_268 = arith.constant 0 : index
    %758 = vector.load %arg9[%c0_267, %c0_268] : memref<64x256xf32, #tpu.memory_space<vmem>>, vector<64x256xf32>
    %cst_269 = arith.constant dense<0.000000e+00> : vector<64x256xf32>
    %759 = tpu.matmul %756, %758, %cst_269 {dimension_numbers = #tpu.dot_dimension_numbers<[1], [0], [0], [1], [0, 0, 1, 1], [], []>} : vector<64x64xf32>, vector<64x256xf32>, vector<64x256xf32> -> vector<64x256xf32>
    %c0_270 = arith.constant 0 : index
    %c0_271 = arith.constant 0 : index
    %760 = vector.load %arg11[%c0_270, %c0_271] : memref<1x256xf32, #tpu.memory_space<vmem>>, vector<1x256xf32>
    %761 = vector.broadcast %760 : vector<1x256xf32> to vector<64x256xf32>
    %762 = arith.addf %759, %761 : vector<64x256xf32>
    %c0_272 = arith.constant 0 : index
    %c0_273 = arith.constant 0 : index
    %763 = vector.load %arg19[%c0_272, %c0_273] : memref<64x256xf32, #tpu.memory_space<vmem>>, vector<64x256xf32>
    tpu.vector_store %arg19[%c0_272, %c0_273], %762 {strides = array<i32>} : memref<64x256xf32, #tpu.memory_space<vmem>>, vector<64x256xf32>,
    %cst_274 = arith.constant 0.000000e+00 : f32
    %764 = vector.broadcast %cst_274 : f32 to vector<8x64xf32>
    %c0_i32_275 = arith.constant 0 : i32
    %c7_i32_276 = arith.constant 7 : i32
    %765 = arith.subi %c7_i32_276, %c0_i32_275 : i32
    %c8_i32_277 = arith.constant 8 : i32
    %766 = arith.muli %c0_i32_275, %c8_i32_277 : i32
    %767 = arith.index_cast %766 : i32 to index
    %c0_278 = arith.constant 0 : index
    %768 = vector.load %arg19[%767, %c0_278] : memref<64x256xf32, #tpu.memory_space<vmem>>, vector<8x256xf32>
    %c8_i32_279 = arith.constant 8 : i32
    %769 = arith.muli %765, %c8_i32_279 : i32
    %770 = arith.index_cast %769 : i32 to index
    %c0_280 = arith.constant 0 : index
    %771 = vector.load %arg19[%770, %c0_280] : memref<64x256xf32, #tpu.memory_space<vmem>>, vector<8x256xf32>
    %772 = arith.select %16, %768, %771 : vector<8x256xi1>, vector<8x256xf32>
    %cst_281 = arith.constant dense<0.000000e+00> : vector<8x256xf32>
    %773 = tpu.matmul %764, %757, %cst_281 {dimension_numbers = #tpu.dot_dimension_numbers<[1], [0], [0], [1], [0, 0, 1, 1], [], []>} : vector<8x64xf32>, vector<64x256xf32>, vector<8x256xf32> -> vector<8x256xf32>
    %774 = arith.addf %772, %773 : vector<8x256xf32>
    %775 = arith.negf %774 : vector<8x256xf32>
    %776 = math.exp %775 : vector<8x256xf32>
    %cst_282 = arith.constant 1.000000e+00 : f32
    %777 = vector.broadcast %cst_282 : f32 to vector<8x256xf32>
    %778 = arith.addf %777, %776 : vector<8x256xf32>
    %779 = arith.divf %777, %778 : vector<8x256xf32>
    %780 = vector.extract_strided_slice %779 {offsets = [0, 0], sizes = [8, 64], strides = [1, 1]} : vector<8x256xf32> to vector<8x64xf32>
    %781 = vector.extract_strided_slice %779 {offsets = [0, 64], sizes = [8, 64], strides = [1, 1]} : vector<8x256xf32> to vector<8x64xf32>
    %782 = vector.extract_strided_slice %779 {offsets = [0, 128], sizes = [8, 64], strides = [1, 1]} : vector<8x256xf32> to vector<8x64xf32>
    %cst_283 = arith.constant 2.000000e+00 : f32
    %783 = vector.broadcast %cst_283 : f32 to vector<8x64xf32>
    %784 = arith.mulf %783, %782 : vector<8x64xf32>
    %cst_284 = arith.constant 1.000000e+00 : f32
    %785 = vector.broadcast %cst_284 : f32 to vector<8x64xf32>
    %786 = arith.subf %784, %785 : vector<8x64xf32>
    %787 = vector.extract_strided_slice %779 {offsets = [0, 192], sizes = [8, 64], strides = [1, 1]} : vector<8x256xf32> to vector<8x64xf32>
    %788 = arith.mulf %781, %764 : vector<8x64xf32>
    %789 = arith.mulf %780, %786 : vector<8x64xf32>
    %790 = arith.addf %788, %789 : vector<8x64xf32>
    %791 = math.tanh %790 : vector<8x64xf32>
    %792 = arith.mulf %787, %791 : vector<8x64xf32>
    %793 = vector.broadcast %c0_i32_275 : i32 to vector<8x64xi32>
    %794 = vector.broadcast %765 : i32 to vector<8x64xi32>
    %795 = arith.select %11, %793, %794 : vector<8x64xi1>, vector<8x64xi32>
    %796 = vector.broadcast %0 : vector<8x1xi32> to vector<8x64xi32>
    %797 = arith.cmpi slt, %795, %796 : vector<8x64xi32>
    %cst_285 = arith.constant 0.000000e+00 : f32
    %798 = vector.broadcast %cst_285 : f32 to vector<8x64xf32>
    %799 = arith.select %797, %792, %798 : vector<8x64xi1>, vector<8x64xf32>
    %800 = vector.extract_strided_slice %799 {offsets = [0, 0], sizes = [8, 32], strides = [1, 1]} : vector<8x64xf32> to vector<8x32xf32>
    %c8_i32_286 = arith.constant 8 : i32
    %801 = arith.muli %c0_i32_275, %c8_i32_286 : i32
    %802 = arith.index_cast %801 : i32 to index
    %c0_287 = arith.constant 0 : index
    %803 = vector.load %arg17[%802, %c0_287] : memref<64x64xf32, #tpu.memory_space<vmem>>, vector<8x32xf32>
    tpu.vector_store %arg17[%802, %c0_287], %800 {strides = array<i32>} : memref<64x64xf32, #tpu.memory_space<vmem>>, vector<8x32xf32>,
    %804 = vector.extract_strided_slice %799 {offsets = [0, 32], sizes = [8, 32], strides = [1, 1]} : vector<8x64xf32> to vector<8x32xf32>
    %c8_i32_288 = arith.constant 8 : i32
    %805 = arith.muli %765, %c8_i32_288 : i32
    %806 = arith.index_cast %805 : i32 to index
    %c32_289 = arith.constant 32 : index
    %807 = vector.load %arg17[%806, %c32_289] : memref<64x64xf32, #tpu.memory_space<vmem>>, vector<8x32xf32>
    tpu.vector_store %arg17[%806, %c32_289], %804 {strides = array<i32>} : memref<64x64xf32, #tpu.memory_space<vmem>>, vector<8x32xf32>,
    %808 = arith.select %797, %792, %764 : vector<8x64xi1>, vector<8x64xf32>
    %809 = arith.select %797, %790, %764 : vector<8x64xi1>, vector<8x64xf32>
    %c1_i32_290 = arith.constant 1 : i32
    %c7_i32_291 = arith.constant 7 : i32
    %810 = arith.subi %c7_i32_291, %c1_i32_290 : i32
    %c8_i32_292 = arith.constant 8 : i32
    %811 = arith.muli %c1_i32_290, %c8_i32_292 : i32
    %812 = arith.index_cast %811 : i32 to index
    %c0_293 = arith.constant 0 : index
    %813 = vector.load %arg19[%812, %c0_293] : memref<64x256xf32, #tpu.memory_space<vmem>>, vector<8x256xf32>
    %c8_i32_294 = arith.constant 8 : i32
    %814 = arith.muli %810, %c8_i32_294 : i32
    %815 = arith.index_cast %814 : i32 to index
    %c0_295 = arith.constant 0 : index
    %816 = vector.load %arg19[%815, %c0_295] : memref<64x256xf32, #tpu.memory_space<vmem>>, vector<8x256xf32>
    %817 = arith.select %16, %813, %816 : vector<8x256xi1>, vector<8x256xf32>
    %cst_296 = arith.constant dense<0.000000e+00> : vector<8x256xf32>
    %818 = tpu.matmul %808, %757, %cst_296 {dimension_numbers = #tpu.dot_dimension_numbers<[1], [0], [0], [1], [0, 0, 1, 1], [], []>} : vector<8x64xf32>, vector<64x256xf32>, vector<8x256xf32> -> vector<8x256xf32>
    %819 = arith.addf %817, %818 : vector<8x256xf32>
    %820 = arith.negf %819 : vector<8x256xf32>
    %821 = math.exp %820 : vector<8x256xf32>
    %cst_297 = arith.constant 1.000000e+00 : f32
    %822 = vector.broadcast %cst_297 : f32 to vector<8x256xf32>
    %823 = arith.addf %822, %821 : vector<8x256xf32>
    %824 = arith.divf %822, %823 : vector<8x256xf32>
    %825 = vector.extract_strided_slice %824 {offsets = [0, 0], sizes = [8, 64], strides = [1, 1]} : vector<8x256xf32> to vector<8x64xf32>
    %826 = vector.extract_strided_slice %824 {offsets = [0, 64], sizes = [8, 64], strides = [1, 1]} : vector<8x256xf32> to vector<8x64xf32>
    %827 = vector.extract_strided_slice %824 {offsets = [0, 128], sizes = [8, 64], strides = [1, 1]} : vector<8x256xf32> to vector<8x64xf32>
    %cst_298 = arith.constant 2.000000e+00 : f32
    %828 = vector.broadcast %cst_298 : f32 to vector<8x64xf32>
    %829 = arith.mulf %828, %827 : vector<8x64xf32>
    %cst_299 = arith.constant 1.000000e+00 : f32
    %830 = vector.broadcast %cst_299 : f32 to vector<8x64xf32>
    %831 = arith.subf %829, %830 : vector<8x64xf32>
    %832 = vector.extract_strided_slice %824 {offsets = [0, 192], sizes = [8, 64], strides = [1, 1]} : vector<8x256xf32> to vector<8x64xf32>
    %833 = arith.mulf %826, %809 : vector<8x64xf32>
    %834 = arith.mulf %825, %831 : vector<8x64xf32>
    %835 = arith.addf %833, %834 : vector<8x64xf32>
    %836 = math.tanh %835 : vector<8x64xf32>
    %837 = arith.mulf %832, %836 : vector<8x64xf32>
    %838 = vector.broadcast %c1_i32_290 : i32 to vector<8x64xi32>
    %839 = vector.broadcast %810 : i32 to vector<8x64xi32>
    %840 = arith.select %11, %838, %839 : vector<8x64xi1>, vector<8x64xi32>
    %841 = vector.broadcast %0 : vector<8x1xi32> to vector<8x64xi32>
    %842 = arith.cmpi slt, %840, %841 : vector<8x64xi32>
    %cst_300 = arith.constant 0.000000e+00 : f32
    %843 = vector.broadcast %cst_300 : f32 to vector<8x64xf32>
    %844 = arith.select %842, %837, %843 : vector<8x64xi1>, vector<8x64xf32>
    %845 = vector.extract_strided_slice %844 {offsets = [0, 0], sizes = [8, 32], strides = [1, 1]} : vector<8x64xf32> to vector<8x32xf32>
    %c8_i32_301 = arith.constant 8 : i32
    %846 = arith.muli %c1_i32_290, %c8_i32_301 : i32
    %847 = arith.index_cast %846 : i32 to index
    %c0_302 = arith.constant 0 : index
    %848 = vector.load %arg17[%847, %c0_302] : memref<64x64xf32, #tpu.memory_space<vmem>>, vector<8x32xf32>
    tpu.vector_store %arg17[%847, %c0_302], %845 {strides = array<i32>} : memref<64x64xf32, #tpu.memory_space<vmem>>, vector<8x32xf32>,
    %849 = vector.extract_strided_slice %844 {offsets = [0, 32], sizes = [8, 32], strides = [1, 1]} : vector<8x64xf32> to vector<8x32xf32>
    %c8_i32_303 = arith.constant 8 : i32
    %850 = arith.muli %810, %c8_i32_303 : i32
    %851 = arith.index_cast %850 : i32 to index
    %c32_304 = arith.constant 32 : index
    %852 = vector.load %arg17[%851, %c32_304] : memref<64x64xf32, #tpu.memory_space<vmem>>, vector<8x32xf32>
    tpu.vector_store %arg17[%851, %c32_304], %849 {strides = array<i32>} : memref<64x64xf32, #tpu.memory_space<vmem>>, vector<8x32xf32>,
    %853 = arith.select %842, %837, %808 : vector<8x64xi1>, vector<8x64xf32>
    %854 = arith.select %842, %835, %809 : vector<8x64xi1>, vector<8x64xf32>
    %c2_i32_305 = arith.constant 2 : i32
    %c7_i32_306 = arith.constant 7 : i32
    %855 = arith.subi %c7_i32_306, %c2_i32_305 : i32
    %c8_i32_307 = arith.constant 8 : i32
    %856 = arith.muli %c2_i32_305, %c8_i32_307 : i32
    %857 = arith.index_cast %856 : i32 to index
    %c0_308 = arith.constant 0 : index
    %858 = vector.load %arg19[%857, %c0_308] : memref<64x256xf32, #tpu.memory_space<vmem>>, vector<8x256xf32>
    %c8_i32_309 = arith.constant 8 : i32
    %859 = arith.muli %855, %c8_i32_309 : i32
    %860 = arith.index_cast %859 : i32 to index
    %c0_310 = arith.constant 0 : index
    %861 = vector.load %arg19[%860, %c0_310] : memref<64x256xf32, #tpu.memory_space<vmem>>, vector<8x256xf32>
    %862 = arith.select %16, %858, %861 : vector<8x256xi1>, vector<8x256xf32>
    %cst_311 = arith.constant dense<0.000000e+00> : vector<8x256xf32>
    %863 = tpu.matmul %853, %757, %cst_311 {dimension_numbers = #tpu.dot_dimension_numbers<[1], [0], [0], [1], [0, 0, 1, 1], [], []>} : vector<8x64xf32>, vector<64x256xf32>, vector<8x256xf32> -> vector<8x256xf32>
    %864 = arith.addf %862, %863 : vector<8x256xf32>
    %865 = arith.negf %864 : vector<8x256xf32>
    %866 = math.exp %865 : vector<8x256xf32>
    %cst_312 = arith.constant 1.000000e+00 : f32
    %867 = vector.broadcast %cst_312 : f32 to vector<8x256xf32>
    %868 = arith.addf %867, %866 : vector<8x256xf32>
    %869 = arith.divf %867, %868 : vector<8x256xf32>
    %870 = vector.extract_strided_slice %869 {offsets = [0, 0], sizes = [8, 64], strides = [1, 1]} : vector<8x256xf32> to vector<8x64xf32>
    %871 = vector.extract_strided_slice %869 {offsets = [0, 64], sizes = [8, 64], strides = [1, 1]} : vector<8x256xf32> to vector<8x64xf32>
    %872 = vector.extract_strided_slice %869 {offsets = [0, 128], sizes = [8, 64], strides = [1, 1]} : vector<8x256xf32> to vector<8x64xf32>
    %cst_313 = arith.constant 2.000000e+00 : f32
    %873 = vector.broadcast %cst_313 : f32 to vector<8x64xf32>
    %874 = arith.mulf %873, %872 : vector<8x64xf32>
    %cst_314 = arith.constant 1.000000e+00 : f32
    %875 = vector.broadcast %cst_314 : f32 to vector<8x64xf32>
    %876 = arith.subf %874, %875 : vector<8x64xf32>
    %877 = vector.extract_strided_slice %869 {offsets = [0, 192], sizes = [8, 64], strides = [1, 1]} : vector<8x256xf32> to vector<8x64xf32>
    %878 = arith.mulf %871, %854 : vector<8x64xf32>
    %879 = arith.mulf %870, %876 : vector<8x64xf32>
    %880 = arith.addf %878, %879 : vector<8x64xf32>
    %881 = math.tanh %880 : vector<8x64xf32>
    %882 = arith.mulf %877, %881 : vector<8x64xf32>
    %883 = vector.broadcast %c2_i32_305 : i32 to vector<8x64xi32>
    %884 = vector.broadcast %855 : i32 to vector<8x64xi32>
    %885 = arith.select %11, %883, %884 : vector<8x64xi1>, vector<8x64xi32>
    %886 = vector.broadcast %0 : vector<8x1xi32> to vector<8x64xi32>
    %887 = arith.cmpi slt, %885, %886 : vector<8x64xi32>
    %cst_315 = arith.constant 0.000000e+00 : f32
    %888 = vector.broadcast %cst_315 : f32 to vector<8x64xf32>
    %889 = arith.select %887, %882, %888 : vector<8x64xi1>, vector<8x64xf32>
    %890 = vector.extract_strided_slice %889 {offsets = [0, 0], sizes = [8, 32], strides = [1, 1]} : vector<8x64xf32> to vector<8x32xf32>
    %c8_i32_316 = arith.constant 8 : i32
    %891 = arith.muli %c2_i32_305, %c8_i32_316 : i32
    %892 = arith.index_cast %891 : i32 to index
    %c0_317 = arith.constant 0 : index
    %893 = vector.load %arg17[%892, %c0_317] : memref<64x64xf32, #tpu.memory_space<vmem>>, vector<8x32xf32>
    tpu.vector_store %arg17[%892, %c0_317], %890 {strides = array<i32>} : memref<64x64xf32, #tpu.memory_space<vmem>>, vector<8x32xf32>,
    %894 = vector.extract_strided_slice %889 {offsets = [0, 32], sizes = [8, 32], strides = [1, 1]} : vector<8x64xf32> to vector<8x32xf32>
    %c8_i32_318 = arith.constant 8 : i32
    %895 = arith.muli %855, %c8_i32_318 : i32
    %896 = arith.index_cast %895 : i32 to index
    %c32_319 = arith.constant 32 : index
    %897 = vector.load %arg17[%896, %c32_319] : memref<64x64xf32, #tpu.memory_space<vmem>>, vector<8x32xf32>
    tpu.vector_store %arg17[%896, %c32_319], %894 {strides = array<i32>} : memref<64x64xf32, #tpu.memory_space<vmem>>, vector<8x32xf32>,
    %898 = arith.select %887, %882, %853 : vector<8x64xi1>, vector<8x64xf32>
    %899 = arith.select %887, %880, %854 : vector<8x64xi1>, vector<8x64xf32>
    %c3_i32_320 = arith.constant 3 : i32
    %c7_i32_321 = arith.constant 7 : i32
    %900 = arith.subi %c7_i32_321, %c3_i32_320 : i32
    %c8_i32_322 = arith.constant 8 : i32
    %901 = arith.muli %c3_i32_320, %c8_i32_322 : i32
    %902 = arith.index_cast %901 : i32 to index
    %c0_323 = arith.constant 0 : index
    %903 = vector.load %arg19[%902, %c0_323] : memref<64x256xf32, #tpu.memory_space<vmem>>, vector<8x256xf32>
    %c8_i32_324 = arith.constant 8 : i32
    %904 = arith.muli %900, %c8_i32_324 : i32
    %905 = arith.index_cast %904 : i32 to index
    %c0_325 = arith.constant 0 : index
    %906 = vector.load %arg19[%905, %c0_325] : memref<64x256xf32, #tpu.memory_space<vmem>>, vector<8x256xf32>
    %907 = arith.select %16, %903, %906 : vector<8x256xi1>, vector<8x256xf32>
    %cst_326 = arith.constant dense<0.000000e+00> : vector<8x256xf32>
    %908 = tpu.matmul %898, %757, %cst_326 {dimension_numbers = #tpu.dot_dimension_numbers<[1], [0], [0], [1], [0, 0, 1, 1], [], []>} : vector<8x64xf32>, vector<64x256xf32>, vector<8x256xf32> -> vector<8x256xf32>
    %909 = arith.addf %907, %908 : vector<8x256xf32>
    %910 = arith.negf %909 : vector<8x256xf32>
    %911 = math.exp %910 : vector<8x256xf32>
    %cst_327 = arith.constant 1.000000e+00 : f32
    %912 = vector.broadcast %cst_327 : f32 to vector<8x256xf32>
    %913 = arith.addf %912, %911 : vector<8x256xf32>
    %914 = arith.divf %912, %913 : vector<8x256xf32>
    %915 = vector.extract_strided_slice %914 {offsets = [0, 0], sizes = [8, 64], strides = [1, 1]} : vector<8x256xf32> to vector<8x64xf32>
    %916 = vector.extract_strided_slice %914 {offsets = [0, 64], sizes = [8, 64], strides = [1, 1]} : vector<8x256xf32> to vector<8x64xf32>
    %917 = vector.extract_strided_slice %914 {offsets = [0, 128], sizes = [8, 64], strides = [1, 1]} : vector<8x256xf32> to vector<8x64xf32>
    %cst_328 = arith.constant 2.000000e+00 : f32
    %918 = vector.broadcast %cst_328 : f32 to vector<8x64xf32>
    %919 = arith.mulf %918, %917 : vector<8x64xf32>
    %cst_329 = arith.constant 1.000000e+00 : f32
    %920 = vector.broadcast %cst_329 : f32 to vector<8x64xf32>
    %921 = arith.subf %919, %920 : vector<8x64xf32>
    %922 = vector.extract_strided_slice %914 {offsets = [0, 192], sizes = [8, 64], strides = [1, 1]} : vector<8x256xf32> to vector<8x64xf32>
    %923 = arith.mulf %916, %899 : vector<8x64xf32>
    %924 = arith.mulf %915, %921 : vector<8x64xf32>
    %925 = arith.addf %923, %924 : vector<8x64xf32>
    %926 = math.tanh %925 : vector<8x64xf32>
    %927 = arith.mulf %922, %926 : vector<8x64xf32>
    %928 = vector.broadcast %c3_i32_320 : i32 to vector<8x64xi32>
    %929 = vector.broadcast %900 : i32 to vector<8x64xi32>
    %930 = arith.select %11, %928, %929 : vector<8x64xi1>, vector<8x64xi32>
    %931 = vector.broadcast %0 : vector<8x1xi32> to vector<8x64xi32>
    %932 = arith.cmpi slt, %930, %931 : vector<8x64xi32>
    %cst_330 = arith.constant 0.000000e+00 : f32
    %933 = vector.broadcast %cst_330 : f32 to vector<8x64xf32>
    %934 = arith.select %932, %927, %933 : vector<8x64xi1>, vector<8x64xf32>
    %935 = vector.extract_strided_slice %934 {offsets = [0, 0], sizes = [8, 32], strides = [1, 1]} : vector<8x64xf32> to vector<8x32xf32>
    %c8_i32_331 = arith.constant 8 : i32
    %936 = arith.muli %c3_i32_320, %c8_i32_331 : i32
    %937 = arith.index_cast %936 : i32 to index
    %c0_332 = arith.constant 0 : index
    %938 = vector.load %arg17[%937, %c0_332] : memref<64x64xf32, #tpu.memory_space<vmem>>, vector<8x32xf32>
    tpu.vector_store %arg17[%937, %c0_332], %935 {strides = array<i32>} : memref<64x64xf32, #tpu.memory_space<vmem>>, vector<8x32xf32>,
    %939 = vector.extract_strided_slice %934 {offsets = [0, 32], sizes = [8, 32], strides = [1, 1]} : vector<8x64xf32> to vector<8x32xf32>
    %c8_i32_333 = arith.constant 8 : i32
    %940 = arith.muli %900, %c8_i32_333 : i32
    %941 = arith.index_cast %940 : i32 to index
    %c32_334 = arith.constant 32 : index
    %942 = vector.load %arg17[%941, %c32_334] : memref<64x64xf32, #tpu.memory_space<vmem>>, vector<8x32xf32>
    tpu.vector_store %arg17[%941, %c32_334], %939 {strides = array<i32>} : memref<64x64xf32, #tpu.memory_space<vmem>>, vector<8x32xf32>,
    %943 = arith.select %932, %927, %898 : vector<8x64xi1>, vector<8x64xf32>
    %944 = arith.select %932, %925, %899 : vector<8x64xi1>, vector<8x64xf32>
    %c4_i32_335 = arith.constant 4 : i32
    %c7_i32_336 = arith.constant 7 : i32
    %945 = arith.subi %c7_i32_336, %c4_i32_335 : i32
    %c8_i32_337 = arith.constant 8 : i32
    %946 = arith.muli %c4_i32_335, %c8_i32_337 : i32
    %947 = arith.index_cast %946 : i32 to index
    %c0_338 = arith.constant 0 : index
    %948 = vector.load %arg19[%947, %c0_338] : memref<64x256xf32, #tpu.memory_space<vmem>>, vector<8x256xf32>
    %c8_i32_339 = arith.constant 8 : i32
    %949 = arith.muli %945, %c8_i32_339 : i32
    %950 = arith.index_cast %949 : i32 to index
    %c0_340 = arith.constant 0 : index
    %951 = vector.load %arg19[%950, %c0_340] : memref<64x256xf32, #tpu.memory_space<vmem>>, vector<8x256xf32>
    %952 = arith.select %16, %948, %951 : vector<8x256xi1>, vector<8x256xf32>
    %cst_341 = arith.constant dense<0.000000e+00> : vector<8x256xf32>
    %953 = tpu.matmul %943, %757, %cst_341 {dimension_numbers = #tpu.dot_dimension_numbers<[1], [0], [0], [1], [0, 0, 1, 1], [], []>} : vector<8x64xf32>, vector<64x256xf32>, vector<8x256xf32> -> vector<8x256xf32>
    %954 = arith.addf %952, %953 : vector<8x256xf32>
    %955 = arith.negf %954 : vector<8x256xf32>
    %956 = math.exp %955 : vector<8x256xf32>
    %cst_342 = arith.constant 1.000000e+00 : f32
    %957 = vector.broadcast %cst_342 : f32 to vector<8x256xf32>
    %958 = arith.addf %957, %956 : vector<8x256xf32>
    %959 = arith.divf %957, %958 : vector<8x256xf32>
    %960 = vector.extract_strided_slice %959 {offsets = [0, 0], sizes = [8, 64], strides = [1, 1]} : vector<8x256xf32> to vector<8x64xf32>
    %961 = vector.extract_strided_slice %959 {offsets = [0, 64], sizes = [8, 64], strides = [1, 1]} : vector<8x256xf32> to vector<8x64xf32>
    %962 = vector.extract_strided_slice %959 {offsets = [0, 128], sizes = [8, 64], strides = [1, 1]} : vector<8x256xf32> to vector<8x64xf32>
    %cst_343 = arith.constant 2.000000e+00 : f32
    %963 = vector.broadcast %cst_343 : f32 to vector<8x64xf32>
    %964 = arith.mulf %963, %962 : vector<8x64xf32>
    %cst_344 = arith.constant 1.000000e+00 : f32
    %965 = vector.broadcast %cst_344 : f32 to vector<8x64xf32>
    %966 = arith.subf %964, %965 : vector<8x64xf32>
    %967 = vector.extract_strided_slice %959 {offsets = [0, 192], sizes = [8, 64], strides = [1, 1]} : vector<8x256xf32> to vector<8x64xf32>
    %968 = arith.mulf %961, %944 : vector<8x64xf32>
    %969 = arith.mulf %960, %966 : vector<8x64xf32>
    %970 = arith.addf %968, %969 : vector<8x64xf32>
    %971 = math.tanh %970 : vector<8x64xf32>
    %972 = arith.mulf %967, %971 : vector<8x64xf32>
    %973 = vector.broadcast %c4_i32_335 : i32 to vector<8x64xi32>
    %974 = vector.broadcast %945 : i32 to vector<8x64xi32>
    %975 = arith.select %11, %973, %974 : vector<8x64xi1>, vector<8x64xi32>
    %976 = vector.broadcast %0 : vector<8x1xi32> to vector<8x64xi32>
    %977 = arith.cmpi slt, %975, %976 : vector<8x64xi32>
    %cst_345 = arith.constant 0.000000e+00 : f32
    %978 = vector.broadcast %cst_345 : f32 to vector<8x64xf32>
    %979 = arith.select %977, %972, %978 : vector<8x64xi1>, vector<8x64xf32>
    %980 = vector.extract_strided_slice %979 {offsets = [0, 0], sizes = [8, 32], strides = [1, 1]} : vector<8x64xf32> to vector<8x32xf32>
    %c8_i32_346 = arith.constant 8 : i32
    %981 = arith.muli %c4_i32_335, %c8_i32_346 : i32
    %982 = arith.index_cast %981 : i32 to index
    %c0_347 = arith.constant 0 : index
    %983 = vector.load %arg17[%982, %c0_347] : memref<64x64xf32, #tpu.memory_space<vmem>>, vector<8x32xf32>
    tpu.vector_store %arg17[%982, %c0_347], %980 {strides = array<i32>} : memref<64x64xf32, #tpu.memory_space<vmem>>, vector<8x32xf32>,
    %984 = vector.extract_strided_slice %979 {offsets = [0, 32], sizes = [8, 32], strides = [1, 1]} : vector<8x64xf32> to vector<8x32xf32>
    %c8_i32_348 = arith.constant 8 : i32
    %985 = arith.muli %945, %c8_i32_348 : i32
    %986 = arith.index_cast %985 : i32 to index
    %c32_349 = arith.constant 32 : index
    %987 = vector.load %arg17[%986, %c32_349] : memref<64x64xf32, #tpu.memory_space<vmem>>, vector<8x32xf32>
    tpu.vector_store %arg17[%986, %c32_349], %984 {strides = array<i32>} : memref<64x64xf32, #tpu.memory_space<vmem>>, vector<8x32xf32>,
    %988 = arith.select %977, %972, %943 : vector<8x64xi1>, vector<8x64xf32>
    %989 = arith.select %977, %970, %944 : vector<8x64xi1>, vector<8x64xf32>
    %c5_i32_350 = arith.constant 5 : i32
    %c7_i32_351 = arith.constant 7 : i32
    %990 = arith.subi %c7_i32_351, %c5_i32_350 : i32
    %c8_i32_352 = arith.constant 8 : i32
    %991 = arith.muli %c5_i32_350, %c8_i32_352 : i32
    %992 = arith.index_cast %991 : i32 to index
    %c0_353 = arith.constant 0 : index
    %993 = vector.load %arg19[%992, %c0_353] : memref<64x256xf32, #tpu.memory_space<vmem>>, vector<8x256xf32>
    %c8_i32_354 = arith.constant 8 : i32
    %994 = arith.muli %990, %c8_i32_354 : i32
    %995 = arith.index_cast %994 : i32 to index
    %c0_355 = arith.constant 0 : index
    %996 = vector.load %arg19[%995, %c0_355] : memref<64x256xf32, #tpu.memory_space<vmem>>, vector<8x256xf32>
    %997 = arith.select %16, %993, %996 : vector<8x256xi1>, vector<8x256xf32>
    %cst_356 = arith.constant dense<0.000000e+00> : vector<8x256xf32>
    %998 = tpu.matmul %988, %757, %cst_356 {dimension_numbers = #tpu.dot_dimension_numbers<[1], [0], [0], [1], [0, 0, 1, 1], [], []>} : vector<8x64xf32>, vector<64x256xf32>, vector<8x256xf32> -> vector<8x256xf32>
    %999 = arith.addf %997, %998 : vector<8x256xf32>
    %1000 = arith.negf %999 : vector<8x256xf32>
    %1001 = math.exp %1000 : vector<8x256xf32>
    %cst_357 = arith.constant 1.000000e+00 : f32
    %1002 = vector.broadcast %cst_357 : f32 to vector<8x256xf32>
    %1003 = arith.addf %1002, %1001 : vector<8x256xf32>
    %1004 = arith.divf %1002, %1003 : vector<8x256xf32>
    %1005 = vector.extract_strided_slice %1004 {offsets = [0, 0], sizes = [8, 64], strides = [1, 1]} : vector<8x256xf32> to vector<8x64xf32>
    %1006 = vector.extract_strided_slice %1004 {offsets = [0, 64], sizes = [8, 64], strides = [1, 1]} : vector<8x256xf32> to vector<8x64xf32>
    %1007 = vector.extract_strided_slice %1004 {offsets = [0, 128], sizes = [8, 64], strides = [1, 1]} : vector<8x256xf32> to vector<8x64xf32>
    %cst_358 = arith.constant 2.000000e+00 : f32
    %1008 = vector.broadcast %cst_358 : f32 to vector<8x64xf32>
    %1009 = arith.mulf %1008, %1007 : vector<8x64xf32>
    %cst_359 = arith.constant 1.000000e+00 : f32
    %1010 = vector.broadcast %cst_359 : f32 to vector<8x64xf32>
    %1011 = arith.subf %1009, %1010 : vector<8x64xf32>
    %1012 = vector.extract_strided_slice %1004 {offsets = [0, 192], sizes = [8, 64], strides = [1, 1]} : vector<8x256xf32> to vector<8x64xf32>
    %1013 = arith.mulf %1006, %989 : vector<8x64xf32>
    %1014 = arith.mulf %1005, %1011 : vector<8x64xf32>
    %1015 = arith.addf %1013, %1014 : vector<8x64xf32>
    %1016 = math.tanh %1015 : vector<8x64xf32>
    %1017 = arith.mulf %1012, %1016 : vector<8x64xf32>
    %1018 = vector.broadcast %c5_i32_350 : i32 to vector<8x64xi32>
    %1019 = vector.broadcast %990 : i32 to vector<8x64xi32>
    %1020 = arith.select %11, %1018, %1019 : vector<8x64xi1>, vector<8x64xi32>
    %1021 = vector.broadcast %0 : vector<8x1xi32> to vector<8x64xi32>
    %1022 = arith.cmpi slt, %1020, %1021 : vector<8x64xi32>
    %cst_360 = arith.constant 0.000000e+00 : f32
    %1023 = vector.broadcast %cst_360 : f32 to vector<8x64xf32>
    %1024 = arith.select %1022, %1017, %1023 : vector<8x64xi1>, vector<8x64xf32>
    %1025 = vector.extract_strided_slice %1024 {offsets = [0, 0], sizes = [8, 32], strides = [1, 1]} : vector<8x64xf32> to vector<8x32xf32>
    %c8_i32_361 = arith.constant 8 : i32
    %1026 = arith.muli %c5_i32_350, %c8_i32_361 : i32
    %1027 = arith.index_cast %1026 : i32 to index
    %c0_362 = arith.constant 0 : index
    %1028 = vector.load %arg17[%1027, %c0_362] : memref<64x64xf32, #tpu.memory_space<vmem>>, vector<8x32xf32>
    tpu.vector_store %arg17[%1027, %c0_362], %1025 {strides = array<i32>} : memref<64x64xf32, #tpu.memory_space<vmem>>, vector<8x32xf32>,
    %1029 = vector.extract_strided_slice %1024 {offsets = [0, 32], sizes = [8, 32], strides = [1, 1]} : vector<8x64xf32> to vector<8x32xf32>
    %c8_i32_363 = arith.constant 8 : i32
    %1030 = arith.muli %990, %c8_i32_363 : i32
    %1031 = arith.index_cast %1030 : i32 to index
    %c32_364 = arith.constant 32 : index
    %1032 = vector.load %arg17[%1031, %c32_364] : memref<64x64xf32, #tpu.memory_space<vmem>>, vector<8x32xf32>
    tpu.vector_store %arg17[%1031, %c32_364], %1029 {strides = array<i32>} : memref<64x64xf32, #tpu.memory_space<vmem>>, vector<8x32xf32>,
    %1033 = arith.select %1022, %1017, %988 : vector<8x64xi1>, vector<8x64xf32>
    %1034 = arith.select %1022, %1015, %989 : vector<8x64xi1>, vector<8x64xf32>
    %c6_i32_365 = arith.constant 6 : i32
    %c7_i32_366 = arith.constant 7 : i32
    %1035 = arith.subi %c7_i32_366, %c6_i32_365 : i32
    %c8_i32_367 = arith.constant 8 : i32
    %1036 = arith.muli %c6_i32_365, %c8_i32_367 : i32
    %1037 = arith.index_cast %1036 : i32 to index
    %c0_368 = arith.constant 0 : index
    %1038 = vector.load %arg19[%1037, %c0_368] : memref<64x256xf32, #tpu.memory_space<vmem>>, vector<8x256xf32>
    %c8_i32_369 = arith.constant 8 : i32
    %1039 = arith.muli %1035, %c8_i32_369 : i32
    %1040 = arith.index_cast %1039 : i32 to index
    %c0_370 = arith.constant 0 : index
    %1041 = vector.load %arg19[%1040, %c0_370] : memref<64x256xf32, #tpu.memory_space<vmem>>, vector<8x256xf32>
    %1042 = arith.select %16, %1038, %1041 : vector<8x256xi1>, vector<8x256xf32>
    %cst_371 = arith.constant dense<0.000000e+00> : vector<8x256xf32>
    %1043 = tpu.matmul %1033, %757, %cst_371 {dimension_numbers = #tpu.dot_dimension_numbers<[1], [0], [0], [1], [0, 0, 1, 1], [], []>} : vector<8x64xf32>, vector<64x256xf32>, vector<8x256xf32> -> vector<8x256xf32>
    %1044 = arith.addf %1042, %1043 : vector<8x256xf32>
    %1045 = arith.negf %1044 : vector<8x256xf32>
    %1046 = math.exp %1045 : vector<8x256xf32>
    %cst_372 = arith.constant 1.000000e+00 : f32
    %1047 = vector.broadcast %cst_372 : f32 to vector<8x256xf32>
    %1048 = arith.addf %1047, %1046 : vector<8x256xf32>
    %1049 = arith.divf %1047, %1048 : vector<8x256xf32>
    %1050 = vector.extract_strided_slice %1049 {offsets = [0, 0], sizes = [8, 64], strides = [1, 1]} : vector<8x256xf32> to vector<8x64xf32>
    %1051 = vector.extract_strided_slice %1049 {offsets = [0, 64], sizes = [8, 64], strides = [1, 1]} : vector<8x256xf32> to vector<8x64xf32>
    %1052 = vector.extract_strided_slice %1049 {offsets = [0, 128], sizes = [8, 64], strides = [1, 1]} : vector<8x256xf32> to vector<8x64xf32>
    %cst_373 = arith.constant 2.000000e+00 : f32
    %1053 = vector.broadcast %cst_373 : f32 to vector<8x64xf32>
    %1054 = arith.mulf %1053, %1052 : vector<8x64xf32>
    %cst_374 = arith.constant 1.000000e+00 : f32
    %1055 = vector.broadcast %cst_374 : f32 to vector<8x64xf32>
    %1056 = arith.subf %1054, %1055 : vector<8x64xf32>
    %1057 = vector.extract_strided_slice %1049 {offsets = [0, 192], sizes = [8, 64], strides = [1, 1]} : vector<8x256xf32> to vector<8x64xf32>
    %1058 = arith.mulf %1051, %1034 : vector<8x64xf32>
    %1059 = arith.mulf %1050, %1056 : vector<8x64xf32>
    %1060 = arith.addf %1058, %1059 : vector<8x64xf32>
    %1061 = math.tanh %1060 : vector<8x64xf32>
    %1062 = arith.mulf %1057, %1061 : vector<8x64xf32>
    %1063 = vector.broadcast %c6_i32_365 : i32 to vector<8x64xi32>
    %1064 = vector.broadcast %1035 : i32 to vector<8x64xi32>
    %1065 = arith.select %11, %1063, %1064 : vector<8x64xi1>, vector<8x64xi32>
    %1066 = vector.broadcast %0 : vector<8x1xi32> to vector<8x64xi32>
    %1067 = arith.cmpi slt, %1065, %1066 : vector<8x64xi32>
    %cst_375 = arith.constant 0.000000e+00 : f32
    %1068 = vector.broadcast %cst_375 : f32 to vector<8x64xf32>
    %1069 = arith.select %1067, %1062, %1068 : vector<8x64xi1>, vector<8x64xf32>
    %1070 = vector.extract_strided_slice %1069 {offsets = [0, 0], sizes = [8, 32], strides = [1, 1]} : vector<8x64xf32> to vector<8x32xf32>
    %c8_i32_376 = arith.constant 8 : i32
    %1071 = arith.muli %c6_i32_365, %c8_i32_376 : i32
    %1072 = arith.index_cast %1071 : i32 to index
    %c0_377 = arith.constant 0 : index
    %1073 = vector.load %arg17[%1072, %c0_377] : memref<64x64xf32, #tpu.memory_space<vmem>>, vector<8x32xf32>
    tpu.vector_store %arg17[%1072, %c0_377], %1070 {strides = array<i32>} : memref<64x64xf32, #tpu.memory_space<vmem>>, vector<8x32xf32>,
    %1074 = vector.extract_strided_slice %1069 {offsets = [0, 32], sizes = [8, 32], strides = [1, 1]} : vector<8x64xf32> to vector<8x32xf32>
    %c8_i32_378 = arith.constant 8 : i32
    %1075 = arith.muli %1035, %c8_i32_378 : i32
    %1076 = arith.index_cast %1075 : i32 to index
    %c32_379 = arith.constant 32 : index
    %1077 = vector.load %arg17[%1076, %c32_379] : memref<64x64xf32, #tpu.memory_space<vmem>>, vector<8x32xf32>
    tpu.vector_store %arg17[%1076, %c32_379], %1074 {strides = array<i32>} : memref<64x64xf32, #tpu.memory_space<vmem>>, vector<8x32xf32>,
    %1078 = arith.select %1067, %1062, %1033 : vector<8x64xi1>, vector<8x64xf32>
    %1079 = arith.select %1067, %1060, %1034 : vector<8x64xi1>, vector<8x64xf32>
    %c7_i32_380 = arith.constant 7 : i32
    %c7_i32_381 = arith.constant 7 : i32
    %1080 = arith.subi %c7_i32_381, %c7_i32_380 : i32
    %c8_i32_382 = arith.constant 8 : i32
    %1081 = arith.muli %c7_i32_380, %c8_i32_382 : i32
    %1082 = arith.index_cast %1081 : i32 to index
    %c0_383 = arith.constant 0 : index
    %1083 = vector.load %arg19[%1082, %c0_383] : memref<64x256xf32, #tpu.memory_space<vmem>>, vector<8x256xf32>
    %c8_i32_384 = arith.constant 8 : i32
    %1084 = arith.muli %1080, %c8_i32_384 : i32
    %1085 = arith.index_cast %1084 : i32 to index
    %c0_385 = arith.constant 0 : index
    %1086 = vector.load %arg19[%1085, %c0_385] : memref<64x256xf32, #tpu.memory_space<vmem>>, vector<8x256xf32>
    %1087 = arith.select %16, %1083, %1086 : vector<8x256xi1>, vector<8x256xf32>
    %cst_386 = arith.constant dense<0.000000e+00> : vector<8x256xf32>
    %1088 = tpu.matmul %1078, %757, %cst_386 {dimension_numbers = #tpu.dot_dimension_numbers<[1], [0], [0], [1], [0, 0, 1, 1], [], []>} : vector<8x64xf32>, vector<64x256xf32>, vector<8x256xf32> -> vector<8x256xf32>
    %1089 = arith.addf %1087, %1088 : vector<8x256xf32>
    %1090 = arith.negf %1089 : vector<8x256xf32>
    %1091 = math.exp %1090 : vector<8x256xf32>
    %cst_387 = arith.constant 1.000000e+00 : f32
    %1092 = vector.broadcast %cst_387 : f32 to vector<8x256xf32>
    %1093 = arith.addf %1092, %1091 : vector<8x256xf32>
    %1094 = arith.divf %1092, %1093 : vector<8x256xf32>
    %1095 = vector.extract_strided_slice %1094 {offsets = [0, 0], sizes = [8, 64], strides = [1, 1]} : vector<8x256xf32> to vector<8x64xf32>
    %1096 = vector.extract_strided_slice %1094 {offsets = [0, 64], sizes = [8, 64], strides = [1, 1]} : vector<8x256xf32> to vector<8x64xf32>
    %1097 = vector.extract_strided_slice %1094 {offsets = [0, 128], sizes = [8, 64], strides = [1, 1]} : vector<8x256xf32> to vector<8x64xf32>
    %cst_388 = arith.constant 2.000000e+00 : f32
    %1098 = vector.broadcast %cst_388 : f32 to vector<8x64xf32>
    %1099 = arith.mulf %1098, %1097 : vector<8x64xf32>
    %cst_389 = arith.constant 1.000000e+00 : f32
    %1100 = vector.broadcast %cst_389 : f32 to vector<8x64xf32>
    %1101 = arith.subf %1099, %1100 : vector<8x64xf32>
    %1102 = vector.extract_strided_slice %1094 {offsets = [0, 192], sizes = [8, 64], strides = [1, 1]} : vector<8x256xf32> to vector<8x64xf32>
    %1103 = arith.mulf %1096, %1079 : vector<8x64xf32>
    %1104 = arith.mulf %1095, %1101 : vector<8x64xf32>
    %1105 = arith.addf %1103, %1104 : vector<8x64xf32>
    %1106 = math.tanh %1105 : vector<8x64xf32>
    %1107 = arith.mulf %1102, %1106 : vector<8x64xf32>
    %1108 = vector.broadcast %c7_i32_380 : i32 to vector<8x64xi32>
    %1109 = vector.broadcast %1080 : i32 to vector<8x64xi32>
    %1110 = arith.select %11, %1108, %1109 : vector<8x64xi1>, vector<8x64xi32>
    %1111 = vector.broadcast %0 : vector<8x1xi32> to vector<8x64xi32>
    %1112 = arith.cmpi slt, %1110, %1111 : vector<8x64xi32>
    %cst_390 = arith.constant 0.000000e+00 : f32
    %1113 = vector.broadcast %cst_390 : f32 to vector<8x64xf32>
    %1114 = arith.select %1112, %1107, %1113 : vector<8x64xi1>, vector<8x64xf32>
    %1115 = vector.extract_strided_slice %1114 {offsets = [0, 0], sizes = [8, 32], strides = [1, 1]} : vector<8x64xf32> to vector<8x32xf32>
    %c8_i32_391 = arith.constant 8 : i32
    %1116 = arith.muli %c7_i32_380, %c8_i32_391 : i32
    %1117 = arith.index_cast %1116 : i32 to index
    %c0_392 = arith.constant 0 : index
    %1118 = vector.load %arg17[%1117, %c0_392] : memref<64x64xf32, #tpu.memory_space<vmem>>, vector<8x32xf32>
    tpu.vector_store %arg17[%1117, %c0_392], %1115 {strides = array<i32>} : memref<64x64xf32, #tpu.memory_space<vmem>>, vector<8x32xf32>,
    %1119 = vector.extract_strided_slice %1114 {offsets = [0, 32], sizes = [8, 32], strides = [1, 1]} : vector<8x64xf32> to vector<8x32xf32>
    %c8_i32_393 = arith.constant 8 : i32
    %1120 = arith.muli %1080, %c8_i32_393 : i32
    %1121 = arith.index_cast %1120 : i32 to index
    %c32_394 = arith.constant 32 : index
    %1122 = vector.load %arg17[%1121, %c32_394] : memref<64x64xf32, #tpu.memory_space<vmem>>, vector<8x32xf32>
    tpu.vector_store %arg17[%1121, %c32_394], %1119 {strides = array<i32>} : memref<64x64xf32, #tpu.memory_space<vmem>>, vector<8x32xf32>,
    %1123 = arith.select %1112, %1107, %1078 : vector<8x64xi1>, vector<8x64xf32>
    %1124 = arith.select %1112, %1105, %1079 : vector<8x64xi1>, vector<8x64xf32>
    %c8_i32_395 = arith.constant 8 : i32
    %c0_396 = arith.constant 0 : index
    %c128 = arith.constant 128 : index
    %1125 = vector.load %arg20[%c0_396, %c128] : memref<8x320xf32, #tpu.memory_space<vmem>>, vector<8x64xf32>
    tpu.vector_store %arg20[%c0_396, %c128], %1124 {strides = array<i32>} : memref<8x320xf32, #tpu.memory_space<vmem>>, vector<8x64xf32>,
    %c0_397 = arith.constant 0 : index
    %c0_398 = arith.constant 0 : index
    %1126 = vector.load %arg17[%c0_397, %c0_398] : memref<64x64xf32, #tpu.memory_space<vmem>>, vector<64x64xf32>
    %1127 = vector.extract_strided_slice %1126 {offsets = [0, 0], sizes = [8, 64], strides = [1, 1]} : vector<64x64xf32> to vector<8x64xf32>
    %1128 = vector.extract_strided_slice %1126 {offsets = [0, 0], sizes = [8, 64], strides = [1, 1]} : vector<64x64xf32> to vector<8x64xf32>
    %1129 = vector.extract_strided_slice %1126 {offsets = [8, 0], sizes = [8, 64], strides = [1, 1]} : vector<64x64xf32> to vector<8x64xf32>
    %1130 = arith.maximumf %1127, %1129 : vector<8x64xf32>
    %1131 = arith.addf %1128, %1129 : vector<8x64xf32>
    %1132 = vector.extract_strided_slice %1126 {offsets = [16, 0], sizes = [8, 64], strides = [1, 1]} : vector<64x64xf32> to vector<8x64xf32>
    %1133 = arith.maximumf %1130, %1132 : vector<8x64xf32>
    %1134 = arith.addf %1131, %1132 : vector<8x64xf32>
    %1135 = vector.extract_strided_slice %1126 {offsets = [24, 0], sizes = [8, 64], strides = [1, 1]} : vector<64x64xf32> to vector<8x64xf32>
    %1136 = arith.maximumf %1133, %1135 : vector<8x64xf32>
    %1137 = arith.addf %1134, %1135 : vector<8x64xf32>
    %1138 = vector.extract_strided_slice %1126 {offsets = [32, 0], sizes = [8, 64], strides = [1, 1]} : vector<64x64xf32> to vector<8x64xf32>
    %1139 = arith.maximumf %1136, %1138 : vector<8x64xf32>
    %1140 = arith.addf %1137, %1138 : vector<8x64xf32>
    %1141 = vector.extract_strided_slice %1126 {offsets = [40, 0], sizes = [8, 64], strides = [1, 1]} : vector<64x64xf32> to vector<8x64xf32>
    %1142 = arith.maximumf %1139, %1141 : vector<8x64xf32>
    %1143 = arith.addf %1140, %1141 : vector<8x64xf32>
    %1144 = vector.extract_strided_slice %1126 {offsets = [48, 0], sizes = [8, 64], strides = [1, 1]} : vector<64x64xf32> to vector<8x64xf32>
    %1145 = arith.maximumf %1142, %1144 : vector<8x64xf32>
    %1146 = arith.addf %1143, %1144 : vector<8x64xf32>
    %1147 = vector.extract_strided_slice %1126 {offsets = [56, 0], sizes = [8, 64], strides = [1, 1]} : vector<64x64xf32> to vector<8x64xf32>
    %1148 = arith.maximumf %1145, %1147 : vector<8x64xf32>
    %1149 = arith.addf %1146, %1147 : vector<8x64xf32>
    %c0_399 = arith.constant 0 : index
    %c192 = arith.constant 192 : index
    %1150 = vector.load %arg20[%c0_399, %c192] : memref<8x320xf32, #tpu.memory_space<vmem>>, vector<8x64xf32>
    tpu.vector_store %arg20[%c0_399, %c192], %1148 {strides = array<i32>} : memref<8x320xf32, #tpu.memory_space<vmem>>, vector<8x64xf32>,
    %cst_400 = arith.constant 1.250000e-01 : f32
    %1151 = vector.broadcast %cst_400 : f32 to vector<8x64xf32>
    %1152 = arith.mulf %1149, %1151 : vector<8x64xf32>
    %c0_401 = arith.constant 0 : index
    %c256 = arith.constant 256 : index
    %1153 = vector.load %arg20[%c0_401, %c256] : memref<8x320xf32, #tpu.memory_space<vmem>>, vector<8x64xf32>
    tpu.vector_store %arg20[%c0_401, %c256], %1152 {strides = array<i32>} : memref<8x320xf32, #tpu.memory_space<vmem>>, vector<8x64xf32>,
    %c0_402 = arith.constant 0 : index
    %c0_403 = arith.constant 0 : index
    %1154 = vector.load %arg20[%c0_402, %c0_403] : memref<8x320xf32, #tpu.memory_space<vmem>>, vector<8x320xf32>
    %c0_404 = arith.constant 0 : index
    %c0_405 = arith.constant 0 : index
    %1155 = vector.load %arg12[%c0_404, %c0_405] : memref<320x50xf32, #tpu.memory_space<vmem>>, vector<320x50xf32>
    %cst_406 = arith.constant dense<0.000000e+00> : vector<8x50xf32>
    %1156 = tpu.matmul %1154, %1155, %cst_406 {dimension_numbers = #tpu.dot_dimension_numbers<[1], [0], [0], [1], [0, 0, 1, 1], [], []>} : vector<8x320xf32>, vector<320x50xf32>, vector<8x50xf32> -> vector<8x50xf32>
    %c0_407 = arith.constant 0 : index
    %c0_408 = arith.constant 0 : index
    %1157 = vector.load %arg13[%c0_407, %c0_408] : memref<1x50xf32, #tpu.memory_space<vmem>>, vector<1x50xf32>
    %1158 = vector.broadcast %1157 : vector<1x50xf32> to vector<8x50xf32>
    %1159 = arith.addf %1156, %1158 : vector<8x50xf32>
    %cst_409 = arith.constant 0.000000e+00 : f32
    %1160 = vector.broadcast %cst_409 : f32 to vector<8x50xf32>
    %1161 = arith.maximumf %1159, %1160 : vector<8x50xf32>
    %c0_410 = arith.constant 0 : index
    %c0_411 = arith.constant 0 : index
    %1162 = vector.load %arg14[%c0_410, %c0_411] : memref<50x2xf32, #tpu.memory_space<vmem>>, vector<50x2xf32>
    %cst_412 = arith.constant dense<0.000000e+00> : vector<8x2xf32>
    %1163 = tpu.matmul %1161, %1162, %cst_412 {dimension_numbers = #tpu.dot_dimension_numbers<[1], [0], [0], [1], [0, 0, 1, 1], [], []>} : vector<8x50xf32>, vector<50x2xf32>, vector<8x2xf32> -> vector<8x2xf32>
    %c0_413 = arith.constant 0 : index
    %c0_414 = arith.constant 0 : index
    %1164 = vector.load %arg15[%c0_413, %c0_414] : memref<1x2xf32, #tpu.memory_space<vmem>>, vector<1x2xf32>
    %1165 = vector.broadcast %1164 : vector<1x2xf32> to vector<8x2xf32>
    %1166 = arith.addf %1163, %1165 : vector<8x2xf32>
    %cst_415 = arith.constant 0.000000e+00 : f32
    %1167 = vector.broadcast %cst_415 : f32 to vector<8x2xf32>
    %1168 = arith.maximumf %1166, %1167 : vector<8x2xf32>
    %c0_416 = arith.constant 0 : index
    %c0_417 = arith.constant 0 : index
    %1169 = vector.load %arg16[%c0_416, %c0_417] : memref<8x2xf32, #tpu.memory_space<vmem>>, vector<8x2xf32>
    tpu.vector_store %arg16[%c0_416, %c0_417], %1168 {strides = array<i32>} : memref<8x2xf32, #tpu.memory_space<vmem>>, vector<8x2xf32>,
    return
  }
}

</mosaic_0001>

<llo_original>
// kernel: tpu_custom_call.1
$region0: #{tpu_custom_call.1}
  #allocation0 [shape = 'u32[]', space=smem, size = 0x4, offset = 0x4, fixed_abs, tag = 'smem constant byte address 0x4 - core index']
  #allocation1 [shape = 'u32[72,128]{1,0:T(1,128)}', space=vmem, size = 0x9000, scoped, tag = 'internal scratch']
  #allocation2 [shape = 'f32[64,64]{1,0:T(8,128)}', space=vmem, size = 0x8000, scoped, tag = 'scratch operand']
  #allocation3 [shape = 'f32[64,64]{1,0:T(8,128)}', space=vmem, size = 0x8000, scoped, tag = 'scratch operand']
  #allocation4 [shape = 'f32[64,256]{1,0:T(8,128)}', space=vmem, size = 0x10000, scoped, tag = 'scratch operand']
  #allocation5 [shape = 'f32[8,320]{1,0:T(8,128)}', space=vmem, size = 0x3000, scoped, tag = 'scratch operand']
  %s0 = inlined_call_operand.vmem [shape: s32[64,1], index: 0, kind: input, shape index: {}]
  %s1 = inlined_call_operand.vmem [shape: s32[8,1], index: 1, kind: input, shape index: {}]
  %s2 = inlined_call_operand.vmem [shape: f32[50,32], index: 2, kind: input, shape index: {}]
  %s3 = inlined_call_operand.hbm [shape: f32[32,256], index: 3, kind: input, shape index: {}]
  %s4 = inlined_call_operand.vmem [shape: f32[64,256], index: 4, kind: input, shape index: {}]
  %s5 = inlined_call_operand.vmem [shape: f32[1,256], index: 5, kind: input, shape index: {}]
  %s6 = inlined_call_operand.vmem [shape: f32[64,256], index: 6, kind: input, shape index: {}]
  %s7 = inlined_call_operand.vmem [shape: f32[64,256], index: 7, kind: input, shape index: {}]
  %s8 = inlined_call_operand.vmem [shape: f32[1,256], index: 8, kind: input, shape index: {}]
  %s9 = inlined_call_operand.vmem [shape: f32[64,256], index: 9, kind: input, shape index: {}]
  %s10 = inlined_call_operand.hbm [shape: f32[64,256], index: 10, kind: input, shape index: {}]
  %s11 = inlined_call_operand.vmem [shape: f32[1,256], index: 11, kind: input, shape index: {}]
  %s12 = inlined_call_operand.vmem [shape: f32[320,50], index: 12, kind: input, shape index: {}]
  %s13 = inlined_call_operand.vmem [shape: f32[1,50], index: 13, kind: input, shape index: {}]
  %s14 = inlined_call_operand.vmem [shape: f32[50,2], index: 14, kind: input, shape index: {}]
  %s15 = inlined_call_operand.vmem [shape: f32[1,2], index: 15, kind: input, shape index: {}]
  %s16 = inlined_call_operand.vmem [shape: f32[8,2], index: 16, kind: output, shape index: {}]
  %s17 = sld [smem:[#allocation0]]
  $region82: #{tpu_custom_call.1} parent=0
    _
  %s19 = ssub.s32 1, %s17
  %s20 = scalar_select 0, %s19, %s17
  $region1: #{tpu_custom_call.1} parent=0
    #allocation6 [shape = 'u8[32768]{0}', space=vmem, size = 0x8000, scoped, tag = 'input window, operand 3, single buffered']
    #allocation7 [shape = 's32[1]{0}', space=sflag, size = 0x4, scoped, tag = 'scoped memory for tpu_custom_call.1']
    #allocation8 [shape = 'u8[65536]{0}', space=vmem, size = 0x10000, scoped, tag = 'input window, operand 10, single buffered']
    #allocation9 [shape = 's32[1]{0}', space=sflag, size = 0x4, scoped, tag = 'scoped memory for tpu_custom_call.1']
    %21 = vsyncpa [#allocation7], 0
    %22 = vsyncpa [#allocation9], 0
    // Predicated region
    $region2: #{tpu_custom_call.1} parent=1 // pred_check
      _
    $region3: #{tpu_custom_call.1} parent=1 // pred_check_branch
      %24 = sbr.rel (0) target = $region5
    $region4: #{tpu_custom_call.1} parent=1 // pred_region
      _
    $region5: #{tpu_custom_call.1} parent=1 // pred_fallthru
      _
    // Predicated region
    $region6: #{tpu_custom_call.1} parent=1 // pred_check
      _
    $region7: #{tpu_custom_call.1} parent=1 // pred_check_branch
      %26 = sbr.rel (0) target = $region9
    $region8: #{tpu_custom_call.1} parent=1 // pred_region
      _
    $region9: #{tpu_custom_call.1} parent=1 // pred_fallthru
      _
    // Predicated region
    $region10: #{tpu_custom_call.1} parent=1 // pred_check
      _
    $region11: #{tpu_custom_call.1} parent=1 // pred_check_branch
      %28 = sbr.rel (0) target = $region13
    $region12: #{tpu_custom_call.1} parent=1 // pred_region
      _
    $region13: #{tpu_custom_call.1} parent=1 // pred_fallthru
      _
    // Predicated region
    $region14: #{tpu_custom_call.1} parent=1 // pred_check
      _
    $region15: #{tpu_custom_call.1} parent=1 // pred_check_branch
      %30 = sbr.rel (0) target = $region17
    $region16: #{tpu_custom_call.1} parent=1 // pred_region
      %32 = vsyncadd [#allocation7], 0
      %s33 = sshll.u32 %s3, 4
      %s34 = int_to_ptr.hbm [resolvable:$true] %s33
      %s35 = sshll.u32 [#allocation6], 4
      %s36 = int_to_ptr.vmem [resolvable:$true] %s35
      %41 = dma.hbm_to_vmem [thread:$0]  %s34, 1024, %s36, [#allocation7], 256, 256, 16
    $region17: #{tpu_custom_call.1} parent=1 // pred_fallthru
      _
    // Predicated region
    $region18: #{tpu_custom_call.1} parent=1 // pred_check
      _
    $region19: #{tpu_custom_call.1} parent=1 // pred_check_branch
      %43 = sbr.rel (0) target = $region21
    $region20: #{tpu_custom_call.1} parent=1 // pred_region
      _
    $region21: #{tpu_custom_call.1} parent=1 // pred_fallthru
      _
    // Predicated region
    $region22: #{tpu_custom_call.1} parent=1 // pred_check
      _
    $region23: #{tpu_custom_call.1} parent=1 // pred_check_branch
      %45 = sbr.rel (0) target = $region25
    $region24: #{tpu_custom_call.1} parent=1 // pred_region
      _
    $region25: #{tpu_custom_call.1} parent=1 // pred_fallthru
      _
    // Predicated region
    $region26: #{tpu_custom_call.1} parent=1 // pred_check
      _
    $region27: #{tpu_custom_call.1} parent=1 // pred_check_branch
      %47 = sbr.rel (0) target = $region29
    $region28: #{tpu_custom_call.1} parent=1 // pred_region
      _
    $region29: #{tpu_custom_call.1} parent=1 // pred_fallthru
      _
    // Predicated region
    $region30: #{tpu_custom_call.1} parent=1 // pred_check
      _
    $region31: #{tpu_custom_call.1} parent=1 // pred_check_branch
      %49 = sbr.rel (0) target = $region33
    $region32: #{tpu_custom_call.1} parent=1 // pred_region
      _
    $region33: #{tpu_custom_call.1} parent=1 // pred_fallthru
      _
    // Predicated region
    $region34: #{tpu_custom_call.1} parent=1 // pred_check
      _
    $region35: #{tpu_custom_call.1} parent=1 // pred_check_branch
      %51 = sbr.rel (0) target = $region37
    $region36: #{tpu_custom_call.1} parent=1 // pred_region
      _
    $region37: #{tpu_custom_call.1} parent=1 // pred_fallthru
      _
    // Predicated region
    $region38: #{tpu_custom_call.1} parent=1 // pred_check
      _
    $region39: #{tpu_custom_call.1} parent=1 // pred_check_branch
      %53 = sbr.rel (0) target = $region41
    $region40: #{tpu_custom_call.1} parent=1 // pred_region
      _
    $region41: #{tpu_custom_call.1} parent=1 // pred_fallthru
      _
    // Predicated region
    $region42: #{tpu_custom_call.1} parent=1 // pred_check
      _
    $region43: #{tpu_custom_call.1} parent=1 // pred_check_branch
      %55 = sbr.rel (0) target = $region45
    $region44: #{tpu_custom_call.1} parent=1 // pred_region
      %57 = vsyncadd [#allocation9], 0
      %s58 = sshll.u32 %s10, 4
      %s59 = int_to_ptr.hbm [resolvable:$true] %s58
      %s60 = sshll.u32 [#allocation8], 4
      %s61 = int_to_ptr.vmem [resolvable:$true] %s60
      %66 = dma.hbm_to_vmem [thread:$0]  %s59, 2048, %s61, [#allocation9], 256, 256, 16
    $region45: #{tpu_custom_call.1} parent=1 // pred_fallthru
      _
    // Predicated region
    $region46: #{tpu_custom_call.1} parent=1 // pred_check
      _
    $region47: #{tpu_custom_call.1} parent=1 // pred_check_branch
      %68 = sbr.rel (0) target = $region49
    $region48: #{tpu_custom_call.1} parent=1 // pred_region
      _
    $region49: #{tpu_custom_call.1} parent=1 // pred_fallthru
      _
    // Predicated region
    $region50: #{tpu_custom_call.1} parent=1 // pred_check
      _
    $region51: #{tpu_custom_call.1} parent=1 // pred_check_branch
      %70 = sbr.rel (0) target = $region53
    $region52: #{tpu_custom_call.1} parent=1 // pred_region
      _
    $region53: #{tpu_custom_call.1} parent=1 // pred_fallthru
      _
    // Predicated region
    $region54: #{tpu_custom_call.1} parent=1 // pred_check
      _
    $region55: #{tpu_custom_call.1} parent=1 // pred_check_branch
      %72 = sbr.rel (0) target = $region57
    $region56: #{tpu_custom_call.1} parent=1 // pred_region
      _
    $region57: #{tpu_custom_call.1} parent=1 // pred_fallthru
      _
    // Predicated region
    $region58: #{tpu_custom_call.1} parent=1 // pred_check
      _
    $region59: #{tpu_custom_call.1} parent=1 // pred_check_branch
      %74 = sbr.rel (0) target = $region61
    $region60: #{tpu_custom_call.1} parent=1 // pred_region
      _
    $region61: #{tpu_custom_call.1} parent=1 // pred_fallthru
      _
    // Predicated region
    $region62: #{tpu_custom_call.1} parent=1 // pred_check
      _
    $region63: #{tpu_custom_call.1} parent=1 // pred_check_branch
      %76 = sbr.rel (0) target = $region65
    $region64: #{tpu_custom_call.1} parent=1 // pred_region
      _
    $region65: #{tpu_custom_call.1} parent=1 // pred_fallthru
      _
    // Predicated region
    $region66: #{tpu_custom_call.1} parent=1 // pred_check
      _
    $region67: #{tpu_custom_call.1} parent=1 // pred_check_branch
      %78 = sbr.rel (0) target = $region69
    $region68: #{tpu_custom_call.1} parent=1 // pred_region
      %80 = dma.done [#allocation7], 1024
    $region69: #{tpu_custom_call.1} parent=1 // pred_fallthru
      _
    // Predicated region
    $region70: #{tpu_custom_call.1} parent=1 // pred_check
      _
    $region71: #{tpu_custom_call.1} parent=1 // pred_check_branch
      %82 = sbr.rel (0) target = $region73
    $region72: #{tpu_custom_call.1} parent=1 // pred_region
      %84 = dma.done [#allocation9], 2048
    $region73: #{tpu_custom_call.1} parent=1 // pred_fallthru
      _
    %v85 = vld [vmem:[%s1] sm:$0xff]
    %v86 = vld [vmem:[%s0] sm:$0xff]
    %v87 = vld [vmem:[%s0 + $0x8] sm:$0xff]
    %v88 = vld [vmem:[%s0 + $0x10] sm:$0xff]
    %v89 = vld [vmem:[%s0 + $0x18] sm:$0xff]
    %v90 = vld [vmem:[%s0 + $0x20] sm:$0xff]
    %v91 = vld [vmem:[%s0 + $0x28] sm:$0xff]
    %v92 = vld [vmem:[%s0 + $0x30] sm:$0xff]
    %v93 = vld [vmem:[%s0 + $0x38] sm:$0xff]
    %v94 = vlaneseq
    %v95 = vand.u32 %v94, 127
    %96 = vset.pattern.permute.xlu0 0
    %97 = vperm.xlu0 %96, %v86
    %v98 = vpop.permute.xlu0 %97
    %99 = vset.pattern.permute.xlu0 0
    %100 = vperm.xlu0 %99, %v87
    %v101 = vpop.permute.xlu0 %100
    %102 = vset.pattern.permute.xlu0 0
    %103 = vperm.xlu0 %102, %v88
    %v104 = vpop.permute.xlu0 %103
    %105 = vset.pattern.permute.xlu0 0
    %106 = vperm.xlu0 %105, %v89
    %v107 = vpop.permute.xlu0 %106
    %108 = vset.pattern.permute.xlu0 0
    %109 = vperm.xlu0 %108, %v90
    %v110 = vpop.permute.xlu0 %109
    %111 = vset.pattern.permute.xlu0 0
    %112 = vperm.xlu0 %111, %v91
    %v113 = vpop.permute.xlu0 %112
    %114 = vset.pattern.permute.xlu0 0
    %115 = vperm.xlu0 %114, %v92
    %v116 = vpop.permute.xlu0 %115
    %117 = vset.pattern.permute.xlu0 0
    %118 = vperm.xlu0 %117, %v93
    %v119 = vpop.permute.xlu0 %118
    %vm120 = vcmp.eq.s32.totalorder %v95, %v98
    %vm121 = vcmp.eq.s32.totalorder %v95, %v101
    %vm122 = vcmp.eq.s32.totalorder %v95, %v104
    %vm123 = vcmp.eq.s32.totalorder %v95, %v107
    %vm124 = vcmp.eq.s32.totalorder %v95, %v110
    %vm125 = vcmp.eq.s32.totalorder %v95, %v113
    %vm126 = vcmp.eq.s32.totalorder %v95, %v116
    %vm127 = vcmp.eq.s32.totalorder %v95, %v119
    %v128 = vsel %vm120, 1, 0
    %v129 = vsel %vm121, 1, 0
    %v130 = vsel %vm122, 1, 0
    %v131 = vsel %vm123, 1, 0
    %v132 = vsel %vm124, 1, 0
    %v133 = vsel %vm125, 1, 0
    %v134 = vsel %vm126, 1, 0
    %v135 = vsel %vm127, 1, 0
    %v136 = vcvt.s32.f32 %v128
    %v137 = vcvt.s32.f32 %v129
    %v138 = vcvt.s32.f32 %v130
    %v139 = vcvt.s32.f32 %v131
    %v140 = vcvt.s32.f32 %v132
    %v141 = vcvt.s32.f32 %v133
    %v142 = vcvt.s32.f32 %v134
    %v143 = vcvt.s32.f32 %v135
    %v144 = vld [vmem:[%s2] sm:$0xff]
    %v145 = vld [vmem:[%s2 + $0x8] sm:$0xff]
    %v146 = vld [vmem:[%s2 + $0x10] sm:$0xff]
    %v147 = vld [vmem:[%s2 + $0x18] sm:$0xff]
    %v148 = vld [vmem:[%s2 + $0x20] sm:$0xff]
    %v149 = vld [vmem:[%s2 + $0x28] sm:$0xff]
    %v150 = vld [vmem:[%s2 + $0x30] sm:$0x3]
    %vm151 = vcmask 408576
    %v153 = vsel %vm151, %v136, 0
    %v156 = vsel %vm151, %v137, 0
    %v159 = vsel %vm151, %v138, 0
    %v162 = vsel %vm151, %v139, 0
    %v165 = vsel %vm151, %v140, 0
    %v168 = vsel %vm151, %v141, 0
    %v171 = vsel %vm151, %v142, 0
    %v174 = vsel %vm151, %v143, 0
    %vm176 = vcmask 1041408
    %v178 = vsel %vm176, %v150, 0
    %180 = vmatpush.msra.mxu0 0.0
    %181 = vmatpush.msra.mxu0 0.0
    %182 = vmatpush.msra.mxu0 0.0
    %183 = vmatpush.msra.mxu0 0.0
    %184 = vmatpush.msra.mxu0 0.0
    %185 = vmatpush.msra.mxu0 0.0
    %186 = vmatpush.msra.mxu0 0.0
    %187 = vmatpush.msra.mxu0 0.0
    %188 = vmatpush.msra.mxu0 0.0
    %189 = vmatpush.msra.mxu0 %v178
    %190 = vmatpush.msra.mxu0 %v149
    %191 = vmatpush.msra.mxu0 %v148
    %192 = vmatpush.msra.mxu0 %v147
    %193 = vmatpush.msra.mxu0 %v146
    %194 = vmatpush.msra.mxu0 %v145
    %195 = vmatpush.msra.mxu0 %v144
    %196 = vmatmul.f32.gmra.mxu0 %v153
    %v197 = vpop.f32.mrf.mxu0
    %v198 = vadd.f32 0.0, %v197
    %199 = vmatmul.f32.gmra.mxu0 %v156
    %v200 = vpop.f32.mrf.mxu0
    %v201 = vadd.f32 0.0, %v200
    %202 = vmatmul.f32.gmra.mxu0 %v159
    %v203 = vpop.f32.mrf.mxu0
    %v204 = vadd.f32 0.0, %v203
    %205 = vmatmul.f32.gmra.mxu0 %v162
    %v206 = vpop.f32.mrf.mxu0
    %v207 = vadd.f32 0.0, %v206
    %208 = vmatmul.f32.gmra.mxu0 %v165
    %v209 = vpop.f32.mrf.mxu0
    %v210 = vadd.f32 0.0, %v209
    %211 = vmatmul.f32.gmra.mxu0 %v168
    %v212 = vpop.f32.mrf.mxu0
    %v213 = vadd.f32 0.0, %v212
    %214 = vmatmul.f32.gmra.mxu0 %v171
    %v215 = vpop.f32.mrf.mxu0
    %v216 = vadd.f32 0.0, %v215
    %217 = vmatmul.f32.gmra.mxu0 %v174
    %v218 = vpop.f32.mrf.mxu0
    %v219 = vadd.f32 0.0, %v218
    %220 = vdwg.mxu0
    %vm221 = vcmp.lt.s32.totalorder %v95, 32
    %v222 = vadd.s32 %v95, 128
    %v223 = vand.u32 %v95, 63
    %v224 = vand.u32 %v222, 63
    %vm225 = vcmp.lt.s32.totalorder %v223, 32
    %vm226 = vcmp.lt.s32.totalorder %v224, 32
    %v227 = vld [vmem:[%s4] sm:$0xff]
    %v228 = vld [vmem:[%s4 + $0x8] sm:$0xff]
    %v229 = vld [vmem:[%s4 + $0x10] sm:$0xff]
    %v230 = vld [vmem:[%s4 + $0x18] sm:$0xff]
    %v231 = vld [vmem:[%s4 + $0x20] sm:$0xff]
    %v232 = vld [vmem:[%s4 + $0x28] sm:$0xff]
    %v233 = vld [vmem:[%s4 + $0x30] sm:$0xff]
    %v234 = vld [vmem:[%s4 + $0x38] sm:$0xff]
    %v235 = vld [vmem:[%s4 + $0x40] sm:$0xff]
    %v236 = vld [vmem:[%s4 + $0x48] sm:$0xff]
    %v237 = vld [vmem:[%s4 + $0x50] sm:$0xff]
    %v238 = vld [vmem:[%s4 + $0x58] sm:$0xff]
    %v239 = vld [vmem:[%s4 + $0x60] sm:$0xff]
    %v240 = vld [vmem:[%s4 + $0x68] sm:$0xff]
    %v241 = vld [vmem:[%s4 + $0x70] sm:$0xff]
    %v242 = vld [vmem:[%s4 + $0x78] sm:$0xff]
    %v243 = vld [vmem:[#allocation6] sm:$0xff]
    %v244 = vld [vmem:[#allocation6 + $0x8] sm:$0xff]
    %v245 = vld [vmem:[#allocation6 + $0x10] sm:$0xff]
    %v246 = vld [vmem:[#allocation6 + $0x18] sm:$0xff]
    %v247 = vld [vmem:[#allocation6 + $0x20] sm:$0xff]
    %v248 = vld [vmem:[#allocation6 + $0x28] sm:$0xff]
    %v249 = vld [vmem:[#allocation6 + $0x30] sm:$0xff]
    %v250 = vld [vmem:[#allocation6 + $0x38] sm:$0xff]
    %v251 = vld [vmem:[%s5] sm:$0x3]
    %v253 = vperm.slane %v251, 0
    %v254 = vperm.slane %v251, 1
    %vm257 = vcmask 261120
    %v259 = vsel %vm257, %v198, 0
    %v262 = vsel %vm257, %v201, 0
    %v265 = vsel %vm257, %v204, 0
    %v268 = vsel %vm257, %v207, 0
    %v271 = vsel %vm257, %v210, 0
    %v274 = vsel %vm257, %v213, 0
    %v277 = vsel %vm257, %v216, 0
    %v280 = vsel %vm257, %v219, 0
    %282 = vmatpush.msra.mxu0 0.0
    %283 = vmatpush.msra.mxu0 0.0
    %284 = vmatpush.msra.mxu0 0.0
    %285 = vmatpush.msra.mxu0 0.0
    %286 = vmatpush.msra.mxu0 0.0
    %287 = vmatpush.msra.mxu0 0.0
    %288 = vmatpush.msra.mxu0 0.0
    %289 = vmatpush.msra.mxu0 0.0
    %290 = vmatpush.msra.mxu0 0.0
    %291 = vmatpush.msra.mxu0 0.0
    %292 = vmatpush.msra.mxu0 0.0
    %293 = vmatpush.msra.mxu0 0.0
    %294 = vmatpush.msra.mxu0 %v249
    %295 = vmatpush.msra.mxu0 %v247
    %296 = vmatpush.msra.mxu0 %v245
    %297 = vmatpush.msra.mxu0 %v243
    %298 = vmatmul.f32.gmra.mxu0 %v259
    %v299 = vpop.f32.mrf.mxu0
    %v300 = vadd.f32 %v253, %v299
    %301 = vmatmul.f32.gmra.mxu0 %v262
    %v302 = vpop.f32.mrf.mxu0
    %v303 = vadd.f32 %v253, %v302
    %304 = vmatmul.f32.gmra.mxu0 %v265
    %v305 = vpop.f32.mrf.mxu0
    %v306 = vadd.f32 %v253, %v305
    %307 = vmatmul.f32.gmra.mxu0 %v268
    %v308 = vpop.f32.mrf.mxu0
    %v309 = vadd.f32 %v253, %v308
    %310 = vmatmul.f32.gmra.mxu0 %v271
    %v311 = vpop.f32.mrf.mxu0
    %v312 = vadd.f32 %v253, %v311
    %313 = vmatmul.f32.gmra.mxu0 %v274
    %v314 = vpop.f32.mrf.mxu0
    %v315 = vadd.f32 %v253, %v314
    %316 = vmatmul.f32.gmra.mxu0 %v277
    %v317 = vpop.f32.mrf.mxu0
    %v318 = vadd.f32 %v253, %v317
    %319 = vmatmul.f32.gmra.mxu0 %v280
    %v320 = vpop.f32.mrf.mxu0
    %v321 = vadd.f32 %v253, %v320
    %322 = vdwg.mxu0
    %323 = vmatpush.msra.mxu0 0.0
    %324 = vmatpush.msra.mxu0 0.0
    %325 = vmatpush.msra.mxu0 0.0
    %326 = vmatpush.msra.mxu0 0.0
    %327 = vmatpush.msra.mxu0 0.0
    %328 = vmatpush.msra.mxu0 0.0
    %329 = vmatpush.msra.mxu0 0.0
    %330 = vmatpush.msra.mxu0 0.0
    %331 = vmatpush.msra.mxu0 0.0
    %332 = vmatpush.msra.mxu0 0.0
    %333 = vmatpush.msra.mxu0 0.0
    %334 = vmatpush.msra.mxu0 0.0
    %335 = vmatpush.msra.mxu0 %v250
    %336 = vmatpush.msra.mxu0 %v248
    %337 = vmatpush.msra.mxu0 %v246
    %338 = vmatpush.msra.mxu0 %v244
    %339 = vmatmul.f32.gmra.mxu0 %v259
    %v340 = vpop.f32.mrf.mxu0
    %v341 = vadd.f32 %v254, %v340
    %342 = vmatmul.f32.gmra.mxu0 %v262
    %v343 = vpop.f32.mrf.mxu0
    %v344 = vadd.f32 %v254, %v343
    %345 = vmatmul.f32.gmra.mxu0 %v265
    %v346 = vpop.f32.mrf.mxu0
    %v347 = vadd.f32 %v254, %v346
    %348 = vmatmul.f32.gmra.mxu0 %v268
    %v349 = vpop.f32.mrf.mxu0
    %v350 = vadd.f32 %v254, %v349
    %351 = vmatmul.f32.gmra.mxu0 %v271
    %v352 = vpop.f32.mrf.mxu0
    %v353 = vadd.f32 %v254, %v352
    %354 = vmatmul.f32.gmra.mxu0 %v274
    %v355 = vpop.f32.mrf.mxu0
    %v356 = vadd.f32 %v254, %v355
    %357 = vmatmul.f32.gmra.mxu0 %v277
    %v358 = vpop.f32.mrf.mxu0
    %v359 = vadd.f32 %v254, %v358
    %360 = vmatmul.f32.gmra.mxu0 %v280
    %v361 = vpop.f32.mrf.mxu0
    %v362 = vadd.f32 %v254, %v361
    %363 = vdwg.mxu0
    %364 = vst [vmem:[#allocation4] sm:$0xff] %v300
    %365 = vst [vmem:[#allocation4 + $0x8] sm:$0xff] %v341
    %366 = vst [vmem:[#allocation4 + $0x10] sm:$0xff] %v303
    %367 = vst [vmem:[#allocation4 + $0x18] sm:$0xff] %v344
    %368 = vst [vmem:[#allocation4 + $0x20] sm:$0xff] %v306
    %369 = vst [vmem:[#allocation4 + $0x28] sm:$0xff] %v347
    %370 = vst [vmem:[#allocation4 + $0x30] sm:$0xff] %v309
    %371 = vst [vmem:[#allocation4 + $0x38] sm:$0xff] %v350
    %372 = vst [vmem:[#allocation4 + $0x40] sm:$0xff] %v312
    %373 = vst [vmem:[#allocation4 + $0x48] sm:$0xff] %v353
    %374 = vst [vmem:[#allocation4 + $0x50] sm:$0xff] %v315
    %375 = vst [vmem:[#allocation4 + $0x58] sm:$0xff] %v356
    %376 = vst [vmem:[#allocation4 + $0x60] sm:$0xff] %v318
    %377 = vst [vmem:[#allocation4 + $0x68] sm:$0xff] %v359
    %378 = vst [vmem:[#allocation4 + $0x70] sm:$0xff] %v321
    %379 = vst [vmem:[#allocation4 + $0x78] sm:$0xff] %v362
    %v380 = vld [vmem:[#allocation4] sm:$0xff]
    %v381 = vld [vmem:[#allocation4 + $0x8] sm:$0xff]
    %v382 = vld [vmem:[#allocation4 + $0x70] sm:$0xff]
    %v383 = vld [vmem:[#allocation4 + $0x78] sm:$0xff]
    %v384 = vsel %vm225, %v380, %v382
    %v385 = vsel %vm226, %v381, %v383
    %vm386 = vcmask 523264
    %v388 = vsel %vm386, 0.0, 0
    %390 = vmatpush.msra.mxu0 0.0
    %391 = vmatpush.msra.mxu0 0.0
    %392 = vmatpush.msra.mxu0 0.0
    %393 = vmatpush.msra.mxu0 0.0
    %394 = vmatpush.msra.mxu0 0.0
    %395 = vmatpush.msra.mxu0 0.0
    %396 = vmatpush.msra.mxu0 0.0
    %397 = vmatpush.msra.mxu0 0.0
    %398 = vmatpush.msra.mxu0 %v241
    %399 = vmatpush.msra.mxu0 %v239
    %400 = vmatpush.msra.mxu0 %v237
    %401 = vmatpush.msra.mxu0 %v235
    %402 = vmatpush.msra.mxu0 %v233
    %403 = vmatpush.msra.mxu0 %v231
    %404 = vmatpush.msra.mxu0 %v229
    %405 = vmatpush.msra.mxu0 %v227
    %406 = vmatmul.f32.gmra.mxu0 %v388
    %v407 = vpop.f32.mrf.mxu0
    %v408 = vadd.f32 0.0, %v407
    %409 = vdwg.mxu0
    %410 = vmatpush.msra.mxu0 0.0
    %411 = vmatpush.msra.mxu0 0.0
    %412 = vmatpush.msra.mxu0 0.0
    %413 = vmatpush.msra.mxu0 0.0
    %414 = vmatpush.msra.mxu0 0.0
    %415 = vmatpush.msra.mxu0 0.0
    %416 = vmatpush.msra.mxu0 0.0
    %417 = vmatpush.msra.mxu0 0.0
    %418 = vmatpush.msra.mxu0 %v242
    %419 = vmatpush.msra.mxu0 %v240
    %420 = vmatpush.msra.mxu0 %v238
    %421 = vmatpush.msra.mxu0 %v236
    %422 = vmatpush.msra.mxu0 %v234
    %423 = vmatpush.msra.mxu0 %v232
    %424 = vmatpush.msra.mxu0 %v230
    %425 = vmatpush.msra.mxu0 %v228
    %426 = vmatmul.f32.gmra.mxu0 %v388
    %v427 = vpop.f32.mrf.mxu0
    %v428 = vadd.f32 0.0, %v427
    %429 = vdwg.mxu0
    %v430 = vadd.f32 %v384, %v408
    %v431 = vadd.f32 %v385, %v428
    %v432 = vxor.u32 %v430, 2147483648
    %v433 = vxor.u32 %v431, 2147483648
    %v434 = vmul.f32 %v432, 1.442695
    %v435 = vpow.pop %v434
    %v436 = vmul.f32 %v433, 1.442695
    %v437 = vpow.pop %v436
    %v438 = vadd.f32 %v435, 1.0
    %v439 = vadd.f32 %v437, 1.0
    %v440 = vrcp.pop %v438
    %v441 = vmul.f32 %v438, %v440
    %v442 = vsub.f32 1.0, %v441
    %v443 = vmul.f32 %v440, %v442
    %v444 = vadd.f32 %v440, %v443
    %vm445 = vweird.f32 %v438
    %vm446 = vweird.f32 %v440
    %vm447 = vmor %vm445, %vm446
    %v448 = vsel %vm447, %v440, %v444
    %v449 = vand.u32 2147483647, %v438
    %vm450 = vcmp.eq.f32.partialorder %v449, 8.507059e+37
    %v451 = vand.u32 %v438, 2147483648
    %v452 = vor.u32 1.1754944e-38, %v451
    %v453 = vsel %vm450, %v452, %v448
    %v454 = vmul.f32 1.0, %v453
    %v455 = vrcp.pop %v439
    %v456 = vmul.f32 %v439, %v455
    %v457 = vsub.f32 1.0, %v456
    %v458 = vmul.f32 %v455, %v457
    %v459 = vadd.f32 %v455, %v458
    %vm460 = vweird.f32 %v439
    %vm461 = vweird.f32 %v455
    %vm462 = vmor %vm460, %vm461
    %v463 = vsel %vm462, %v455, %v459
    %v464 = vand.u32 2147483647, %v439
    %vm465 = vcmp.eq.f32.partialorder %v464, 8.507059e+37
    %v466 = vand.u32 %v439, 2147483648
    %v467 = vor.u32 1.1754944e-38, %v466
    %v468 = vsel %vm465, %v467, %v463
    %v469 = vmul.f32 1.0, %v468
    %v470 = vmul.f32 %v469, 2.0
    %v471 = vsub.f32 %v470, 1.0
    %v472 = vmul.f32 %v454, 0.0
    %v473 = vmul.f32 %v454, %v471
    %475 = vrot.lane.b32.xlu0 %v473, 64
    %v476 = vpop.permute.xlu0 %475
    %v478 = vadd.f32 %v472, %v476
    %v479 = vtanh.pop %v478
    %v480 = vmul.f32 %v469, %v479
    %v481 = vsel %vm221, 0, 7
    %482 = vset.pattern.permute.xlu0 0
    %483 = vperm.xlu0 %482, %v85
    %v484 = vpop.permute.xlu0 %483
    %vm485 = vcmp.lt.s32.totalorder %v481, %v484
    %487 = vrot.lane.b32.xlu0 %v480, 64
    %v488 = vpop.permute.xlu0 %487
    %v490 = vsel %vm485, %v488, 0.0
    %491 = vst.msk [vmem:[#allocation2] sm:$0xff] %vm257, %v490
    %vm492 = vcmask 523520
    %493 = vst.msk [vmem:[#allocation2 + $0x38] sm:$0xff] %vm492, %v490
    %495 = vrot.lane.b32.xlu0 %v478, 64
    %v496 = vpop.permute.xlu0 %495
    %v498 = vsel %vm485, %v496, 0.0
    %v499 = vld [vmem:[#allocation4 + $0x10] sm:$0xff]
    %v500 = vld [vmem:[#allocation4 + $0x18] sm:$0xff]
    %v501 = vld [vmem:[#allocation4 + $0x60] sm:$0xff]
    %v502 = vld [vmem:[#allocation4 + $0x68] sm:$0xff]
    %v503 = vsel %vm225, %v499, %v501
    %v504 = vsel %vm226, %v500, %v502
    %v506 = vsel %vm386, %v490, 0
    %508 = vmatpush.msra.mxu0 0.0
    %509 = vmatpush.msra.mxu0 0.0
    %510 = vmatpush.msra.mxu0 0.0
    %511 = vmatpush.msra.mxu0 0.0
    %512 = vmatpush.msra.mxu0 0.0
    %513 = vmatpush.msra.mxu0 0.0
    %514 = vmatpush.msra.mxu0 0.0
    %515 = vmatpush.msra.mxu0 0.0
    %516 = vmatpush.msra.mxu0 %v241
    %517 = vmatpush.msra.mxu0 %v239
    %518 = vmatpush.msra.mxu0 %v237
    %519 = vmatpush.msra.mxu0 %v235
    %520 = vmatpush.msra.mxu0 %v233
    %521 = vmatpush.msra.mxu0 %v231
    %522 = vmatpush.msra.mxu0 %v229
    %523 = vmatpush.msra.mxu0 %v227
    %524 = vmatmul.f32.gmra.mxu0 %v506
    %v525 = vpop.f32.mrf.mxu0
    %v526 = vadd.f32 0.0, %v525
    %527 = vdwg.mxu0
    %528 = vmatpush.msra.mxu0 0.0
    %529 = vmatpush.msra.mxu0 0.0
    %530 = vmatpush.msra.mxu0 0.0
    %531 = vmatpush.msra.mxu0 0.0
    %532 = vmatpush.msra.mxu0 0.0
    %533 = vmatpush.msra.mxu0 0.0
    %534 = vmatpush.msra.mxu0 0.0
    %535 = vmatpush.msra.mxu0 0.0
    %536 = vmatpush.msra.mxu0 %v242
    %537 = vmatpush.msra.mxu0 %v240
    %538 = vmatpush.msra.mxu0 %v238
    %539 = vmatpush.msra.mxu0 %v236
    %540 = vmatpush.msra.mxu0 %v234
    %541 = vmatpush.msra.mxu0 %v232
    %542 = vmatpush.msra.mxu0 %v230
    %543 = vmatpush.msra.mxu0 %v228
    %544 = vmatmul.f32.gmra.mxu0 %v506
    %v545 = vpop.f32.mrf.mxu0
    %v546 = vadd.f32 0.0, %v545
    %547 = vdwg.mxu0
    %v548 = vadd.f32 %v503, %v526
    %v549 = vadd.f32 %v504, %v546
    %v550 = vxor.u32 %v548, 2147483648
    %v551 = vxor.u32 %v549, 2147483648
    %v552 = vmul.f32 %v550, 1.442695
    %v553 = vpow.pop %v552
    %v554 = vmul.f32 %v551, 1.442695
    %v555 = vpow.pop %v554
    %v556 = vadd.f32 %v553, 1.0
    %v557 = vadd.f32 %v555, 1.0
    %v558 = vrcp.pop %v556
    %v559 = vmul.f32 %v556, %v558
    %v560 = vsub.f32 1.0, %v559
    %v561 = vmul.f32 %v558, %v560
    %v562 = vadd.f32 %v558, %v561
    %vm563 = vweird.f32 %v556
    %vm564 = vweird.f32 %v558
    %vm565 = vmor %vm563, %vm564
    %v566 = vsel %vm565, %v558, %v562
    %v567 = vand.u32 2147483647, %v556
    %vm568 = vcmp.eq.f32.partialorder %v567, 8.507059e+37
    %v569 = vand.u32 %v556, 2147483648
    %v570 = vor.u32 1.1754944e-38, %v569
    %v571 = vsel %vm568, %v570, %v566
    %v572 = vmul.f32 1.0, %v571
    %v573 = vrcp.pop %v557
    %v574 = vmul.f32 %v557, %v573
    %v575 = vsub.f32 1.0, %v574
    %v576 = vmul.f32 %v573, %v575
    %v577 = vadd.f32 %v573, %v576
    %vm578 = vweird.f32 %v557
    %vm579 = vweird.f32 %v573
    %vm580 = vmor %vm578, %vm579
    %v581 = vsel %vm580, %v573, %v577
    %v582 = vand.u32 2147483647, %v557
    %vm583 = vcmp.eq.f32.partialorder %v582, 8.507059e+37
    %v584 = vand.u32 %v557, 2147483648
    %v585 = vor.u32 1.1754944e-38, %v584
    %v586 = vsel %vm583, %v585, %v581
    %v587 = vmul.f32 1.0, %v586
    %v588 = vmul.f32 %v587, 2.0
    %v589 = vsub.f32 %v588, 1.0
    %591 = vrot.lane.b32.xlu0 %v498, 64
    %v592 = vpop.permute.xlu0 %591
    %v594 = vmul.f32 %v572, %v592
    %v595 = vmul.f32 %v572, %v589
    %597 = vrot.lane.b32.xlu0 %v595, 64
    %v598 = vpop.permute.xlu0 %597
    %v600 = vadd.f32 %v594, %v598
    %v601 = vtanh.pop %v600
    %v602 = vmul.f32 %v587, %v601
    %v603 = vsel %vm221, 1, 6
    %vm604 = vcmp.lt.s32.totalorder %v603, %v484
    %606 = vrot.lane.b32.xlu0 %v602, 64
    %v607 = vpop.permute.xlu0 %606
    %v609 = vsel %vm604, %v607, 0.0
    %610 = vst.msk [vmem:[#allocation2 + $0x8] sm:$0xff] %vm257, %v609
    %611 = vst.msk [vmem:[#allocation2 + $0x30] sm:$0xff] %vm492, %v609
    %v612 = vsel %vm604, %v607, %v490
    %614 = vrot.lane.b32.xlu0 %v600, 64
    %v615 = vpop.permute.xlu0 %614
    %v617 = vsel %vm604, %v615, %v498
    %v618 = vld [vmem:[#allocation4 + $0x20] sm:$0xff]
    %v619 = vld [vmem:[#allocation4 + $0x28] sm:$0xff]
    %v620 = vld [vmem:[#allocation4 + $0x50] sm:$0xff]
    %v621 = vld [vmem:[#allocation4 + $0x58] sm:$0xff]
    %v622 = vsel %vm225, %v618, %v620
    %v623 = vsel %vm226, %v619, %v621
    %v625 = vsel %vm386, %v612, 0
    %627 = vmatpush.msra.mxu0 0.0
    %628 = vmatpush.msra.mxu0 0.0
    %629 = vmatpush.msra.mxu0 0.0
    %630 = vmatpush.msra.mxu0 0.0
    %631 = vmatpush.msra.mxu0 0.0
    %632 = vmatpush.msra.mxu0 0.0
    %633 = vmatpush.msra.mxu0 0.0
    %634 = vmatpush.msra.mxu0 0.0
    %635 = vmatpush.msra.mxu0 %v241
    %636 = vmatpush.msra.mxu0 %v239
    %637 = vmatpush.msra.mxu0 %v237
    %638 = vmatpush.msra.mxu0 %v235
    %639 = vmatpush.msra.mxu0 %v233
    %640 = vmatpush.msra.mxu0 %v231
    %641 = vmatpush.msra.mxu0 %v229
    %642 = vmatpush.msra.mxu0 %v227
    %643 = vmatmul.f32.gmra.mxu0 %v625
    %v644 = vpop.f32.mrf.mxu0
    %v645 = vadd.f32 0.0, %v644
    %646 = vdwg.mxu0
    %647 = vmatpush.msra.mxu0 0.0
    %648 = vmatpush.msra.mxu0 0.0
    %649 = vmatpush.msra.mxu0 0.0
    %650 = vmatpush.msra.mxu0 0.0
    %651 = vmatpush.msra.mxu0 0.0
    %652 = vmatpush.msra.mxu0 0.0
    %653 = vmatpush.msra.mxu0 0.0
    %654 = vmatpush.msra.mxu0 0.0
    %655 = vmatpush.msra.mxu0 %v242
    %656 = vmatpush.msra.mxu0 %v240
    %657 = vmatpush.msra.mxu0 %v238
    %658 = vmatpush.msra.mxu0 %v236
    %659 = vmatpush.msra.mxu0 %v234
    %660 = vmatpush.msra.mxu0 %v232
    %661 = vmatpush.msra.mxu0 %v230
    %662 = vmatpush.msra.mxu0 %v228
    %663 = vmatmul.f32.gmra.mxu0 %v625
    %v664 = vpop.f32.mrf.mxu0
    %v665 = vadd.f32 0.0, %v664
    %666 = vdwg.mxu0
    %v667 = vadd.f32 %v622, %v645
    %v668 = vadd.f32 %v623, %v665
    %v669 = vxor.u32 %v667, 2147483648
    %v670 = vxor.u32 %v668, 2147483648
    %v671 = vmul.f32 %v669, 1.442695
    %v672 = vpow.pop %v671
    %v673 = vmul.f32 %v670, 1.442695
    %v674 = vpow.pop %v673
    %v675 = vadd.f32 %v672, 1.0
    %v676 = vadd.f32 %v674, 1.0
    %v677 = vrcp.pop %v675
    %v678 = vmul.f32 %v675, %v677
    %v679 = vsub.f32 1.0, %v678
    %v680 = vmul.f32 %v677, %v679
    %v681 = vadd.f32 %v677, %v680
    %vm682 = vweird.f32 %v675
    %vm683 = vweird.f32 %v677
    %vm684 = vmor %vm682, %vm683
    %v685 = vsel %vm684, %v677, %v681
    %v686 = vand.u32 2147483647, %v675
    %vm687 = vcmp.eq.f32.partialorder %v686, 8.507059e+37
    %v688 = vand.u32 %v675, 2147483648
    %v689 = vor.u32 1.1754944e-38, %v688
    %v690 = vsel %vm687, %v689, %v685
    %v691 = vmul.f32 1.0, %v690
    %v692 = vrcp.pop %v676
    %v693 = vmul.f32 %v676, %v692
    %v694 = vsub.f32 1.0, %v693
    %v695 = vmul.f32 %v692, %v694
    %v696 = vadd.f32 %v692, %v695
    %vm697 = vweird.f32 %v676
    %vm698 = vweird.f32 %v692
    %vm699 = vmor %vm697, %vm698
    %v700 = vsel %vm699, %v692, %v696
    %v701 = vand.u32 2147483647, %v676
    %vm702 = vcmp.eq.f32.partialorder %v701, 8.507059e+37
    %v703 = vand.u32 %v676, 2147483648
    %v704 = vor.u32 1.1754944e-38, %v703
    %v705 = vsel %vm702, %v704, %v700
    %v706 = vmul.f32 1.0, %v705
    %v707 = vmul.f32 %v706, 2.0
    %v708 = vsub.f32 %v707, 1.0
    %710 = vrot.lane.b32.xlu0 %v617, 64
    %v711 = vpop.permute.xlu0 %710
    %v713 = vmul.f32 %v691, %v711
    %v714 = vmul.f32 %v691, %v708
    %716 = vrot.lane.b32.xlu0 %v714, 64
    %v717 = vpop.permute.xlu0 %716
    %v719 = vadd.f32 %v713, %v717
    %v720 = vtanh.pop %v719
    %v721 = vmul.f32 %v706, %v720
    %v722 = vsel %vm221, 2, 5
    %vm723 = vcmp.lt.s32.totalorder %v722, %v484
    %725 = vrot.lane.b32.xlu0 %v721, 64
    %v726 = vpop.permute.xlu0 %725
    %v728 = vsel %vm723, %v726, 0.0
    %729 = vst.msk [vmem:[#allocation2 + $0x10] sm:$0xff] %vm257, %v728
    %730 = vst.msk [vmem:[#allocation2 + $0x28] sm:$0xff] %vm492, %v728
    %v731 = vsel %vm723, %v726, %v612
    %733 = vrot.lane.b32.xlu0 %v719, 64
    %v734 = vpop.permute.xlu0 %733
    %v736 = vsel %vm723, %v734, %v617
    %v737 = vld [vmem:[#allocation4 + $0x30] sm:$0xff]
    %v738 = vld [vmem:[#allocation4 + $0x38] sm:$0xff]
    %v739 = vld [vmem:[#allocation4 + $0x40] sm:$0xff]
    %v740 = vld [vmem:[#allocation4 + $0x48] sm:$0xff]
    %v741 = vsel %vm225, %v737, %v739
    %v742 = vsel %vm226, %v738, %v740
    %v744 = vsel %vm386, %v731, 0
    %746 = vmatpush.msra.mxu0 0.0
    %747 = vmatpush.msra.mxu0 0.0
    %748 = vmatpush.msra.mxu0 0.0
    %749 = vmatpush.msra.mxu0 0.0
    %750 = vmatpush.msra.mxu0 0.0
    %751 = vmatpush.msra.mxu0 0.0
    %752 = vmatpush.msra.mxu0 0.0
    %753 = vmatpush.msra.mxu0 0.0
    %754 = vmatpush.msra.mxu0 %v241
    %755 = vmatpush.msra.mxu0 %v239
    %756 = vmatpush.msra.mxu0 %v237
    %757 = vmatpush.msra.mxu0 %v235
    %758 = vmatpush.msra.mxu0 %v233
    %759 = vmatpush.msra.mxu0 %v231
    %760 = vmatpush.msra.mxu0 %v229
    %761 = vmatpush.msra.mxu0 %v227
    %762 = vmatmul.f32.gmra.mxu0 %v744
    %v763 = vpop.f32.mrf.mxu0
    %v764 = vadd.f32 0.0, %v763
    %765 = vdwg.mxu0
    %766 = vmatpush.msra.mxu0 0.0
    %767 = vmatpush.msra.mxu0 0.0
    %768 = vmatpush.msra.mxu0 0.0
    %769 = vmatpush.msra.mxu0 0.0
    %770 = vmatpush.msra.mxu0 0.0
    %771 = vmatpush.msra.mxu0 0.0
    %772 = vmatpush.msra.mxu0 0.0
    %773 = vmatpush.msra.mxu0 0.0
    %774 = vmatpush.msra.mxu0 %v242
    %775 = vmatpush.msra.mxu0 %v240
    %776 = vmatpush.msra.mxu0 %v238
    %777 = vmatpush.msra.mxu0 %v236
    %778 = vmatpush.msra.mxu0 %v234
    %779 = vmatpush.msra.mxu0 %v232
    %780 = vmatpush.msra.mxu0 %v230
    %781 = vmatpush.msra.mxu0 %v228
    %782 = vmatmul.f32.gmra.mxu0 %v744
    %v783 = vpop.f32.mrf.mxu0
    %v784 = vadd.f32 0.0, %v783
    %785 = vdwg.mxu0
    %v786 = vadd.f32 %v741, %v764
    %v787 = vadd.f32 %v742, %v784
    %v788 = vxor.u32 %v786, 2147483648
    %v789 = vxor.u32 %v787, 2147483648
    %v790 = vmul.f32 %v788, 1.442695
    %v791 = vpow.pop %v790
    %v792 = vmul.f32 %v789, 1.442695
    %v793 = vpow.pop %v792
    %v794 = vadd.f32 %v791, 1.0
    %v795 = vadd.f32 %v793, 1.0
    %v796 = vrcp.pop %v794
    %v797 = vmul.f32 %v794, %v796
    %v798 = vsub.f32 1.0, %v797
    %v799 = vmul.f32 %v796, %v798
    %v800 = vadd.f32 %v796, %v799
    %vm801 = vweird.f32 %v794
    %vm802 = vweird.f32 %v796
    %vm803 = vmor %vm801, %vm802
    %v804 = vsel %vm803, %v796, %v800
    %v805 = vand.u32 2147483647, %v794
    %vm806 = vcmp.eq.f32.partialorder %v805, 8.507059e+37
    %v807 = vand.u32 %v794, 2147483648
    %v808 = vor.u32 1.1754944e-38, %v807
    %v809 = vsel %vm806, %v808, %v804
    %v810 = vmul.f32 1.0, %v809
    %v811 = vrcp.pop %v795
    %v812 = vmul.f32 %v795, %v811
    %v813 = vsub.f32 1.0, %v812
    %v814 = vmul.f32 %v811, %v813
    %v815 = vadd.f32 %v811, %v814
    %vm816 = vweird.f32 %v795
    %vm817 = vweird.f32 %v811
    %vm818 = vmor %vm816, %vm817
    %v819 = vsel %vm818, %v811, %v815
    %v820 = vand.u32 2147483647, %v795
    %vm821 = vcmp.eq.f32.partialorder %v820, 8.507059e+37
    %v822 = vand.u32 %v795, 2147483648
    %v823 = vor.u32 1.1754944e-38, %v822
    %v824 = vsel %vm821, %v823, %v819
    %v825 = vmul.f32 1.0, %v824
    %v826 = vmul.f32 %v825, 2.0
    %v827 = vsub.f32 %v826, 1.0
    %829 = vrot.lane.b32.xlu0 %v736, 64
    %v830 = vpop.permute.xlu0 %829
    %v832 = vmul.f32 %v810, %v830
    %v833 = vmul.f32 %v810, %v827
    %835 = vrot.lane.b32.xlu0 %v833, 64
    %v836 = vpop.permute.xlu0 %835
    %v838 = vadd.f32 %v832, %v836
    %v839 = vtanh.pop %v838
    %v840 = vmul.f32 %v825, %v839
    %v841 = vsel %vm221, 3, 4
    %vm842 = vcmp.lt.s32.totalorder %v841, %v484
    %844 = vrot.lane.b32.xlu0 %v840, 64
    %v845 = vpop.permute.xlu0 %844
    %v847 = vsel %vm842, %v845, 0.0
    %848 = vst.msk [vmem:[#allocation2 + $0x18] sm:$0xff] %vm257, %v847
    %849 = vst.msk [vmem:[#allocation2 + $0x20] sm:$0xff] %vm492, %v847
    %v850 = vsel %vm842, %v845, %v731
    %852 = vrot.lane.b32.xlu0 %v838, 64
    %v853 = vpop.permute.xlu0 %852
    %v855 = vsel %vm842, %v853, %v736
    %v856 = vld [vmem:[#allocation4 + $0x40] sm:$0xff]
    %v857 = vld [vmem:[#allocation4 + $0x48] sm:$0xff]
    %v858 = vld [vmem:[#allocation4 + $0x30] sm:$0xff]
    %v859 = vld [vmem:[#allocation4 + $0x38] sm:$0xff]
    %v860 = vsel %vm225, %v856, %v858
    %v861 = vsel %vm226, %v857, %v859
    %v863 = vsel %vm386, %v850, 0
    %865 = vmatpush.msra.mxu0 0.0
    %866 = vmatpush.msra.mxu0 0.0
    %867 = vmatpush.msra.mxu0 0.0
    %868 = vmatpush.msra.mxu0 0.0
    %869 = vmatpush.msra.mxu0 0.0
    %870 = vmatpush.msra.mxu0 0.0
    %871 = vmatpush.msra.mxu0 0.0
    %872 = vmatpush.msra.mxu0 0.0
    %873 = vmatpush.msra.mxu0 %v241
    %874 = vmatpush.msra.mxu0 %v239
    %875 = vmatpush.msra.mxu0 %v237
    %876 = vmatpush.msra.mxu0 %v235
    %877 = vmatpush.msra.mxu0 %v233
    %878 = vmatpush.msra.mxu0 %v231
    %879 = vmatpush.msra.mxu0 %v229
    %880 = vmatpush.msra.mxu0 %v227
    %881 = vmatmul.f32.gmra.mxu0 %v863
    %v882 = vpop.f32.mrf.mxu0
    %v883 = vadd.f32 0.0, %v882
    %884 = vdwg.mxu0
    %885 = vmatpush.msra.mxu0 0.0
    %886 = vmatpush.msra.mxu0 0.0
    %887 = vmatpush.msra.mxu0 0.0
    %888 = vmatpush.msra.mxu0 0.0
    %889 = vmatpush.msra.mxu0 0.0
    %890 = vmatpush.msra.mxu0 0.0
    %891 = vmatpush.msra.mxu0 0.0
    %892 = vmatpush.msra.mxu0 0.0
    %893 = vmatpush.msra.mxu0 %v242
    %894 = vmatpush.msra.mxu0 %v240
    %895 = vmatpush.msra.mxu0 %v238
    %896 = vmatpush.msra.mxu0 %v236
    %897 = vmatpush.msra.mxu0 %v234
    %898 = vmatpush.msra.mxu0 %v232
    %899 = vmatpush.msra.mxu0 %v230
    %900 = vmatpush.msra.mxu0 %v228
    %901 = vmatmul.f32.gmra.mxu0 %v863
    %v902 = vpop.f32.mrf.mxu0
    %v903 = vadd.f32 0.0, %v902
    %904 = vdwg.mxu0
    %v905 = vadd.f32 %v860, %v883
    %v906 = vadd.f32 %v861, %v903
    %v907 = vxor.u32 %v905, 2147483648
    %v908 = vxor.u32 %v906, 2147483648
    %v909 = vmul.f32 %v907, 1.442695
    %v910 = vpow.pop %v909
    %v911 = vmul.f32 %v908, 1.442695
    %v912 = vpow.pop %v911
    %v913 = vadd.f32 %v910, 1.0
    %v914 = vadd.f32 %v912, 1.0
    %v915 = vrcp.pop %v913
    %v916 = vmul.f32 %v913, %v915
    %v917 = vsub.f32 1.0, %v916
    %v918 = vmul.f32 %v915, %v917
    %v919 = vadd.f32 %v915, %v918
    %vm920 = vweird.f32 %v913
    %vm921 = vweird.f32 %v915
    %vm922 = vmor %vm920, %vm921
    %v923 = vsel %vm922, %v915, %v919
    %v924 = vand.u32 2147483647, %v913
    %vm925 = vcmp.eq.f32.partialorder %v924, 8.507059e+37
    %v926 = vand.u32 %v913, 2147483648
    %v927 = vor.u32 1.1754944e-38, %v926
    %v928 = vsel %vm925, %v927, %v923
    %v929 = vmul.f32 1.0, %v928
    %v930 = vrcp.pop %v914
    %v931 = vmul.f32 %v914, %v930
    %v932 = vsub.f32 1.0, %v931
    %v933 = vmul.f32 %v930, %v932
    %v934 = vadd.f32 %v930, %v933
    %vm935 = vweird.f32 %v914
    %vm936 = vweird.f32 %v930
    %vm937 = vmor %vm935, %vm936
    %v938 = vsel %vm937, %v930, %v934
    %v939 = vand.u32 2147483647, %v914
    %vm940 = vcmp.eq.f32.partialorder %v939, 8.507059e+37
    %v941 = vand.u32 %v914, 2147483648
    %v942 = vor.u32 1.1754944e-38, %v941
    %v943 = vsel %vm940, %v942, %v938
    %v944 = vmul.f32 1.0, %v943
    %v945 = vmul.f32 %v944, 2.0
    %v946 = vsub.f32 %v945, 1.0
    %948 = vrot.lane.b32.xlu0 %v855, 64
    %v949 = vpop.permute.xlu0 %948
    %v951 = vmul.f32 %v929, %v949
    %v952 = vmul.f32 %v929, %v946
    %954 = vrot.lane.b32.xlu0 %v952, 64
    %v955 = vpop.permute.xlu0 %954
    %v957 = vadd.f32 %v951, %v955
    %v958 = vtanh.pop %v957
    %v959 = vmul.f32 %v944, %v958
    %v960 = vsel %vm221, 4, 3
    %vm961 = vcmp.lt.s32.totalorder %v960, %v484
    %963 = vrot.lane.b32.xlu0 %v959, 64
    %v964 = vpop.permute.xlu0 %963
    %v966 = vsel %vm961, %v964, 0.0
    %967 = vst.msk [vmem:[#allocation2 + $0x20] sm:$0xff] %vm257, %v966
    %968 = vst.msk [vmem:[#allocation2 + $0x18] sm:$0xff] %vm492, %v966
    %v969 = vsel %vm961, %v964, %v850
    %971 = vrot.lane.b32.xlu0 %v957, 64
    %v972 = vpop.permute.xlu0 %971
    %v974 = vsel %vm961, %v972, %v855
    %v975 = vld [vmem:[#allocation4 + $0x50] sm:$0xff]
    %v976 = vld [vmem:[#allocation4 + $0x58] sm:$0xff]
    %v977 = vld [vmem:[#allocation4 + $0x20] sm:$0xff]
    %v978 = vld [vmem:[#allocation4 + $0x28] sm:$0xff]
    %v979 = vsel %vm225, %v975, %v977
    %v980 = vsel %vm226, %v976, %v978
    %v982 = vsel %vm386, %v969, 0
    %984 = vmatpush.msra.mxu0 0.0
    %985 = vmatpush.msra.mxu0 0.0
    %986 = vmatpush.msra.mxu0 0.0
    %987 = vmatpush.msra.mxu0 0.0
    %988 = vmatpush.msra.mxu0 0.0
    %989 = vmatpush.msra.mxu0 0.0
    %990 = vmatpush.msra.mxu0 0.0
    %991 = vmatpush.msra.mxu0 0.0
    %992 = vmatpush.msra.mxu0 %v241
    %993 = vmatpush.msra.mxu0 %v239
    %994 = vmatpush.msra.mxu0 %v237
    %995 = vmatpush.msra.mxu0 %v235
    %996 = vmatpush.msra.mxu0 %v233
    %997 = vmatpush.msra.mxu0 %v231
    %998 = vmatpush.msra.mxu0 %v229
    %999 = vmatpush.msra.mxu0 %v227
    %1000 = vmatmul.f32.gmra.mxu0 %v982
    %v1001 = vpop.f32.mrf.mxu0
    %v1002 = vadd.f32 0.0, %v1001
    %1003 = vdwg.mxu0
    %1004 = vmatpush.msra.mxu0 0.0
    %1005 = vmatpush.msra.mxu0 0.0
    %1006 = vmatpush.msra.mxu0 0.0
    %1007 = vmatpush.msra.mxu0 0.0
    %1008 = vmatpush.msra.mxu0 0.0
    %1009 = vmatpush.msra.mxu0 0.0
    %1010 = vmatpush.msra.mxu0 0.0
    %1011 = vmatpush.msra.mxu0 0.0
    %1012 = vmatpush.msra.mxu0 %v242
    %1013 = vmatpush.msra.mxu0 %v240
    %1014 = vmatpush.msra.mxu0 %v238
    %1015 = vmatpush.msra.mxu0 %v236
    %1016 = vmatpush.msra.mxu0 %v234
    %1017 = vmatpush.msra.mxu0 %v232
    %1018 = vmatpush.msra.mxu0 %v230
    %1019 = vmatpush.msra.mxu0 %v228
    %1020 = vmatmul.f32.gmra.mxu0 %v982
    %v1021 = vpop.f32.mrf.mxu0
    %v1022 = vadd.f32 0.0, %v1021
    %1023 = vdwg.mxu0
    %v1024 = vadd.f32 %v979, %v1002
    %v1025 = vadd.f32 %v980, %v1022
    %v1026 = vxor.u32 %v1024, 2147483648
    %v1027 = vxor.u32 %v1025, 2147483648
    %v1028 = vmul.f32 %v1026, 1.442695
    %v1029 = vpow.pop %v1028
    %v1030 = vmul.f32 %v1027, 1.442695
    %v1031 = vpow.pop %v1030
    %v1032 = vadd.f32 %v1029, 1.0
    %v1033 = vadd.f32 %v1031, 1.0
    %v1034 = vrcp.pop %v1032
    %v1035 = vmul.f32 %v1032, %v1034
    %v1036 = vsub.f32 1.0, %v1035
    %v1037 = vmul.f32 %v1034, %v1036
    %v1038 = vadd.f32 %v1034, %v1037
    %vm1039 = vweird.f32 %v1032
    %vm1040 = vweird.f32 %v1034
    %vm1041 = vmor %vm1039, %vm1040
    %v1042 = vsel %vm1041, %v1034, %v1038
    %v1043 = vand.u32 2147483647, %v1032
    %vm1044 = vcmp.eq.f32.partialorder %v1043, 8.507059e+37
    %v1045 = vand.u32 %v1032, 2147483648
    %v1046 = vor.u32 1.1754944e-38, %v1045
    %v1047 = vsel %vm1044, %v1046, %v1042
    %v1048 = vmul.f32 1.0, %v1047
    %v1049 = vrcp.pop %v1033
    %v1050 = vmul.f32 %v1033, %v1049
    %v1051 = vsub.f32 1.0, %v1050
    %v1052 = vmul.f32 %v1049, %v1051
    %v1053 = vadd.f32 %v1049, %v1052
    %vm1054 = vweird.f32 %v1033
    %vm1055 = vweird.f32 %v1049
    %vm1056 = vmor %vm1054, %vm1055
    %v1057 = vsel %vm1056, %v1049, %v1053
    %v1058 = vand.u32 2147483647, %v1033
    %vm1059 = vcmp.eq.f32.partialorder %v1058, 8.507059e+37
    %v1060 = vand.u32 %v1033, 2147483648
    %v1061 = vor.u32 1.1754944e-38, %v1060
    %v1062 = vsel %vm1059, %v1061, %v1057
    %v1063 = vmul.f32 1.0, %v1062
    %v1064 = vmul.f32 %v1063, 2.0
    %v1065 = vsub.f32 %v1064, 1.0
    %1067 = vrot.lane.b32.xlu0 %v974, 64
    %v1068 = vpop.permute.xlu0 %1067
    %v1070 = vmul.f32 %v1048, %v1068
    %v1071 = vmul.f32 %v1048, %v1065
    %1073 = vrot.lane.b32.xlu0 %v1071, 64
    %v1074 = vpop.permute.xlu0 %1073
    %v1076 = vadd.f32 %v1070, %v1074
    %v1077 = vtanh.pop %v1076
    %v1078 = vmul.f32 %v1063, %v1077
    %v1079 = vsel %vm221, 5, 2
    %vm1080 = vcmp.lt.s32.totalorder %v1079, %v484
    %1082 = vrot.lane.b32.xlu0 %v1078, 64
    %v1083 = vpop.permute.xlu0 %1082
    %v1085 = vsel %vm1080, %v1083, 0.0
    %1086 = vst.msk [vmem:[#allocation2 + $0x28] sm:$0xff] %vm257, %v1085
    %1087 = vst.msk [vmem:[#allocation2 + $0x10] sm:$0xff] %vm492, %v1085
    %v1088 = vsel %vm1080, %v1083, %v969
    %1090 = vrot.lane.b32.xlu0 %v1076, 64
    %v1091 = vpop.permute.xlu0 %1090
    %v1093 = vsel %vm1080, %v1091, %v974
    %v1094 = vld [vmem:[#allocation4 + $0x60] sm:$0xff]
    %v1095 = vld [vmem:[#allocation4 + $0x68] sm:$0xff]
    %v1096 = vld [vmem:[#allocation4 + $0x10] sm:$0xff]
    %v1097 = vld [vmem:[#allocation4 + $0x18] sm:$0xff]
    %v1098 = vsel %vm225, %v1094, %v1096
    %v1099 = vsel %vm226, %v1095, %v1097
    %v1101 = vsel %vm386, %v1088, 0
    %1103 = vmatpush.msra.mxu0 0.0
    %1104 = vmatpush.msra.mxu0 0.0
    %1105 = vmatpush.msra.mxu0 0.0
    %1106 = vmatpush.msra.mxu0 0.0
    %1107 = vmatpush.msra.mxu0 0.0
    %1108 = vmatpush.msra.mxu0 0.0
    %1109 = vmatpush.msra.mxu0 0.0
    %1110 = vmatpush.msra.mxu0 0.0
    %1111 = vmatpush.msra.mxu0 %v241
    %1112 = vmatpush.msra.mxu0 %v239
    %1113 = vmatpush.msra.mxu0 %v237
    %1114 = vmatpush.msra.mxu0 %v235
    %1115 = vmatpush.msra.mxu0 %v233
    %1116 = vmatpush.msra.mxu0 %v231
    %1117 = vmatpush.msra.mxu0 %v229
    %1118 = vmatpush.msra.mxu0 %v227
    %1119 = vmatmul.f32.gmra.mxu0 %v1101
    %v1120 = vpop.f32.mrf.mxu0
    %v1121 = vadd.f32 0.0, %v1120
    %1122 = vdwg.mxu0
    %1123 = vmatpush.msra.mxu0 0.0
    %1124 = vmatpush.msra.mxu0 0.0
    %1125 = vmatpush.msra.mxu0 0.0
    %1126 = vmatpush.msra.mxu0 0.0
    %1127 = vmatpush.msra.mxu0 0.0
    %1128 = vmatpush.msra.mxu0 0.0
    %1129 = vmatpush.msra.mxu0 0.0
    %1130 = vmatpush.msra.mxu0 0.0
    %1131 = vmatpush.msra.mxu0 %v242
    %1132 = vmatpush.msra.mxu0 %v240
    %1133 = vmatpush.msra.mxu0 %v238
    %1134 = vmatpush.msra.mxu0 %v236
    %1135 = vmatpush.msra.mxu0 %v234
    %1136 = vmatpush.msra.mxu0 %v232
    %1137 = vmatpush.msra.mxu0 %v230
    %1138 = vmatpush.msra.mxu0 %v228
    %1139 = vmatmul.f32.gmra.mxu0 %v1101
    %v1140 = vpop.f32.mrf.mxu0
    %v1141 = vadd.f32 0.0, %v1140
    %1142 = vdwg.mxu0
    %v1143 = vadd.f32 %v1098, %v1121
    %v1144 = vadd.f32 %v1099, %v1141
    %v1145 = vxor.u32 %v1143, 2147483648
    %v1146 = vxor.u32 %v1144, 2147483648
    %v1147 = vmul.f32 %v1145, 1.442695
    %v1148 = vpow.pop %v1147
    %v1149 = vmul.f32 %v1146, 1.442695
    %v1150 = vpow.pop %v1149
    %v1151 = vadd.f32 %v1148, 1.0
    %v1152 = vadd.f32 %v1150, 1.0
    %v1153 = vrcp.pop %v1151
    %v1154 = vmul.f32 %v1151, %v1153
    %v1155 = vsub.f32 1.0, %v1154
    %v1156 = vmul.f32 %v1153, %v1155
    %v1157 = vadd.f32 %v1153, %v1156
    %vm1158 = vweird.f32 %v1151
    %vm1159 = vweird.f32 %v1153
    %vm1160 = vmor %vm1158, %vm1159
    %v1161 = vsel %vm1160, %v1153, %v1157
    %v1162 = vand.u32 2147483647, %v1151
    %vm1163 = vcmp.eq.f32.partialorder %v1162, 8.507059e+37
    %v1164 = vand.u32 %v1151, 2147483648
    %v1165 = vor.u32 1.1754944e-38, %v1164
    %v1166 = vsel %vm1163, %v1165, %v1161
    %v1167 = vmul.f32 1.0, %v1166
    %v1168 = vrcp.pop %v1152
    %v1169 = vmul.f32 %v1152, %v1168
    %v1170 = vsub.f32 1.0, %v1169
    %v1171 = vmul.f32 %v1168, %v1170
    %v1172 = vadd.f32 %v1168, %v1171
    %vm1173 = vweird.f32 %v1152
    %vm1174 = vweird.f32 %v1168
    %vm1175 = vmor %vm1173, %vm1174
    %v1176 = vsel %vm1175, %v1168, %v1172
    %v1177 = vand.u32 2147483647, %v1152
    %vm1178 = vcmp.eq.f32.partialorder %v1177, 8.507059e+37
    %v1179 = vand.u32 %v1152, 2147483648
    %v1180 = vor.u32 1.1754944e-38, %v1179
    %v1181 = vsel %vm1178, %v1180, %v1176
    %v1182 = vmul.f32 1.0, %v1181
    %v1183 = vmul.f32 %v1182, 2.0
    %v1184 = vsub.f32 %v1183, 1.0
    %1186 = vrot.lane.b32.xlu0 %v1093, 64
    %v1187 = vpop.permute.xlu0 %1186
    %v1189 = vmul.f32 %v1167, %v1187
    %v1190 = vmul.f32 %v1167, %v1184
    %1192 = vrot.lane.b32.xlu0 %v1190, 64
    %v1193 = vpop.permute.xlu0 %1192
    %v1195 = vadd.f32 %v1189, %v1193
    %v1196 = vtanh.pop %v1195
    %v1197 = vmul.f32 %v1182, %v1196
    %v1198 = vsel %vm221, 6, 1
    %vm1199 = vcmp.lt.s32.totalorder %v1198, %v484
    %1201 = vrot.lane.b32.xlu0 %v1197, 64
    %v1202 = vpop.permute.xlu0 %1201
    %v1204 = vsel %vm1199, %v1202, 0.0
    %1205 = vst.msk [vmem:[#allocation2 + $0x30] sm:$0xff] %vm257, %v1204
    %1206 = vst.msk [vmem:[#allocation2 + $0x8] sm:$0xff] %vm492, %v1204
    %v1207 = vsel %vm1199, %v1202, %v1088
    %1209 = vrot.lane.b32.xlu0 %v1195, 64
    %v1210 = vpop.permute.xlu0 %1209
    %v1212 = vsel %vm1199, %v1210, %v1093
    %v1213 = vld [vmem:[#allocation4 + $0x70] sm:$0xff]
    %v1214 = vld [vmem:[#allocation4 + $0x78] sm:$0xff]
    %v1215 = vld [vmem:[#allocation4] sm:$0xff]
    %v1216 = vld [vmem:[#allocation4 + $0x8] sm:$0xff]
    %v1217 = vsel %vm225, %v1213, %v1215
    %v1218 = vsel %vm226, %v1214, %v1216
    %v1220 = vsel %vm386, %v1207, 0
    %1222 = vmatpush.msra.mxu0 0.0
    %1223 = vmatpush.msra.mxu0 0.0
    %1224 = vmatpush.msra.mxu0 0.0
    %1225 = vmatpush.msra.mxu0 0.0
    %1226 = vmatpush.msra.mxu0 0.0
    %1227 = vmatpush.msra.mxu0 0.0
    %1228 = vmatpush.msra.mxu0 0.0
    %1229 = vmatpush.msra.mxu0 0.0
    %1230 = vmatpush.msra.mxu0 %v241
    %1231 = vmatpush.msra.mxu0 %v239
    %1232 = vmatpush.msra.mxu0 %v237
    %1233 = vmatpush.msra.mxu0 %v235
    %1234 = vmatpush.msra.mxu0 %v233
    %1235 = vmatpush.msra.mxu0 %v231
    %1236 = vmatpush.msra.mxu0 %v229
    %1237 = vmatpush.msra.mxu0 %v227
    %1238 = vmatmul.f32.gmra.mxu0 %v1220
    %v1239 = vpop.f32.mrf.mxu0
    %v1240 = vadd.f32 0.0, %v1239
    %1241 = vdwg.mxu0
    %1242 = vmatpush.msra.mxu0 0.0
    %1243 = vmatpush.msra.mxu0 0.0
    %1244 = vmatpush.msra.mxu0 0.0
    %1245 = vmatpush.msra.mxu0 0.0
    %1246 = vmatpush.msra.mxu0 0.0
    %1247 = vmatpush.msra.mxu0 0.0
    %1248 = vmatpush.msra.mxu0 0.0
    %1249 = vmatpush.msra.mxu0 0.0
    %1250 = vmatpush.msra.mxu0 %v242
    %1251 = vmatpush.msra.mxu0 %v240
    %1252 = vmatpush.msra.mxu0 %v238
    %1253 = vmatpush.msra.mxu0 %v236
    %1254 = vmatpush.msra.mxu0 %v234
    %1255 = vmatpush.msra.mxu0 %v232
    %1256 = vmatpush.msra.mxu0 %v230
    %1257 = vmatpush.msra.mxu0 %v228
    %1258 = vmatmul.f32.gmra.mxu0 %v1220
    %v1259 = vpop.f32.mrf.mxu0
    %v1260 = vadd.f32 0.0, %v1259
    %1261 = vdwg.mxu0
    %v1262 = vadd.f32 %v1217, %v1240
    %v1263 = vadd.f32 %v1218, %v1260
    %v1264 = vxor.u32 %v1262, 2147483648
    %v1265 = vxor.u32 %v1263, 2147483648
    %v1266 = vmul.f32 %v1264, 1.442695
    %v1267 = vpow.pop %v1266
    %v1268 = vmul.f32 %v1265, 1.442695
    %v1269 = vpow.pop %v1268
    %v1270 = vadd.f32 %v1267, 1.0
    %v1271 = vadd.f32 %v1269, 1.0
    %v1272 = vrcp.pop %v1270
    %v1273 = vmul.f32 %v1270, %v1272
    %v1274 = vsub.f32 1.0, %v1273
    %v1275 = vmul.f32 %v1272, %v1274
    %v1276 = vadd.f32 %v1272, %v1275
    %vm1277 = vweird.f32 %v1270
    %vm1278 = vweird.f32 %v1272
    %vm1279 = vmor %vm1277, %vm1278
    %v1280 = vsel %vm1279, %v1272, %v1276
    %v1281 = vand.u32 2147483647, %v1270
    %vm1282 = vcmp.eq.f32.partialorder %v1281, 8.507059e+37
    %v1283 = vand.u32 %v1270, 2147483648
    %v1284 = vor.u32 1.1754944e-38, %v1283
    %v1285 = vsel %vm1282, %v1284, %v1280
    %v1286 = vmul.f32 1.0, %v1285
    %v1287 = vrcp.pop %v1271
    %v1288 = vmul.f32 %v1271, %v1287
    %v1289 = vsub.f32 1.0, %v1288
    %v1290 = vmul.f32 %v1287, %v1289
    %v1291 = vadd.f32 %v1287, %v1290
    %vm1292 = vweird.f32 %v1271
    %vm1293 = vweird.f32 %v1287
    %vm1294 = vmor %vm1292, %vm1293
    %v1295 = vsel %vm1294, %v1287, %v1291
    %v1296 = vand.u32 2147483647, %v1271
    %vm1297 = vcmp.eq.f32.partialorder %v1296, 8.507059e+37
    %v1298 = vand.u32 %v1271, 2147483648
    %v1299 = vor.u32 1.1754944e-38, %v1298
    %v1300 = vsel %vm1297, %v1299, %v1295
    %v1301 = vmul.f32 1.0, %v1300
    %v1302 = vmul.f32 %v1301, 2.0
    %v1303 = vsub.f32 %v1302, 1.0
    %1305 = vrot.lane.b32.xlu0 %v1212, 64
    %v1306 = vpop.permute.xlu0 %1305
    %v1308 = vmul.f32 %v1286, %v1306
    %v1309 = vmul.f32 %v1286, %v1303
    %1311 = vrot.lane.b32.xlu0 %v1309, 64
    %v1312 = vpop.permute.xlu0 %1311
    %v1314 = vadd.f32 %v1308, %v1312
    %v1315 = vtanh.pop %v1314
    %v1316 = vmul.f32 %v1301, %v1315
    %v1317 = vsel %vm221, 7, 0
    %vm1318 = vcmp.lt.s32.totalorder %v1317, %v484
    %1320 = vrot.lane.b32.xlu0 %v1316, 64
    %v1321 = vpop.permute.xlu0 %1320
    %v1323 = vsel %vm1318, %v1321, 0.0
    %1324 = vst.msk [vmem:[#allocation2 + $0x38] sm:$0xff] %vm257, %v1323
    %1325 = vst.msk [vmem:[#allocation2] sm:$0xff] %vm492, %v1323
    %1327 = vrot.lane.b32.xlu0 %v1314, 64
    %v1328 = vpop.permute.xlu0 %1327
    %v1330 = vsel %vm1318, %v1328, %v1212
    %1331 = vst.msk [vmem:[#allocation5] sm:$0xff] %vm386, %v1330
    %v1332 = vld [vmem:[#allocation2] sm:$0xff]
    %v1333 = vld [vmem:[#allocation2 + $0x8] sm:$0xff]
    %v1334 = vld [vmem:[#allocation2 + $0x10] sm:$0xff]
    %v1335 = vld [vmem:[#allocation2 + $0x18] sm:$0xff]
    %v1336 = vld [vmem:[#allocation2 + $0x20] sm:$0xff]
    %v1337 = vld [vmem:[#allocation2 + $0x28] sm:$0xff]
    %v1338 = vld [vmem:[#allocation2 + $0x30] sm:$0xff]
    %v1339 = vld [vmem:[#allocation2 + $0x38] sm:$0xff]
    %v1340 = vld [vmem:[%s7] sm:$0xff]
    %v1341 = vld [vmem:[%s7 + $0x8] sm:$0xff]
    %v1342 = vld [vmem:[%s7 + $0x10] sm:$0xff]
    %v1343 = vld [vmem:[%s7 + $0x18] sm:$0xff]
    %v1344 = vld [vmem:[%s7 + $0x20] sm:$0xff]
    %v1345 = vld [vmem:[%s7 + $0x28] sm:$0xff]
    %v1346 = vld [vmem:[%s7 + $0x30] sm:$0xff]
    %v1347 = vld [vmem:[%s7 + $0x38] sm:$0xff]
    %v1348 = vld [vmem:[%s7 + $0x40] sm:$0xff]
    %v1349 = vld [vmem:[%s7 + $0x48] sm:$0xff]
    %v1350 = vld [vmem:[%s7 + $0x50] sm:$0xff]
    %v1351 = vld [vmem:[%s7 + $0x58] sm:$0xff]
    %v1352 = vld [vmem:[%s7 + $0x60] sm:$0xff]
    %v1353 = vld [vmem:[%s7 + $0x68] sm:$0xff]
    %v1354 = vld [vmem:[%s7 + $0x70] sm:$0xff]
    %v1355 = vld [vmem:[%s7 + $0x78] sm:$0xff]
    %v1356 = vld [vmem:[%s6] sm:$0xff]
    %v1357 = vld [vmem:[%s6 + $0x8] sm:$0xff]
    %v1358 = vld [vmem:[%s6 + $0x10] sm:$0xff]
    %v1359 = vld [vmem:[%s6 + $0x18] sm:$0xff]
    %v1360 = vld [vmem:[%s6 + $0x20] sm:$0xff]
    %v1361 = vld [vmem:[%s6 + $0x28] sm:$0xff]
    %v1362 = vld [vmem:[%s6 + $0x30] sm:$0xff]
    %v1363 = vld [vmem:[%s6 + $0x38] sm:$0xff]
    %v1364 = vld [vmem:[%s6 + $0x40] sm:$0xff]
    %v1365 = vld [vmem:[%s6 + $0x48] sm:$0xff]
    %v1366 = vld [vmem:[%s6 + $0x50] sm:$0xff]
    %v1367 = vld [vmem:[%s6 + $0x58] sm:$0xff]
    %v1368 = vld [vmem:[%s6 + $0x60] sm:$0xff]
    %v1369 = vld [vmem:[%s6 + $0x68] sm:$0xff]
    %v1370 = vld [vmem:[%s6 + $0x70] sm:$0xff]
    %v1371 = vld [vmem:[%s6 + $0x78] sm:$0xff]
    %v1372 = vld [vmem:[%s8] sm:$0x3]
    %v1374 = vperm.slane %v1372, 0
    %v1375 = vperm.slane %v1372, 1
    %v1379 = vsel %vm386, %v1332, 0
    %v1382 = vsel %vm386, %v1333, 0
    %v1385 = vsel %vm386, %v1334, 0
    %v1388 = vsel %vm386, %v1335, 0
    %v1391 = vsel %vm386, %v1336, 0
    %v1394 = vsel %vm386, %v1337, 0
    %v1397 = vsel %vm386, %v1338, 0
    %v1400 = vsel %vm386, %v1339, 0
    %1402 = vmatpush.msra.mxu0 0.0
    %1403 = vmatpush.msra.mxu0 0.0
    %1404 = vmatpush.msra.mxu0 0.0
    %1405 = vmatpush.msra.mxu0 0.0
    %1406 = vmatpush.msra.mxu0 0.0
    %1407 = vmatpush.msra.mxu0 0.0
    %1408 = vmatpush.msra.mxu0 0.0
    %1409 = vmatpush.msra.mxu0 0.0
    %1410 = vmatpush.msra.mxu0 %v1370
    %1411 = vmatpush.msra.mxu0 %v1368
    %1412 = vmatpush.msra.mxu0 %v1366
    %1413 = vmatpush.msra.mxu0 %v1364
    %1414 = vmatpush.msra.mxu0 %v1362
    %1415 = vmatpush.msra.mxu0 %v1360
    %1416 = vmatpush.msra.mxu0 %v1358
    %1417 = vmatpush.msra.mxu0 %v1356
    %1418 = vmatmul.f32.gmra.mxu0 %v1379
    %v1419 = vpop.f32.mrf.mxu0
    %v1420 = vadd.f32 %v1374, %v1419
    %1421 = vmatmul.f32.gmra.mxu0 %v1382
    %v1422 = vpop.f32.mrf.mxu0
    %v1423 = vadd.f32 %v1374, %v1422
    %1424 = vmatmul.f32.gmra.mxu0 %v1385
    %v1425 = vpop.f32.mrf.mxu0
    %v1426 = vadd.f32 %v1374, %v1425
    %1427 = vmatmul.f32.gmra.mxu0 %v1388
    %v1428 = vpop.f32.mrf.mxu0
    %v1429 = vadd.f32 %v1374, %v1428
    %1430 = vmatmul.f32.gmra.mxu0 %v1391
    %v1431 = vpop.f32.mrf.mxu0
    %v1432 = vadd.f32 %v1374, %v1431
    %1433 = vmatmul.f32.gmra.mxu0 %v1394
    %v1434 = vpop.f32.mrf.mxu0
    %v1435 = vadd.f32 %v1374, %v1434
    %1436 = vmatmul.f32.gmra.mxu0 %v1397
    %v1437 = vpop.f32.mrf.mxu0
    %v1438 = vadd.f32 %v1374, %v1437
    %1439 = vmatmul.f32.gmra.mxu0 %v1400
    %v1440 = vpop.f32.mrf.mxu0
    %v1441 = vadd.f32 %v1374, %v1440
    %1442 = vdwg.mxu0
    %1443 = vmatpush.msra.mxu0 0.0
    %1444 = vmatpush.msra.mxu0 0.0
    %1445 = vmatpush.msra.mxu0 0.0
    %1446 = vmatpush.msra.mxu0 0.0
    %1447 = vmatpush.msra.mxu0 0.0
    %1448 = vmatpush.msra.mxu0 0.0
    %1449 = vmatpush.msra.mxu0 0.0
    %1450 = vmatpush.msra.mxu0 0.0
    %1451 = vmatpush.msra.mxu0 %v1371
    %1452 = vmatpush.msra.mxu0 %v1369
    %1453 = vmatpush.msra.mxu0 %v1367
    %1454 = vmatpush.msra.mxu0 %v1365
    %1455 = vmatpush.msra.mxu0 %v1363
    %1456 = vmatpush.msra.mxu0 %v1361
    %1457 = vmatpush.msra.mxu0 %v1359
    %1458 = vmatpush.msra.mxu0 %v1357
    %1459 = vmatmul.f32.gmra.mxu0 %v1379
    %v1460 = vpop.f32.mrf.mxu0
    %v1461 = vadd.f32 %v1375, %v1460
    %1462 = vmatmul.f32.gmra.mxu0 %v1382
    %v1463 = vpop.f32.mrf.mxu0
    %v1464 = vadd.f32 %v1375, %v1463
    %1465 = vmatmul.f32.gmra.mxu0 %v1385
    %v1466 = vpop.f32.mrf.mxu0
    %v1467 = vadd.f32 %v1375, %v1466
    %1468 = vmatmul.f32.gmra.mxu0 %v1388
    %v1469 = vpop.f32.mrf.mxu0
    %v1470 = vadd.f32 %v1375, %v1469
    %1471 = vmatmul.f32.gmra.mxu0 %v1391
    %v1472 = vpop.f32.mrf.mxu0
    %v1473 = vadd.f32 %v1375, %v1472
    %1474 = vmatmul.f32.gmra.mxu0 %v1394
    %v1475 = vpop.f32.mrf.mxu0
    %v1476 = vadd.f32 %v1375, %v1475
    %1477 = vmatmul.f32.gmra.mxu0 %v1397
    %v1478 = vpop.f32.mrf.mxu0
    %v1479 = vadd.f32 %v1375, %v1478
    %1480 = vmatmul.f32.gmra.mxu0 %v1400
    %v1481 = vpop.f32.mrf.mxu0
    %v1482 = vadd.f32 %v1375, %v1481
    %1483 = vdwg.mxu0
    %1484 = vst [vmem:[#allocation4] sm:$0xff] %v1420
    %1485 = vst [vmem:[#allocation4 + $0x8] sm:$0xff] %v1461
    %1486 = vst [vmem:[#allocation4 + $0x10] sm:$0xff] %v1423
    %1487 = vst [vmem:[#allocation4 + $0x18] sm:$0xff] %v1464
    %1488 = vst [vmem:[#allocation4 + $0x20] sm:$0xff] %v1426
    %1489 = vst [vmem:[#allocation4 + $0x28] sm:$0xff] %v1467
    %1490 = vst [vmem:[#allocation4 + $0x30] sm:$0xff] %v1429
    %1491 = vst [vmem:[#allocation4 + $0x38] sm:$0xff] %v1470
    %1492 = vst [vmem:[#allocation4 + $0x40] sm:$0xff] %v1432
    %1493 = vst [vmem:[#allocation4 + $0x48] sm:$0xff] %v1473
    %1494 = vst [vmem:[#allocation4 + $0x50] sm:$0xff] %v1435
    %1495 = vst [vmem:[#allocation4 + $0x58] sm:$0xff] %v1476
    %1496 = vst [vmem:[#allocation4 + $0x60] sm:$0xff] %v1438
    %1497 = vst [vmem:[#allocation4 + $0x68] sm:$0xff] %v1479
    %1498 = vst [vmem:[#allocation4 + $0x70] sm:$0xff] %v1441
    %1499 = vst [vmem:[#allocation4 + $0x78] sm:$0xff] %v1482
    %v1500 = vld [vmem:[#allocation4] sm:$0xff]
    %v1501 = vld [vmem:[#allocation4 + $0x8] sm:$0xff]
    %v1502 = vld [vmem:[#allocation4 + $0x70] sm:$0xff]
    %v1503 = vld [vmem:[#allocation4 + $0x78] sm:$0xff]
    %v1504 = vsel %vm225, %v1500, %v1502
    %v1505 = vsel %vm226, %v1501, %v1503
    %1506 = vmatpush.msra.mxu0 0.0
    %1507 = vmatpush.msra.mxu0 0.0
    %1508 = vmatpush.msra.mxu0 0.0
    %1509 = vmatpush.msra.mxu0 0.0
    %1510 = vmatpush.msra.mxu0 0.0
    %1511 = vmatpush.msra.mxu0 0.0
    %1512 = vmatpush.msra.mxu0 0.0
    %1513 = vmatpush.msra.mxu0 0.0
    %1514 = vmatpush.msra.mxu0 %v1354
    %1515 = vmatpush.msra.mxu0 %v1352
    %1516 = vmatpush.msra.mxu0 %v1350
    %1517 = vmatpush.msra.mxu0 %v1348
    %1518 = vmatpush.msra.mxu0 %v1346
    %1519 = vmatpush.msra.mxu0 %v1344
    %1520 = vmatpush.msra.mxu0 %v1342
    %1521 = vmatpush.msra.mxu0 %v1340
    %1522 = vmatmul.f32.gmra.mxu0 %v388
    %v1523 = vpop.f32.mrf.mxu0
    %v1524 = vadd.f32 0.0, %v1523
    %1525 = vdwg.mxu0
    %1526 = vmatpush.msra.mxu0 0.0
    %1527 = vmatpush.msra.mxu0 0.0
    %1528 = vmatpush.msra.mxu0 0.0
    %1529 = vmatpush.msra.mxu0 0.0
    %1530 = vmatpush.msra.mxu0 0.0
    %1531 = vmatpush.msra.mxu0 0.0
    %1532 = vmatpush.msra.mxu0 0.0
    %1533 = vmatpush.msra.mxu0 0.0
    %1534 = vmatpush.msra.mxu0 %v1355
    %1535 = vmatpush.msra.mxu0 %v1353
    %1536 = vmatpush.msra.mxu0 %v1351
    %1537 = vmatpush.msra.mxu0 %v1349
    %1538 = vmatpush.msra.mxu0 %v1347
    %1539 = vmatpush.msra.mxu0 %v1345
    %1540 = vmatpush.msra.mxu0 %v1343
    %1541 = vmatpush.msra.mxu0 %v1341
    %1542 = vmatmul.f32.gmra.mxu0 %v388
    %v1543 = vpop.f32.mrf.mxu0
    %v1544 = vadd.f32 0.0, %v1543
    %1545 = vdwg.mxu0
    %v1546 = vadd.f32 %v1504, %v1524
    %v1547 = vadd.f32 %v1505, %v1544
    %v1548 = vxor.u32 %v1546, 2147483648
    %v1549 = vxor.u32 %v1547, 2147483648
    %v1550 = vmul.f32 %v1548, 1.442695
    %v1551 = vpow.pop %v1550
    %v1552 = vmul.f32 %v1549, 1.442695
    %v1553 = vpow.pop %v1552
    %v1554 = vadd.f32 %v1551, 1.0
    %v1555 = vadd.f32 %v1553, 1.0
    %v1556 = vrcp.pop %v1554
    %v1557 = vmul.f32 %v1554, %v1556
    %v1558 = vsub.f32 1.0, %v1557
    %v1559 = vmul.f32 %v1556, %v1558
    %v1560 = vadd.f32 %v1556, %v1559
    %vm1561 = vweird.f32 %v1554
    %vm1562 = vweird.f32 %v1556
    %vm1563 = vmor %vm1561, %vm1562
    %v1564 = vsel %vm1563, %v1556, %v1560
    %v1565 = vand.u32 2147483647, %v1554
    %vm1566 = vcmp.eq.f32.partialorder %v1565, 8.507059e+37
    %v1567 = vand.u32 %v1554, 2147483648
    %v1568 = vor.u32 1.1754944e-38, %v1567
    %v1569 = vsel %vm1566, %v1568, %v1564
    %v1570 = vmul.f32 1.0, %v1569
    %v1571 = vrcp.pop %v1555
    %v1572 = vmul.f32 %v1555, %v1571
    %v1573 = vsub.f32 1.0, %v1572
    %v1574 = vmul.f32 %v1571, %v1573
    %v1575 = vadd.f32 %v1571, %v1574
    %vm1576 = vweird.f32 %v1555
    %vm1577 = vweird.f32 %v1571
    %vm1578 = vmor %vm1576, %vm1577
    %v1579 = vsel %vm1578, %v1571, %v1575
    %v1580 = vand.u32 2147483647, %v1555
    %vm1581 = vcmp.eq.f32.partialorder %v1580, 8.507059e+37
    %v1582 = vand.u32 %v1555, 2147483648
    %v1583 = vor.u32 1.1754944e-38, %v1582
    %v1584 = vsel %vm1581, %v1583, %v1579
    %v1585 = vmul.f32 1.0, %v1584
    %v1586 = vmul.f32 %v1585, 2.0
    %v1587 = vsub.f32 %v1586, 1.0
    %v1588 = vmul.f32 %v1570, 0.0
    %v1589 = vmul.f32 %v1570, %v1587
    %1591 = vrot.lane.b32.xlu0 %v1589, 64
    %v1592 = vpop.permute.xlu0 %1591
    %v1594 = vadd.f32 %v1588, %v1592
    %v1595 = vtanh.pop %v1594
    %v1596 = vmul.f32 %v1585, %v1595
    %1598 = vrot.lane.b32.xlu0 %v1596, 64
    %v1599 = vpop.permute.xlu0 %1598
    %v1601 = vsel %vm485, %v1599, 0.0
    %1602 = vst.msk [vmem:[#allocation3] sm:$0xff] %vm257, %v1601
    %1603 = vst.msk [vmem:[#allocation3 + $0x38] sm:$0xff] %vm492, %v1601
    %1605 = vrot.lane.b32.xlu0 %v1594, 64
    %v1606 = vpop.permute.xlu0 %1605
    %v1608 = vsel %vm485, %v1606, 0.0
    %v1609 = vld [vmem:[#allocation4 + $0x10] sm:$0xff]
    %v1610 = vld [vmem:[#allocation4 + $0x18] sm:$0xff]
    %v1611 = vld [vmem:[#allocation4 + $0x60] sm:$0xff]
    %v1612 = vld [vmem:[#allocation4 + $0x68] sm:$0xff]
    %v1613 = vsel %vm225, %v1609, %v1611
    %v1614 = vsel %vm226, %v1610, %v1612
    %v1616 = vsel %vm386, %v1601, 0
    %1618 = vmatpush.msra.mxu0 0.0
    %1619 = vmatpush.msra.mxu0 0.0
    %1620 = vmatpush.msra.mxu0 0.0
    %1621 = vmatpush.msra.mxu0 0.0
    %1622 = vmatpush.msra.mxu0 0.0
    %1623 = vmatpush.msra.mxu0 0.0
    %1624 = vmatpush.msra.mxu0 0.0
    %1625 = vmatpush.msra.mxu0 0.0
    %1626 = vmatpush.msra.mxu0 %v1354
    %1627 = vmatpush.msra.mxu0 %v1352
    %1628 = vmatpush.msra.mxu0 %v1350
    %1629 = vmatpush.msra.mxu0 %v1348
    %1630 = vmatpush.msra.mxu0 %v1346
    %1631 = vmatpush.msra.mxu0 %v1344
    %1632 = vmatpush.msra.mxu0 %v1342
    %1633 = vmatpush.msra.mxu0 %v1340
    %1634 = vmatmul.f32.gmra.mxu0 %v1616
    %v1635 = vpop.f32.mrf.mxu0
    %v1636 = vadd.f32 0.0, %v1635
    %1637 = vdwg.mxu0
    %1638 = vmatpush.msra.mxu0 0.0
    %1639 = vmatpush.msra.mxu0 0.0
    %1640 = vmatpush.msra.mxu0 0.0
    %1641 = vmatpush.msra.mxu0 0.0
    %1642 = vmatpush.msra.mxu0 0.0
    %1643 = vmatpush.msra.mxu0 0.0
    %1644 = vmatpush.msra.mxu0 0.0
    %1645 = vmatpush.msra.mxu0 0.0
    %1646 = vmatpush.msra.mxu0 %v1355
    %1647 = vmatpush.msra.mxu0 %v1353
    %1648 = vmatpush.msra.mxu0 %v1351
    %1649 = vmatpush.msra.mxu0 %v1349
    %1650 = vmatpush.msra.mxu0 %v1347
    %1651 = vmatpush.msra.mxu0 %v1345
    %1652 = vmatpush.msra.mxu0 %v1343
    %1653 = vmatpush.msra.mxu0 %v1341
    %1654 = vmatmul.f32.gmra.mxu0 %v1616
    %v1655 = vpop.f32.mrf.mxu0
    %v1656 = vadd.f32 0.0, %v1655
    %1657 = vdwg.mxu0
    %v1658 = vadd.f32 %v1613, %v1636
    %v1659 = vadd.f32 %v1614, %v1656
    %v1660 = vxor.u32 %v1658, 2147483648
    %v1661 = vxor.u32 %v1659, 2147483648
    %v1662 = vmul.f32 %v1660, 1.442695
    %v1663 = vpow.pop %v1662
    %v1664 = vmul.f32 %v1661, 1.442695
    %v1665 = vpow.pop %v1664
    %v1666 = vadd.f32 %v1663, 1.0
    %v1667 = vadd.f32 %v1665, 1.0
    %v1668 = vrcp.pop %v1666
    %v1669 = vmul.f32 %v1666, %v1668
    %v1670 = vsub.f32 1.0, %v1669
    %v1671 = vmul.f32 %v1668, %v1670
    %v1672 = vadd.f32 %v1668, %v1671
    %vm1673 = vweird.f32 %v1666
    %vm1674 = vweird.f32 %v1668
    %vm1675 = vmor %vm1673, %vm1674
    %v1676 = vsel %vm1675, %v1668, %v1672
    %v1677 = vand.u32 2147483647, %v1666
    %vm1678 = vcmp.eq.f32.partialorder %v1677, 8.507059e+37
    %v1679 = vand.u32 %v1666, 2147483648
    %v1680 = vor.u32 1.1754944e-38, %v1679
    %v1681 = vsel %vm1678, %v1680, %v1676
    %v1682 = vmul.f32 1.0, %v1681
    %v1683 = vrcp.pop %v1667
    %v1684 = vmul.f32 %v1667, %v1683
    %v1685 = vsub.f32 1.0, %v1684
    %v1686 = vmul.f32 %v1683, %v1685
    %v1687 = vadd.f32 %v1683, %v1686
    %vm1688 = vweird.f32 %v1667
    %vm1689 = vweird.f32 %v1683
    %vm1690 = vmor %vm1688, %vm1689
    %v1691 = vsel %vm1690, %v1683, %v1687
    %v1692 = vand.u32 2147483647, %v1667
    %vm1693 = vcmp.eq.f32.partialorder %v1692, 8.507059e+37
    %v1694 = vand.u32 %v1667, 2147483648
    %v1695 = vor.u32 1.1754944e-38, %v1694
    %v1696 = vsel %vm1693, %v1695, %v1691
    %v1697 = vmul.f32 1.0, %v1696
    %v1698 = vmul.f32 %v1697, 2.0
    %v1699 = vsub.f32 %v1698, 1.0
    %1701 = vrot.lane.b32.xlu0 %v1608, 64
    %v1702 = vpop.permute.xlu0 %1701
    %v1704 = vmul.f32 %v1682, %v1702
    %v1705 = vmul.f32 %v1682, %v1699
    %1707 = vrot.lane.b32.xlu0 %v1705, 64
    %v1708 = vpop.permute.xlu0 %1707
    %v1710 = vadd.f32 %v1704, %v1708
    %v1711 = vtanh.pop %v1710
    %v1712 = vmul.f32 %v1697, %v1711
    %1714 = vrot.lane.b32.xlu0 %v1712, 64
    %v1715 = vpop.permute.xlu0 %1714
    %v1717 = vsel %vm604, %v1715, 0.0
    %1718 = vst.msk [vmem:[#allocation3 + $0x8] sm:$0xff] %vm257, %v1717
    %1719 = vst.msk [vmem:[#allocation3 + $0x30] sm:$0xff] %vm492, %v1717
    %v1720 = vsel %vm604, %v1715, %v1601
    %1722 = vrot.lane.b32.xlu0 %v1710, 64
    %v1723 = vpop.permute.xlu0 %1722
    %v1725 = vsel %vm604, %v1723, %v1608
    %v1726 = vld [vmem:[#allocation4 + $0x20] sm:$0xff]
    %v1727 = vld [vmem:[#allocation4 + $0x28] sm:$0xff]
    %v1728 = vld [vmem:[#allocation4 + $0x50] sm:$0xff]
    %v1729 = vld [vmem:[#allocation4 + $0x58] sm:$0xff]
    %v1730 = vsel %vm225, %v1726, %v1728
    %v1731 = vsel %vm226, %v1727, %v1729
    %v1733 = vsel %vm386, %v1720, 0
    %1735 = vmatpush.msra.mxu0 0.0
    %1736 = vmatpush.msra.mxu0 0.0
    %1737 = vmatpush.msra.mxu0 0.0
    %1738 = vmatpush.msra.mxu0 0.0
    %1739 = vmatpush.msra.mxu0 0.0
    %1740 = vmatpush.msra.mxu0 0.0
    %1741 = vmatpush.msra.mxu0 0.0
    %1742 = vmatpush.msra.mxu0 0.0
    %1743 = vmatpush.msra.mxu0 %v1354
    %1744 = vmatpush.msra.mxu0 %v1352
    %1745 = vmatpush.msra.mxu0 %v1350
    %1746 = vmatpush.msra.mxu0 %v1348
    %1747 = vmatpush.msra.mxu0 %v1346
    %1748 = vmatpush.msra.mxu0 %v1344
    %1749 = vmatpush.msra.mxu0 %v1342
    %1750 = vmatpush.msra.mxu0 %v1340
    %1751 = vmatmul.f32.gmra.mxu0 %v1733
    %v1752 = vpop.f32.mrf.mxu0
    %v1753 = vadd.f32 0.0, %v1752
    %1754 = vdwg.mxu0
    %1755 = vmatpush.msra.mxu0 0.0
    %1756 = vmatpush.msra.mxu0 0.0
    %1757 = vmatpush.msra.mxu0 0.0
    %1758 = vmatpush.msra.mxu0 0.0
    %1759 = vmatpush.msra.mxu0 0.0
    %1760 = vmatpush.msra.mxu0 0.0
    %1761 = vmatpush.msra.mxu0 0.0
    %1762 = vmatpush.msra.mxu0 0.0
    %1763 = vmatpush.msra.mxu0 %v1355
    %1764 = vmatpush.msra.mxu0 %v1353
    %1765 = vmatpush.msra.mxu0 %v1351
    %1766 = vmatpush.msra.mxu0 %v1349
    %1767 = vmatpush.msra.mxu0 %v1347
    %1768 = vmatpush.msra.mxu0 %v1345
    %1769 = vmatpush.msra.mxu0 %v1343
    %1770 = vmatpush.msra.mxu0 %v1341
    %1771 = vmatmul.f32.gmra.mxu0 %v1733
    %v1772 = vpop.f32.mrf.mxu0
    %v1773 = vadd.f32 0.0, %v1772
    %1774 = vdwg.mxu0
    %v1775 = vadd.f32 %v1730, %v1753
    %v1776 = vadd.f32 %v1731, %v1773
    %v1777 = vxor.u32 %v1775, 2147483648
    %v1778 = vxor.u32 %v1776, 2147483648
    %v1779 = vmul.f32 %v1777, 1.442695
    %v1780 = vpow.pop %v1779
    %v1781 = vmul.f32 %v1778, 1.442695
    %v1782 = vpow.pop %v1781
    %v1783 = vadd.f32 %v1780, 1.0
    %v1784 = vadd.f32 %v1782, 1.0
    %v1785 = vrcp.pop %v1783
    %v1786 = vmul.f32 %v1783, %v1785
    %v1787 = vsub.f32 1.0, %v1786
    %v1788 = vmul.f32 %v1785, %v1787
    %v1789 = vadd.f32 %v1785, %v1788
    %vm1790 = vweird.f32 %v1783
    %vm1791 = vweird.f32 %v1785
    %vm1792 = vmor %vm1790, %vm1791
    %v1793 = vsel %vm1792, %v1785, %v1789
    %v1794 = vand.u32 2147483647, %v1783
    %vm1795 = vcmp.eq.f32.partialorder %v1794, 8.507059e+37
    %v1796 = vand.u32 %v1783, 2147483648
    %v1797 = vor.u32 1.1754944e-38, %v1796
    %v1798 = vsel %vm1795, %v1797, %v1793
    %v1799 = vmul.f32 1.0, %v1798
    %v1800 = vrcp.pop %v1784
    %v1801 = vmul.f32 %v1784, %v1800
    %v1802 = vsub.f32 1.0, %v1801
    %v1803 = vmul.f32 %v1800, %v1802
    %v1804 = vadd.f32 %v1800, %v1803
    %vm1805 = vweird.f32 %v1784
    %vm1806 = vweird.f32 %v1800
    %vm1807 = vmor %vm1805, %vm1806
    %v1808 = vsel %vm1807, %v1800, %v1804
    %v1809 = vand.u32 2147483647, %v1784
    %vm1810 = vcmp.eq.f32.partialorder %v1809, 8.507059e+37
    %v1811 = vand.u32 %v1784, 2147483648
    %v1812 = vor.u32 1.1754944e-38, %v1811
    %v1813 = vsel %vm1810, %v1812, %v1808
    %v1814 = vmul.f32 1.0, %v1813
    %v1815 = vmul.f32 %v1814, 2.0
    %v1816 = vsub.f32 %v1815, 1.0
    %1818 = vrot.lane.b32.xlu0 %v1725, 64
    %v1819 = vpop.permute.xlu0 %1818
    %v1821 = vmul.f32 %v1799, %v1819
    %v1822 = vmul.f32 %v1799, %v1816
    %1824 = vrot.lane.b32.xlu0 %v1822, 64
    %v1825 = vpop.permute.xlu0 %1824
    %v1827 = vadd.f32 %v1821, %v1825
    %v1828 = vtanh.pop %v1827
    %v1829 = vmul.f32 %v1814, %v1828
    %1831 = vrot.lane.b32.xlu0 %v1829, 64
    %v1832 = vpop.permute.xlu0 %1831
    %v1834 = vsel %vm723, %v1832, 0.0
    %1835 = vst.msk [vmem:[#allocation3 + $0x10] sm:$0xff] %vm257, %v1834
    %1836 = vst.msk [vmem:[#allocation3 + $0x28] sm:$0xff] %vm492, %v1834
    %v1837 = vsel %vm723, %v1832, %v1720
    %1839 = vrot.lane.b32.xlu0 %v1827, 64
    %v1840 = vpop.permute.xlu0 %1839
    %v1842 = vsel %vm723, %v1840, %v1725
    %v1843 = vld [vmem:[#allocation4 + $0x30] sm:$0xff]
    %v1844 = vld [vmem:[#allocation4 + $0x38] sm:$0xff]
    %v1845 = vld [vmem:[#allocation4 + $0x40] sm:$0xff]
    %v1846 = vld [vmem:[#allocation4 + $0x48] sm:$0xff]
    %v1847 = vsel %vm225, %v1843, %v1845
    %v1848 = vsel %vm226, %v1844, %v1846
    %v1850 = vsel %vm386, %v1837, 0
    %1852 = vmatpush.msra.mxu0 0.0
    %1853 = vmatpush.msra.mxu0 0.0
    %1854 = vmatpush.msra.mxu0 0.0
    %1855 = vmatpush.msra.mxu0 0.0
    %1856 = vmatpush.msra.mxu0 0.0
    %1857 = vmatpush.msra.mxu0 0.0
    %1858 = vmatpush.msra.mxu0 0.0
    %1859 = vmatpush.msra.mxu0 0.0
    %1860 = vmatpush.msra.mxu0 %v1354
    %1861 = vmatpush.msra.mxu0 %v1352
    %1862 = vmatpush.msra.mxu0 %v1350
    %1863 = vmatpush.msra.mxu0 %v1348
    %1864 = vmatpush.msra.mxu0 %v1346
    %1865 = vmatpush.msra.mxu0 %v1344
    %1866 = vmatpush.msra.mxu0 %v1342
    %1867 = vmatpush.msra.mxu0 %v1340
    %1868 = vmatmul.f32.gmra.mxu0 %v1850
    %v1869 = vpop.f32.mrf.mxu0
    %v1870 = vadd.f32 0.0, %v1869
    %1871 = vdwg.mxu0
    %1872 = vmatpush.msra.mxu0 0.0
    %1873 = vmatpush.msra.mxu0 0.0
    %1874 = vmatpush.msra.mxu0 0.0
    %1875 = vmatpush.msra.mxu0 0.0
    %1876 = vmatpush.msra.mxu0 0.0
    %1877 = vmatpush.msra.mxu0 0.0
    %1878 = vmatpush.msra.mxu0 0.0
    %1879 = vmatpush.msra.mxu0 0.0
    %1880 = vmatpush.msra.mxu0 %v1355
    %1881 = vmatpush.msra.mxu0 %v1353
    %1882 = vmatpush.msra.mxu0 %v1351
    %1883 = vmatpush.msra.mxu0 %v1349
    %1884 = vmatpush.msra.mxu0 %v1347
    %1885 = vmatpush.msra.mxu0 %v1345
    %1886 = vmatpush.msra.mxu0 %v1343
    %1887 = vmatpush.msra.mxu0 %v1341
    %1888 = vmatmul.f32.gmra.mxu0 %v1850
    %v1889 = vpop.f32.mrf.mxu0
    %v1890 = vadd.f32 0.0, %v1889
    %1891 = vdwg.mxu0
    %v1892 = vadd.f32 %v1847, %v1870
    %v1893 = vadd.f32 %v1848, %v1890
    %v1894 = vxor.u32 %v1892, 2147483648
    %v1895 = vxor.u32 %v1893, 2147483648
    %v1896 = vmul.f32 %v1894, 1.442695
    %v1897 = vpow.pop %v1896
    %v1898 = vmul.f32 %v1895, 1.442695
    %v1899 = vpow.pop %v1898
    %v1900 = vadd.f32 %v1897, 1.0
    %v1901 = vadd.f32 %v1899, 1.0
    %v1902 = vrcp.pop %v1900
    %v1903 = vmul.f32 %v1900, %v1902
    %v1904 = vsub.f32 1.0, %v1903
    %v1905 = vmul.f32 %v1902, %v1904
    %v1906 = vadd.f32 %v1902, %v1905
    %vm1907 = vweird.f32 %v1900
    %vm1908 = vweird.f32 %v1902
    %vm1909 = vmor %vm1907, %vm1908
    %v1910 = vsel %vm1909, %v1902, %v1906
    %v1911 = vand.u32 2147483647, %v1900
    %vm1912 = vcmp.eq.f32.partialorder %v1911, 8.507059e+37
    %v1913 = vand.u32 %v1900, 2147483648
    %v1914 = vor.u32 1.1754944e-38, %v1913
    %v1915 = vsel %vm1912, %v1914, %v1910
    %v1916 = vmul.f32 1.0, %v1915
    %v1917 = vrcp.pop %v1901
    %v1918 = vmul.f32 %v1901, %v1917
    %v1919 = vsub.f32 1.0, %v1918
    %v1920 = vmul.f32 %v1917, %v1919
    %v1921 = vadd.f32 %v1917, %v1920
    %vm1922 = vweird.f32 %v1901
    %vm1923 = vweird.f32 %v1917
    %vm1924 = vmor %vm1922, %vm1923
    %v1925 = vsel %vm1924, %v1917, %v1921
    %v1926 = vand.u32 2147483647, %v1901
    %vm1927 = vcmp.eq.f32.partialorder %v1926, 8.507059e+37
    %v1928 = vand.u32 %v1901, 2147483648
    %v1929 = vor.u32 1.1754944e-38, %v1928
    %v1930 = vsel %vm1927, %v1929, %v1925
    %v1931 = vmul.f32 1.0, %v1930
    %v1932 = vmul.f32 %v1931, 2.0
    %v1933 = vsub.f32 %v1932, 1.0
    %1935 = vrot.lane.b32.xlu0 %v1842, 64
    %v1936 = vpop.permute.xlu0 %1935
    %v1938 = vmul.f32 %v1916, %v1936
    %v1939 = vmul.f32 %v1916, %v1933
    %1941 = vrot.lane.b32.xlu0 %v1939, 64
    %v1942 = vpop.permute.xlu0 %1941
    %v1944 = vadd.f32 %v1938, %v1942
    %v1945 = vtanh.pop %v1944
    %v1946 = vmul.f32 %v1931, %v1945
    %1948 = vrot.lane.b32.xlu0 %v1946, 64
    %v1949 = vpop.permute.xlu0 %1948
    %v1951 = vsel %vm842, %v1949, 0.0
    %1952 = vst.msk [vmem:[#allocation3 + $0x18] sm:$0xff] %vm257, %v1951
    %1953 = vst.msk [vmem:[#allocation3 + $0x20] sm:$0xff] %vm492, %v1951
    %v1954 = vsel %vm842, %v1949, %v1837
    %1956 = vrot.lane.b32.xlu0 %v1944, 64
    %v1957 = vpop.permute.xlu0 %1956
    %v1959 = vsel %vm842, %v1957, %v1842
    %v1960 = vld [vmem:[#allocation4 + $0x40] sm:$0xff]
    %v1961 = vld [vmem:[#allocation4 + $0x48] sm:$0xff]
    %v1962 = vld [vmem:[#allocation4 + $0x30] sm:$0xff]
    %v1963 = vld [vmem:[#allocation4 + $0x38] sm:$0xff]
    %v1964 = vsel %vm225, %v1960, %v1962
    %v1965 = vsel %vm226, %v1961, %v1963
    %v1967 = vsel %vm386, %v1954, 0
    %1969 = vmatpush.msra.mxu0 0.0
    %1970 = vmatpush.msra.mxu0 0.0
    %1971 = vmatpush.msra.mxu0 0.0
    %1972 = vmatpush.msra.mxu0 0.0
    %1973 = vmatpush.msra.mxu0 0.0
    %1974 = vmatpush.msra.mxu0 0.0
    %1975 = vmatpush.msra.mxu0 0.0
    %1976 = vmatpush.msra.mxu0 0.0
    %1977 = vmatpush.msra.mxu0 %v1354
    %1978 = vmatpush.msra.mxu0 %v1352
    %1979 = vmatpush.msra.mxu0 %v1350
    %1980 = vmatpush.msra.mxu0 %v1348
    %1981 = vmatpush.msra.mxu0 %v1346
    %1982 = vmatpush.msra.mxu0 %v1344
    %1983 = vmatpush.msra.mxu0 %v1342
    %1984 = vmatpush.msra.mxu0 %v1340
    %1985 = vmatmul.f32.gmra.mxu0 %v1967
    %v1986 = vpop.f32.mrf.mxu0
    %v1987 = vadd.f32 0.0, %v1986
    %1988 = vdwg.mxu0
    %1989 = vmatpush.msra.mxu0 0.0
    %1990 = vmatpush.msra.mxu0 0.0
    %1991 = vmatpush.msra.mxu0 0.0
    %1992 = vmatpush.msra.mxu0 0.0
    %1993 = vmatpush.msra.mxu0 0.0
    %1994 = vmatpush.msra.mxu0 0.0
    %1995 = vmatpush.msra.mxu0 0.0
    %1996 = vmatpush.msra.mxu0 0.0
    %1997 = vmatpush.msra.mxu0 %v1355
    %1998 = vmatpush.msra.mxu0 %v1353
    %1999 = vmatpush.msra.mxu0 %v1351
    %2000 = vmatpush.msra.mxu0 %v1349
    %2001 = vmatpush.msra.mxu0 %v1347
    %2002 = vmatpush.msra.mxu0 %v1345
    %2003 = vmatpush.msra.mxu0 %v1343
    %2004 = vmatpush.msra.mxu0 %v1341
    %2005 = vmatmul.f32.gmra.mxu0 %v1967
    %v2006 = vpop.f32.mrf.mxu0
    %v2007 = vadd.f32 0.0, %v2006
    %2008 = vdwg.mxu0
    %v2009 = vadd.f32 %v1964, %v1987
    %v2010 = vadd.f32 %v1965, %v2007
    %v2011 = vxor.u32 %v2009, 2147483648
    %v2012 = vxor.u32 %v2010, 2147483648
    %v2013 = vmul.f32 %v2011, 1.442695
    %v2014 = vpow.pop %v2013
    %v2015 = vmul.f32 %v2012, 1.442695
    %v2016 = vpow.pop %v2015
    %v2017 = vadd.f32 %v2014, 1.0
    %v2018 = vadd.f32 %v2016, 1.0
    %v2019 = vrcp.pop %v2017
    %v2020 = vmul.f32 %v2017, %v2019
    %v2021 = vsub.f32 1.0, %v2020
    %v2022 = vmul.f32 %v2019, %v2021
    %v2023 = vadd.f32 %v2019, %v2022
    %vm2024 = vweird.f32 %v2017
    %vm2025 = vweird.f32 %v2019
    %vm2026 = vmor %vm2024, %vm2025
    %v2027 = vsel %vm2026, %v2019, %v2023
    %v2028 = vand.u32 2147483647, %v2017
    %vm2029 = vcmp.eq.f32.partialorder %v2028, 8.507059e+37
    %v2030 = vand.u32 %v2017, 2147483648
    %v2031 = vor.u32 1.1754944e-38, %v2030
    %v2032 = vsel %vm2029, %v2031, %v2027
    %v2033 = vmul.f32 1.0, %v2032
    %v2034 = vrcp.pop %v2018
    %v2035 = vmul.f32 %v2018, %v2034
    %v2036 = vsub.f32 1.0, %v2035
    %v2037 = vmul.f32 %v2034, %v2036
    %v2038 = vadd.f32 %v2034, %v2037
    %vm2039 = vweird.f32 %v2018
    %vm2040 = vweird.f32 %v2034
    %vm2041 = vmor %vm2039, %vm2040
    %v2042 = vsel %vm2041, %v2034, %v2038
    %v2043 = vand.u32 2147483647, %v2018
    %vm2044 = vcmp.eq.f32.partialorder %v2043, 8.507059e+37
    %v2045 = vand.u32 %v2018, 2147483648
    %v2046 = vor.u32 1.1754944e-38, %v2045
    %v2047 = vsel %vm2044, %v2046, %v2042
    %v2048 = vmul.f32 1.0, %v2047
    %v2049 = vmul.f32 %v2048, 2.0
    %v2050 = vsub.f32 %v2049, 1.0
    %2052 = vrot.lane.b32.xlu0 %v1959, 64
    %v2053 = vpop.permute.xlu0 %2052
    %v2055 = vmul.f32 %v2033, %v2053
    %v2056 = vmul.f32 %v2033, %v2050
    %2058 = vrot.lane.b32.xlu0 %v2056, 64
    %v2059 = vpop.permute.xlu0 %2058
    %v2061 = vadd.f32 %v2055, %v2059
    %v2062 = vtanh.pop %v2061
    %v2063 = vmul.f32 %v2048, %v2062
    %2065 = vrot.lane.b32.xlu0 %v2063, 64
    %v2066 = vpop.permute.xlu0 %2065
    %v2068 = vsel %vm961, %v2066, 0.0
    %2069 = vst.msk [vmem:[#allocation3 + $0x20] sm:$0xff] %vm257, %v2068
    %2070 = vst.msk [vmem:[#allocation3 + $0x18] sm:$0xff] %vm492, %v2068
    %v2071 = vsel %vm961, %v2066, %v1954
    %2073 = vrot.lane.b32.xlu0 %v2061, 64
    %v2074 = vpop.permute.xlu0 %2073
    %v2076 = vsel %vm961, %v2074, %v1959
    %v2077 = vld [vmem:[#allocation4 + $0x50] sm:$0xff]
    %v2078 = vld [vmem:[#allocation4 + $0x58] sm:$0xff]
    %v2079 = vld [vmem:[#allocation4 + $0x20] sm:$0xff]
    %v2080 = vld [vmem:[#allocation4 + $0x28] sm:$0xff]
    %v2081 = vsel %vm225, %v2077, %v2079
    %v2082 = vsel %vm226, %v2078, %v2080
    %v2084 = vsel %vm386, %v2071, 0
    %2086 = vmatpush.msra.mxu0 0.0
    %2087 = vmatpush.msra.mxu0 0.0
    %2088 = vmatpush.msra.mxu0 0.0
    %2089 = vmatpush.msra.mxu0 0.0
    %2090 = vmatpush.msra.mxu0 0.0
    %2091 = vmatpush.msra.mxu0 0.0
    %2092 = vmatpush.msra.mxu0 0.0
    %2093 = vmatpush.msra.mxu0 0.0
    %2094 = vmatpush.msra.mxu0 %v1354
    %2095 = vmatpush.msra.mxu0 %v1352
    %2096 = vmatpush.msra.mxu0 %v1350
    %2097 = vmatpush.msra.mxu0 %v1348
    %2098 = vmatpush.msra.mxu0 %v1346
    %2099 = vmatpush.msra.mxu0 %v1344
    %2100 = vmatpush.msra.mxu0 %v1342
    %2101 = vmatpush.msra.mxu0 %v1340
    %2102 = vmatmul.f32.gmra.mxu0 %v2084
    %v2103 = vpop.f32.mrf.mxu0
    %v2104 = vadd.f32 0.0, %v2103
    %2105 = vdwg.mxu0
    %2106 = vmatpush.msra.mxu0 0.0
    %2107 = vmatpush.msra.mxu0 0.0
    %2108 = vmatpush.msra.mxu0 0.0
    %2109 = vmatpush.msra.mxu0 0.0
    %2110 = vmatpush.msra.mxu0 0.0
    %2111 = vmatpush.msra.mxu0 0.0
    %2112 = vmatpush.msra.mxu0 0.0
    %2113 = vmatpush.msra.mxu0 0.0
    %2114 = vmatpush.msra.mxu0 %v1355
    %2115 = vmatpush.msra.mxu0 %v1353
    %2116 = vmatpush.msra.mxu0 %v1351
    %2117 = vmatpush.msra.mxu0 %v1349
    %2118 = vmatpush.msra.mxu0 %v1347
    %2119 = vmatpush.msra.mxu0 %v1345
    %2120 = vmatpush.msra.mxu0 %v1343
    %2121 = vmatpush.msra.mxu0 %v1341
    %2122 = vmatmul.f32.gmra.mxu0 %v2084
    %v2123 = vpop.f32.mrf.mxu0
    %v2124 = vadd.f32 0.0, %v2123
    %2125 = vdwg.mxu0
    %v2126 = vadd.f32 %v2081, %v2104
    %v2127 = vadd.f32 %v2082, %v2124
    %v2128 = vxor.u32 %v2126, 2147483648
    %v2129 = vxor.u32 %v2127, 2147483648
    %v2130 = vmul.f32 %v2128, 1.442695
    %v2131 = vpow.pop %v2130
    %v2132 = vmul.f32 %v2129, 1.442695
    %v2133 = vpow.pop %v2132
    %v2134 = vadd.f32 %v2131, 1.0
    %v2135 = vadd.f32 %v2133, 1.0
    %v2136 = vrcp.pop %v2134
    %v2137 = vmul.f32 %v2134, %v2136
    %v2138 = vsub.f32 1.0, %v2137
    %v2139 = vmul.f32 %v2136, %v2138
    %v2140 = vadd.f32 %v2136, %v2139
    %vm2141 = vweird.f32 %v2134
    %vm2142 = vweird.f32 %v2136
    %vm2143 = vmor %vm2141, %vm2142
    %v2144 = vsel %vm2143, %v2136, %v2140
    %v2145 = vand.u32 2147483647, %v2134
    %vm2146 = vcmp.eq.f32.partialorder %v2145, 8.507059e+37
    %v2147 = vand.u32 %v2134, 2147483648
    %v2148 = vor.u32 1.1754944e-38, %v2147
    %v2149 = vsel %vm2146, %v2148, %v2144
    %v2150 = vmul.f32 1.0, %v2149
    %v2151 = vrcp.pop %v2135
    %v2152 = vmul.f32 %v2135, %v2151
    %v2153 = vsub.f32 1.0, %v2152
    %v2154 = vmul.f32 %v2151, %v2153
    %v2155 = vadd.f32 %v2151, %v2154
    %vm2156 = vweird.f32 %v2135
    %vm2157 = vweird.f32 %v2151
    %vm2158 = vmor %vm2156, %vm2157
    %v2159 = vsel %vm2158, %v2151, %v2155
    %v2160 = vand.u32 2147483647, %v2135
    %vm2161 = vcmp.eq.f32.partialorder %v2160, 8.507059e+37
    %v2162 = vand.u32 %v2135, 2147483648
    %v2163 = vor.u32 1.1754944e-38, %v2162
    %v2164 = vsel %vm2161, %v2163, %v2159
    %v2165 = vmul.f32 1.0, %v2164
    %v2166 = vmul.f32 %v2165, 2.0
    %v2167 = vsub.f32 %v2166, 1.0
    %2169 = vrot.lane.b32.xlu0 %v2076, 64
    %v2170 = vpop.permute.xlu0 %2169
    %v2172 = vmul.f32 %v2150, %v2170
    %v2173 = vmul.f32 %v2150, %v2167
    %2175 = vrot.lane.b32.xlu0 %v2173, 64
    %v2176 = vpop.permute.xlu0 %2175
    %v2178 = vadd.f32 %v2172, %v2176
    %v2179 = vtanh.pop %v2178
    %v2180 = vmul.f32 %v2165, %v2179
    %2182 = vrot.lane.b32.xlu0 %v2180, 64
    %v2183 = vpop.permute.xlu0 %2182
    %v2185 = vsel %vm1080, %v2183, 0.0
    %2186 = vst.msk [vmem:[#allocation3 + $0x28] sm:$0xff] %vm257, %v2185
    %2187 = vst.msk [vmem:[#allocation3 + $0x10] sm:$0xff] %vm492, %v2185
    %v2188 = vsel %vm1080, %v2183, %v2071
    %2190 = vrot.lane.b32.xlu0 %v2178, 64
    %v2191 = vpop.permute.xlu0 %2190
    %v2193 = vsel %vm1080, %v2191, %v2076
    %v2194 = vld [vmem:[#allocation4 + $0x60] sm:$0xff]
    %v2195 = vld [vmem:[#allocation4 + $0x68] sm:$0xff]
    %v2196 = vld [vmem:[#allocation4 + $0x10] sm:$0xff]
    %v2197 = vld [vmem:[#allocation4 + $0x18] sm:$0xff]
    %v2198 = vsel %vm225, %v2194, %v2196
    %v2199 = vsel %vm226, %v2195, %v2197
    %v2201 = vsel %vm386, %v2188, 0
    %2203 = vmatpush.msra.mxu0 0.0
    %2204 = vmatpush.msra.mxu0 0.0
    %2205 = vmatpush.msra.mxu0 0.0
    %2206 = vmatpush.msra.mxu0 0.0
    %2207 = vmatpush.msra.mxu0 0.0
    %2208 = vmatpush.msra.mxu0 0.0
    %2209 = vmatpush.msra.mxu0 0.0
    %2210 = vmatpush.msra.mxu0 0.0
    %2211 = vmatpush.msra.mxu0 %v1354
    %2212 = vmatpush.msra.mxu0 %v1352
    %2213 = vmatpush.msra.mxu0 %v1350
    %2214 = vmatpush.msra.mxu0 %v1348
    %2215 = vmatpush.msra.mxu0 %v1346
    %2216 = vmatpush.msra.mxu0 %v1344
    %2217 = vmatpush.msra.mxu0 %v1342
    %2218 = vmatpush.msra.mxu0 %v1340
    %2219 = vmatmul.f32.gmra.mxu0 %v2201
    %v2220 = vpop.f32.mrf.mxu0
    %v2221 = vadd.f32 0.0, %v2220
    %2222 = vdwg.mxu0
    %2223 = vmatpush.msra.mxu0 0.0
    %2224 = vmatpush.msra.mxu0 0.0
    %2225 = vmatpush.msra.mxu0 0.0
    %2226 = vmatpush.msra.mxu0 0.0
    %2227 = vmatpush.msra.mxu0 0.0
    %2228 = vmatpush.msra.mxu0 0.0
    %2229 = vmatpush.msra.mxu0 0.0
    %2230 = vmatpush.msra.mxu0 0.0
    %2231 = vmatpush.msra.mxu0 %v1355
    %2232 = vmatpush.msra.mxu0 %v1353
    %2233 = vmatpush.msra.mxu0 %v1351
    %2234 = vmatpush.msra.mxu0 %v1349
    %2235 = vmatpush.msra.mxu0 %v1347
    %2236 = vmatpush.msra.mxu0 %v1345
    %2237 = vmatpush.msra.mxu0 %v1343
    %2238 = vmatpush.msra.mxu0 %v1341
    %2239 = vmatmul.f32.gmra.mxu0 %v2201
    %v2240 = vpop.f32.mrf.mxu0
    %v2241 = vadd.f32 0.0, %v2240
    %2242 = vdwg.mxu0
    %v2243 = vadd.f32 %v2198, %v2221
    %v2244 = vadd.f32 %v2199, %v2241
    %v2245 = vxor.u32 %v2243, 2147483648
    %v2246 = vxor.u32 %v2244, 2147483648
    %v2247 = vmul.f32 %v2245, 1.442695
    %v2248 = vpow.pop %v2247
    %v2249 = vmul.f32 %v2246, 1.442695
    %v2250 = vpow.pop %v2249
    %v2251 = vadd.f32 %v2248, 1.0
    %v2252 = vadd.f32 %v2250, 1.0
    %v2253 = vrcp.pop %v2251
    %v2254 = vmul.f32 %v2251, %v2253
    %v2255 = vsub.f32 1.0, %v2254
    %v2256 = vmul.f32 %v2253, %v2255
    %v2257 = vadd.f32 %v2253, %v2256
    %vm2258 = vweird.f32 %v2251
    %vm2259 = vweird.f32 %v2253
    %vm2260 = vmor %vm2258, %vm2259
    %v2261 = vsel %vm2260, %v2253, %v2257
    %v2262 = vand.u32 2147483647, %v2251
    %vm2263 = vcmp.eq.f32.partialorder %v2262, 8.507059e+37
    %v2264 = vand.u32 %v2251, 2147483648
    %v2265 = vor.u32 1.1754944e-38, %v2264
    %v2266 = vsel %vm2263, %v2265, %v2261
    %v2267 = vmul.f32 1.0, %v2266
    %v2268 = vrcp.pop %v2252
    %v2269 = vmul.f32 %v2252, %v2268
    %v2270 = vsub.f32 1.0, %v2269
    %v2271 = vmul.f32 %v2268, %v2270
    %v2272 = vadd.f32 %v2268, %v2271
    %vm2273 = vweird.f32 %v2252
    %vm2274 = vweird.f32 %v2268
    %vm2275 = vmor %vm2273, %vm2274
    %v2276 = vsel %vm2275, %v2268, %v2272
    %v2277 = vand.u32 2147483647, %v2252
    %vm2278 = vcmp.eq.f32.partialorder %v2277, 8.507059e+37
    %v2279 = vand.u32 %v2252, 2147483648
    %v2280 = vor.u32 1.1754944e-38, %v2279
    %v2281 = vsel %vm2278, %v2280, %v2276
    %v2282 = vmul.f32 1.0, %v2281
    %v2283 = vmul.f32 %v2282, 2.0
    %v2284 = vsub.f32 %v2283, 1.0
    %2286 = vrot.lane.b32.xlu0 %v2193, 64
    %v2287 = vpop.permute.xlu0 %2286
    %v2289 = vmul.f32 %v2267, %v2287
    %v2290 = vmul.f32 %v2267, %v2284
    %2292 = vrot.lane.b32.xlu0 %v2290, 64
    %v2293 = vpop.permute.xlu0 %2292
    %v2295 = vadd.f32 %v2289, %v2293
    %v2296 = vtanh.pop %v2295
    %v2297 = vmul.f32 %v2282, %v2296
    %2299 = vrot.lane.b32.xlu0 %v2297, 64
    %v2300 = vpop.permute.xlu0 %2299
    %v2302 = vsel %vm1199, %v2300, 0.0
    %2303 = vst.msk [vmem:[#allocation3 + $0x30] sm:$0xff] %vm257, %v2302
    %2304 = vst.msk [vmem:[#allocation3 + $0x8] sm:$0xff] %vm492, %v2302
    %v2305 = vsel %vm1199, %v2300, %v2188
    %2307 = vrot.lane.b32.xlu0 %v2295, 64
    %v2308 = vpop.permute.xlu0 %2307
    %v2310 = vsel %vm1199, %v2308, %v2193
    %v2311 = vld [vmem:[#allocation4 + $0x70] sm:$0xff]
    %v2312 = vld [vmem:[#allocation4 + $0x78] sm:$0xff]
    %v2313 = vld [vmem:[#allocation4] sm:$0xff]
    %v2314 = vld [vmem:[#allocation4 + $0x8] sm:$0xff]
    %v2315 = vsel %vm225, %v2311, %v2313
    %v2316 = vsel %vm226, %v2312, %v2314
    %v2318 = vsel %vm386, %v2305, 0
    %2320 = vmatpush.msra.mxu0 0.0
    %2321 = vmatpush.msra.mxu0 0.0
    %2322 = vmatpush.msra.mxu0 0.0
    %2323 = vmatpush.msra.mxu0 0.0
    %2324 = vmatpush.msra.mxu0 0.0
    %2325 = vmatpush.msra.mxu0 0.0
    %2326 = vmatpush.msra.mxu0 0.0
    %2327 = vmatpush.msra.mxu0 0.0
    %2328 = vmatpush.msra.mxu0 %v1354
    %2329 = vmatpush.msra.mxu0 %v1352
    %2330 = vmatpush.msra.mxu0 %v1350
    %2331 = vmatpush.msra.mxu0 %v1348
    %2332 = vmatpush.msra.mxu0 %v1346
    %2333 = vmatpush.msra.mxu0 %v1344
    %2334 = vmatpush.msra.mxu0 %v1342
    %2335 = vmatpush.msra.mxu0 %v1340
    %2336 = vmatmul.f32.gmra.mxu0 %v2318
    %v2337 = vpop.f32.mrf.mxu0
    %v2338 = vadd.f32 0.0, %v2337
    %2339 = vdwg.mxu0
    %2340 = vmatpush.msra.mxu0 0.0
    %2341 = vmatpush.msra.mxu0 0.0
    %2342 = vmatpush.msra.mxu0 0.0
    %2343 = vmatpush.msra.mxu0 0.0
    %2344 = vmatpush.msra.mxu0 0.0
    %2345 = vmatpush.msra.mxu0 0.0
    %2346 = vmatpush.msra.mxu0 0.0
    %2347 = vmatpush.msra.mxu0 0.0
    %2348 = vmatpush.msra.mxu0 %v1355
    %2349 = vmatpush.msra.mxu0 %v1353
    %2350 = vmatpush.msra.mxu0 %v1351
    %2351 = vmatpush.msra.mxu0 %v1349
    %2352 = vmatpush.msra.mxu0 %v1347
    %2353 = vmatpush.msra.mxu0 %v1345
    %2354 = vmatpush.msra.mxu0 %v1343
    %2355 = vmatpush.msra.mxu0 %v1341
    %2356 = vmatmul.f32.gmra.mxu0 %v2318
    %v2357 = vpop.f32.mrf.mxu0
    %v2358 = vadd.f32 0.0, %v2357
    %2359 = vdwg.mxu0
    %v2360 = vadd.f32 %v2315, %v2338
    %v2361 = vadd.f32 %v2316, %v2358
    %v2362 = vxor.u32 %v2360, 2147483648
    %v2363 = vxor.u32 %v2361, 2147483648
    %v2364 = vmul.f32 %v2362, 1.442695
    %v2365 = vpow.pop %v2364
    %v2366 = vmul.f32 %v2363, 1.442695
    %v2367 = vpow.pop %v2366
    %v2368 = vadd.f32 %v2365, 1.0
    %v2369 = vadd.f32 %v2367, 1.0
    %v2370 = vrcp.pop %v2368
    %v2371 = vmul.f32 %v2368, %v2370
    %v2372 = vsub.f32 1.0, %v2371
    %v2373 = vmul.f32 %v2370, %v2372
    %v2374 = vadd.f32 %v2370, %v2373
    %vm2375 = vweird.f32 %v2368
    %vm2376 = vweird.f32 %v2370
    %vm2377 = vmor %vm2375, %vm2376
    %v2378 = vsel %vm2377, %v2370, %v2374
    %v2379 = vand.u32 2147483647, %v2368
    %vm2380 = vcmp.eq.f32.partialorder %v2379, 8.507059e+37
    %v2381 = vand.u32 %v2368, 2147483648
    %v2382 = vor.u32 1.1754944e-38, %v2381
    %v2383 = vsel %vm2380, %v2382, %v2378
    %v2384 = vmul.f32 1.0, %v2383
    %v2385 = vrcp.pop %v2369
    %v2386 = vmul.f32 %v2369, %v2385
    %v2387 = vsub.f32 1.0, %v2386
    %v2388 = vmul.f32 %v2385, %v2387
    %v2389 = vadd.f32 %v2385, %v2388
    %vm2390 = vweird.f32 %v2369
    %vm2391 = vweird.f32 %v2385
    %vm2392 = vmor %vm2390, %vm2391
    %v2393 = vsel %vm2392, %v2385, %v2389
    %v2394 = vand.u32 2147483647, %v2369
    %vm2395 = vcmp.eq.f32.partialorder %v2394, 8.507059e+37
    %v2396 = vand.u32 %v2369, 2147483648
    %v2397 = vor.u32 1.1754944e-38, %v2396
    %v2398 = vsel %vm2395, %v2397, %v2393
    %v2399 = vmul.f32 1.0, %v2398
    %v2400 = vmul.f32 %v2399, 2.0
    %v2401 = vsub.f32 %v2400, 1.0
    %2403 = vrot.lane.b32.xlu0 %v2310, 64
    %v2404 = vpop.permute.xlu0 %2403
    %v2406 = vmul.f32 %v2384, %v2404
    %v2407 = vmul.f32 %v2384, %v2401
    %2409 = vrot.lane.b32.xlu0 %v2407, 64
    %v2410 = vpop.permute.xlu0 %2409
    %v2412 = vadd.f32 %v2406, %v2410
    %v2413 = vtanh.pop %v2412
    %v2414 = vmul.f32 %v2399, %v2413
    %2416 = vrot.lane.b32.xlu0 %v2414, 64
    %v2417 = vpop.permute.xlu0 %2416
    %v2419 = vsel %vm1318, %v2417, 0.0
    %2420 = vst.msk [vmem:[#allocation3 + $0x38] sm:$0xff] %vm257, %v2419
    %2421 = vst.msk [vmem:[#allocation3] sm:$0xff] %vm492, %v2419
    %2423 = vrot.lane.b32.xlu0 %v2412, 64
    %v2424 = vpop.permute.xlu0 %2423
    %v2426 = vsel %vm1318, %v2424, %v2310
    %2428 = vrot.lane.b32.xlu0 %v2426, 64
    %v2429 = vpop.permute.xlu0 %2428
    %vm2431 = vcmask 1048064
    %2432 = vst.msk [vmem:[#allocation5] sm:$0xff] %vm2431, %v2429
    %v2433 = vld [vmem:[#allocation3] sm:$0xff]
    %v2434 = vld [vmem:[#allocation3 + $0x8] sm:$0xff]
    %v2435 = vld [vmem:[#allocation3 + $0x10] sm:$0xff]
    %v2436 = vld [vmem:[#allocation3 + $0x18] sm:$0xff]
    %v2437 = vld [vmem:[#allocation3 + $0x20] sm:$0xff]
    %v2438 = vld [vmem:[#allocation3 + $0x28] sm:$0xff]
    %v2439 = vld [vmem:[#allocation3 + $0x30] sm:$0xff]
    %v2440 = vld [vmem:[#allocation3 + $0x38] sm:$0xff]
    %v2441 = vld [vmem:[#allocation8] sm:$0xff]
    %v2442 = vld [vmem:[#allocation8 + $0x8] sm:$0xff]
    %v2443 = vld [vmem:[#allocation8 + $0x10] sm:$0xff]
    %v2444 = vld [vmem:[#allocation8 + $0x18] sm:$0xff]
    %v2445 = vld [vmem:[#allocation8 + $0x20] sm:$0xff]
    %v2446 = vld [vmem:[#allocation8 + $0x28] sm:$0xff]
    %v2447 = vld [vmem:[#allocation8 + $0x30] sm:$0xff]
    %v2448 = vld [vmem:[#allocation8 + $0x38] sm:$0xff]
    %v2449 = vld [vmem:[#allocation8 + $0x40] sm:$0xff]
    %v2450 = vld [vmem:[#allocation8 + $0x48] sm:$0xff]
    %v2451 = vld [vmem:[#allocation8 + $0x50] sm:$0xff]
    %v2452 = vld [vmem:[#allocation8 + $0x58] sm:$0xff]
    %v2453 = vld [vmem:[#allocation8 + $0x60] sm:$0xff]
    %v2454 = vld [vmem:[#allocation8 + $0x68] sm:$0xff]
    %v2455 = vld [vmem:[#allocation8 + $0x70] sm:$0xff]
    %v2456 = vld [vmem:[#allocation8 + $0x78] sm:$0xff]
    %v2457 = vld [vmem:[%s9] sm:$0xff]
    %v2458 = vld [vmem:[%s9 + $0x8] sm:$0xff]
    %v2459 = vld [vmem:[%s9 + $0x10] sm:$0xff]
    %v2460 = vld [vmem:[%s9 + $0x18] sm:$0xff]
    %v2461 = vld [vmem:[%s9 + $0x20] sm:$0xff]
    %v2462 = vld [vmem:[%s9 + $0x28] sm:$0xff]
    %v2463 = vld [vmem:[%s9 + $0x30] sm:$0xff]
    %v2464 = vld [vmem:[%s9 + $0x38] sm:$0xff]
    %v2465 = vld [vmem:[%s9 + $0x40] sm:$0xff]
    %v2466 = vld [vmem:[%s9 + $0x48] sm:$0xff]
    %v2467 = vld [vmem:[%s9 + $0x50] sm:$0xff]
    %v2468 = vld [vmem:[%s9 + $0x58] sm:$0xff]
    %v2469 = vld [vmem:[%s9 + $0x60] sm:$0xff]
    %v2470 = vld [vmem:[%s9 + $0x68] sm:$0xff]
    %v2471 = vld [vmem:[%s9 + $0x70] sm:$0xff]
    %v2472 = vld [vmem:[%s9 + $0x78] sm:$0xff]
    %v2473 = vld [vmem:[%s11] sm:$0x3]
    %v2475 = vperm.slane %v2473, 0
    %v2476 = vperm.slane %v2473, 1
    %v2480 = vsel %vm386, %v2433, 0
    %v2483 = vsel %vm386, %v2434, 0
    %v2486 = vsel %vm386, %v2435, 0
    %v2489 = vsel %vm386, %v2436, 0
    %v2492 = vsel %vm386, %v2437, 0
    %v2495 = vsel %vm386, %v2438, 0
    %v2498 = vsel %vm386, %v2439, 0
    %v2501 = vsel %vm386, %v2440, 0
    %2503 = vmatpush.msra.mxu0 0.0
    %2504 = vmatpush.msra.mxu0 0.0
    %2505 = vmatpush.msra.mxu0 0.0
    %2506 = vmatpush.msra.mxu0 0.0
    %2507 = vmatpush.msra.mxu0 0.0
    %2508 = vmatpush.msra.mxu0 0.0
    %2509 = vmatpush.msra.mxu0 0.0
    %2510 = vmatpush.msra.mxu0 0.0
    %2511 = vmatpush.msra.mxu0 %v2471
    %2512 = vmatpush.msra.mxu0 %v2469
    %2513 = vmatpush.msra.mxu0 %v2467
    %2514 = vmatpush.msra.mxu0 %v2465
    %2515 = vmatpush.msra.mxu0 %v2463
    %2516 = vmatpush.msra.mxu0 %v2461
    %2517 = vmatpush.msra.mxu0 %v2459
    %2518 = vmatpush.msra.mxu0 %v2457
    %2519 = vmatmul.f32.gmra.mxu0 %v2480
    %v2520 = vpop.f32.mrf.mxu0
    %v2521 = vadd.f32 %v2475, %v2520
    %2522 = vmatmul.f32.gmra.mxu0 %v2483
    %v2523 = vpop.f32.mrf.mxu0
    %v2524 = vadd.f32 %v2475, %v2523
    %2525 = vmatmul.f32.gmra.mxu0 %v2486
    %v2526 = vpop.f32.mrf.mxu0
    %v2527 = vadd.f32 %v2475, %v2526
    %2528 = vmatmul.f32.gmra.mxu0 %v2489
    %v2529 = vpop.f32.mrf.mxu0
    %v2530 = vadd.f32 %v2475, %v2529
    %2531 = vmatmul.f32.gmra.mxu0 %v2492
    %v2532 = vpop.f32.mrf.mxu0
    %v2533 = vadd.f32 %v2475, %v2532
    %2534 = vmatmul.f32.gmra.mxu0 %v2495
    %v2535 = vpop.f32.mrf.mxu0
    %v2536 = vadd.f32 %v2475, %v2535
    %2537 = vmatmul.f32.gmra.mxu0 %v2498
    %v2538 = vpop.f32.mrf.mxu0
    %v2539 = vadd.f32 %v2475, %v2538
    %2540 = vmatmul.f32.gmra.mxu0 %v2501
    %v2541 = vpop.f32.mrf.mxu0
    %v2542 = vadd.f32 %v2475, %v2541
    %2543 = vdwg.mxu0
    %2544 = vmatpush.msra.mxu0 0.0
    %2545 = vmatpush.msra.mxu0 0.0
    %2546 = vmatpush.msra.mxu0 0.0
    %2547 = vmatpush.msra.mxu0 0.0
    %2548 = vmatpush.msra.mxu0 0.0
    %2549 = vmatpush.msra.mxu0 0.0
    %2550 = vmatpush.msra.mxu0 0.0
    %2551 = vmatpush.msra.mxu0 0.0
    %2552 = vmatpush.msra.mxu0 %v2472
    %2553 = vmatpush.msra.mxu0 %v2470
    %2554 = vmatpush.msra.mxu0 %v2468
    %2555 = vmatpush.msra.mxu0 %v2466
    %2556 = vmatpush.msra.mxu0 %v2464
    %2557 = vmatpush.msra.mxu0 %v2462
    %2558 = vmatpush.msra.mxu0 %v2460
    %2559 = vmatpush.msra.mxu0 %v2458
    %2560 = vmatmul.f32.gmra.mxu0 %v2480
    %v2561 = vpop.f32.mrf.mxu0
    %v2562 = vadd.f32 %v2476, %v2561
    %2563 = vmatmul.f32.gmra.mxu0 %v2483
    %v2564 = vpop.f32.mrf.mxu0
    %v2565 = vadd.f32 %v2476, %v2564
    %2566 = vmatmul.f32.gmra.mxu0 %v2486
    %v2567 = vpop.f32.mrf.mxu0
    %v2568 = vadd.f32 %v2476, %v2567
    %2569 = vmatmul.f32.gmra.mxu0 %v2489
    %v2570 = vpop.f32.mrf.mxu0
    %v2571 = vadd.f32 %v2476, %v2570
    %2572 = vmatmul.f32.gmra.mxu0 %v2492
    %v2573 = vpop.f32.mrf.mxu0
    %v2574 = vadd.f32 %v2476, %v2573
    %2575 = vmatmul.f32.gmra.mxu0 %v2495
    %v2576 = vpop.f32.mrf.mxu0
    %v2577 = vadd.f32 %v2476, %v2576
    %2578 = vmatmul.f32.gmra.mxu0 %v2498
    %v2579 = vpop.f32.mrf.mxu0
    %v2580 = vadd.f32 %v2476, %v2579
    %2581 = vmatmul.f32.gmra.mxu0 %v2501
    %v2582 = vpop.f32.mrf.mxu0
    %v2583 = vadd.f32 %v2476, %v2582
    %2584 = vdwg.mxu0
    %2585 = vst [vmem:[#allocation4] sm:$0xff] %v2521
    %2586 = vst [vmem:[#allocation4 + $0x8] sm:$0xff] %v2562
    %2587 = vst [vmem:[#allocation4 + $0x10] sm:$0xff] %v2524
    %2588 = vst [vmem:[#allocation4 + $0x18] sm:$0xff] %v2565
    %2589 = vst [vmem:[#allocation4 + $0x20] sm:$0xff] %v2527
    %2590 = vst [vmem:[#allocation4 + $0x28] sm:$0xff] %v2568
    %2591 = vst [vmem:[#allocation4 + $0x30] sm:$0xff] %v2530
    %2592 = vst [vmem:[#allocation4 + $0x38] sm:$0xff] %v2571
    %2593 = vst [vmem:[#allocation4 + $0x40] sm:$0xff] %v2533
    %2594 = vst [vmem:[#allocation4 + $0x48] sm:$0xff] %v2574
    %2595 = vst [vmem:[#allocation4 + $0x50] sm:$0xff] %v2536
    %2596 = vst [vmem:[#allocation4 + $0x58] sm:$0xff] %v2577
    %2597 = vst [vmem:[#allocation4 + $0x60] sm:$0xff] %v2539
    %2598 = vst [vmem:[#allocation4 + $0x68] sm:$0xff] %v2580
    %2599 = vst [vmem:[#allocation4 + $0x70] sm:$0xff] %v2542
    %2600 = vst [vmem:[#allocation4 + $0x78] sm:$0xff] %v2583
    %v2601 = vld [vmem:[#allocation4] sm:$0xff]
    %v2602 = vld [vmem:[#allocation4 + $0x8] sm:$0xff]
    %v2603 = vld [vmem:[#allocation4 + $0x70] sm:$0xff]
    %v2604 = vld [vmem:[#allocation4 + $0x78] sm:$0xff]
    %v2605 = vsel %vm225, %v2601, %v2603
    %v2606 = vsel %vm226, %v2602, %v2604
    %2607 = vmatpush.msra.mxu0 0.0
    %2608 = vmatpush.msra.mxu0 0.0
    %2609 = vmatpush.msra.mxu0 0.0
    %2610 = vmatpush.msra.mxu0 0.0
    %2611 = vmatpush.msra.mxu0 0.0
    %2612 = vmatpush.msra.mxu0 0.0
    %2613 = vmatpush.msra.mxu0 0.0
    %2614 = vmatpush.msra.mxu0 0.0
    %2615 = vmatpush.msra.mxu0 %v2455
    %2616 = vmatpush.msra.mxu0 %v2453
    %2617 = vmatpush.msra.mxu0 %v2451
    %2618 = vmatpush.msra.mxu0 %v2449
    %2619 = vmatpush.msra.mxu0 %v2447
    %2620 = vmatpush.msra.mxu0 %v2445
    %2621 = vmatpush.msra.mxu0 %v2443
    %2622 = vmatpush.msra.mxu0 %v2441
    %2623 = vmatmul.f32.gmra.mxu0 %v388
    %v2624 = vpop.f32.mrf.mxu0
    %v2625 = vadd.f32 0.0, %v2624
    %2626 = vdwg.mxu0
    %2627 = vmatpush.msra.mxu0 0.0
    %2628 = vmatpush.msra.mxu0 0.0
    %2629 = vmatpush.msra.mxu0 0.0
    %2630 = vmatpush.msra.mxu0 0.0
    %2631 = vmatpush.msra.mxu0 0.0
    %2632 = vmatpush.msra.mxu0 0.0
    %2633 = vmatpush.msra.mxu0 0.0
    %2634 = vmatpush.msra.mxu0 0.0
    %2635 = vmatpush.msra.mxu0 %v2456
    %2636 = vmatpush.msra.mxu0 %v2454
    %2637 = vmatpush.msra.mxu0 %v2452
    %2638 = vmatpush.msra.mxu0 %v2450
    %2639 = vmatpush.msra.mxu0 %v2448
    %2640 = vmatpush.msra.mxu0 %v2446
    %2641 = vmatpush.msra.mxu0 %v2444
    %2642 = vmatpush.msra.mxu0 %v2442
    %2643 = vmatmul.f32.gmra.mxu0 %v388
    %v2644 = vpop.f32.mrf.mxu0
    %v2645 = vadd.f32 0.0, %v2644
    %2646 = vdwg.mxu0
    %v2647 = vadd.f32 %v2605, %v2625
    %v2648 = vadd.f32 %v2606, %v2645
    %v2649 = vxor.u32 %v2647, 2147483648
    %v2650 = vxor.u32 %v2648, 2147483648
    %v2651 = vmul.f32 %v2649, 1.442695
    %v2652 = vpow.pop %v2651
    %v2653 = vmul.f32 %v2650, 1.442695
    %v2654 = vpow.pop %v2653
    %v2655 = vadd.f32 %v2652, 1.0
    %v2656 = vadd.f32 %v2654, 1.0
    %v2657 = vrcp.pop %v2655
    %v2658 = vmul.f32 %v2655, %v2657
    %v2659 = vsub.f32 1.0, %v2658
    %v2660 = vmul.f32 %v2657, %v2659
    %v2661 = vadd.f32 %v2657, %v2660
    %vm2662 = vweird.f32 %v2655
    %vm2663 = vweird.f32 %v2657
    %vm2664 = vmor %vm2662, %vm2663
    %v2665 = vsel %vm2664, %v2657, %v2661
    %v2666 = vand.u32 2147483647, %v2655
    %vm2667 = vcmp.eq.f32.partialorder %v2666, 8.507059e+37
    %v2668 = vand.u32 %v2655, 2147483648
    %v2669 = vor.u32 1.1754944e-38, %v2668
    %v2670 = vsel %vm2667, %v2669, %v2665
    %v2671 = vmul.f32 1.0, %v2670
    %v2672 = vrcp.pop %v2656
    %v2673 = vmul.f32 %v2656, %v2672
    %v2674 = vsub.f32 1.0, %v2673
    %v2675 = vmul.f32 %v2672, %v2674
    %v2676 = vadd.f32 %v2672, %v2675
    %vm2677 = vweird.f32 %v2656
    %vm2678 = vweird.f32 %v2672
    %vm2679 = vmor %vm2677, %vm2678
    %v2680 = vsel %vm2679, %v2672, %v2676
    %v2681 = vand.u32 2147483647, %v2656
    %vm2682 = vcmp.eq.f32.partialorder %v2681, 8.507059e+37
    %v2683 = vand.u32 %v2656, 2147483648
    %v2684 = vor.u32 1.1754944e-38, %v2683
    %v2685 = vsel %vm2682, %v2684, %v2680
    %v2686 = vmul.f32 1.0, %v2685
    %v2687 = vmul.f32 %v2686, 2.0
    %v2688 = vsub.f32 %v2687, 1.0
    %v2689 = vmul.f32 %v2671, 0.0
    %v2690 = vmul.f32 %v2671, %v2688
    %2692 = vrot.lane.b32.xlu0 %v2690, 64
    %v2693 = vpop.permute.xlu0 %2692
    %v2695 = vadd.f32 %v2689, %v2693
    %v2696 = vtanh.pop %v2695
    %v2697 = vmul.f32 %v2686, %v2696
    %2699 = vrot.lane.b32.xlu0 %v2697, 64
    %v2700 = vpop.permute.xlu0 %2699
    %v2702 = vsel %vm485, %v2700, 0.0
    %2703 = vst.msk [vmem:[#allocation2] sm:$0xff] %vm257, %v2702
    %2704 = vst.msk [vmem:[#allocation2 + $0x38] sm:$0xff] %vm492, %v2702
    %2706 = vrot.lane.b32.xlu0 %v2695, 64
    %v2707 = vpop.permute.xlu0 %2706
    %v2709 = vsel %vm485, %v2707, 0.0
    %v2710 = vld [vmem:[#allocation4 + $0x10] sm:$0xff]
    %v2711 = vld [vmem:[#allocation4 + $0x18] sm:$0xff]
    %v2712 = vld [vmem:[#allocation4 + $0x60] sm:$0xff]
    %v2713 = vld [vmem:[#allocation4 + $0x68] sm:$0xff]
    %v2714 = vsel %vm225, %v2710, %v2712
    %v2715 = vsel %vm226, %v2711, %v2713
    %v2717 = vsel %vm386, %v2702, 0
    %2719 = vmatpush.msra.mxu0 0.0
    %2720 = vmatpush.msra.mxu0 0.0
    %2721 = vmatpush.msra.mxu0 0.0
    %2722 = vmatpush.msra.mxu0 0.0
    %2723 = vmatpush.msra.mxu0 0.0
    %2724 = vmatpush.msra.mxu0 0.0
    %2725 = vmatpush.msra.mxu0 0.0
    %2726 = vmatpush.msra.mxu0 0.0
    %2727 = vmatpush.msra.mxu0 %v2455
    %2728 = vmatpush.msra.mxu0 %v2453
    %2729 = vmatpush.msra.mxu0 %v2451
    %2730 = vmatpush.msra.mxu0 %v2449
    %2731 = vmatpush.msra.mxu0 %v2447
    %2732 = vmatpush.msra.mxu0 %v2445
    %2733 = vmatpush.msra.mxu0 %v2443
    %2734 = vmatpush.msra.mxu0 %v2441
    %2735 = vmatmul.f32.gmra.mxu0 %v2717
    %v2736 = vpop.f32.mrf.mxu0
    %v2737 = vadd.f32 0.0, %v2736
    %2738 = vdwg.mxu0
    %2739 = vmatpush.msra.mxu0 0.0
    %2740 = vmatpush.msra.mxu0 0.0
    %2741 = vmatpush.msra.mxu0 0.0
    %2742 = vmatpush.msra.mxu0 0.0
    %2743 = vmatpush.msra.mxu0 0.0
    %2744 = vmatpush.msra.mxu0 0.0
    %2745 = vmatpush.msra.mxu0 0.0
    %2746 = vmatpush.msra.mxu0 0.0
    %2747 = vmatpush.msra.mxu0 %v2456
    %2748 = vmatpush.msra.mxu0 %v2454
    %2749 = vmatpush.msra.mxu0 %v2452
    %2750 = vmatpush.msra.mxu0 %v2450
    %2751 = vmatpush.msra.mxu0 %v2448
    %2752 = vmatpush.msra.mxu0 %v2446
    %2753 = vmatpush.msra.mxu0 %v2444
    %2754 = vmatpush.msra.mxu0 %v2442
    %2755 = vmatmul.f32.gmra.mxu0 %v2717
    %v2756 = vpop.f32.mrf.mxu0
    %v2757 = vadd.f32 0.0, %v2756
    %2758 = vdwg.mxu0
    %v2759 = vadd.f32 %v2714, %v2737
    %v2760 = vadd.f32 %v2715, %v2757
    %v2761 = vxor.u32 %v2759, 2147483648
    %v2762 = vxor.u32 %v2760, 2147483648
    %v2763 = vmul.f32 %v2761, 1.442695
    %v2764 = vpow.pop %v2763
    %v2765 = vmul.f32 %v2762, 1.442695
    %v2766 = vpow.pop %v2765
    %v2767 = vadd.f32 %v2764, 1.0
    %v2768 = vadd.f32 %v2766, 1.0
    %v2769 = vrcp.pop %v2767
    %v2770 = vmul.f32 %v2767, %v2769
    %v2771 = vsub.f32 1.0, %v2770
    %v2772 = vmul.f32 %v2769, %v2771
    %v2773 = vadd.f32 %v2769, %v2772
    %vm2774 = vweird.f32 %v2767
    %vm2775 = vweird.f32 %v2769
    %vm2776 = vmor %vm2774, %vm2775
    %v2777 = vsel %vm2776, %v2769, %v2773
    %v2778 = vand.u32 2147483647, %v2767
    %vm2779 = vcmp.eq.f32.partialorder %v2778, 8.507059e+37
    %v2780 = vand.u32 %v2767, 2147483648
    %v2781 = vor.u32 1.1754944e-38, %v2780
    %v2782 = vsel %vm2779, %v2781, %v2777
    %v2783 = vmul.f32 1.0, %v2782
    %v2784 = vrcp.pop %v2768
    %v2785 = vmul.f32 %v2768, %v2784
    %v2786 = vsub.f32 1.0, %v2785
    %v2787 = vmul.f32 %v2784, %v2786
    %v2788 = vadd.f32 %v2784, %v2787
    %vm2789 = vweird.f32 %v2768
    %vm2790 = vweird.f32 %v2784
    %vm2791 = vmor %vm2789, %vm2790
    %v2792 = vsel %vm2791, %v2784, %v2788
    %v2793 = vand.u32 2147483647, %v2768
    %vm2794 = vcmp.eq.f32.partialorder %v2793, 8.507059e+37
    %v2795 = vand.u32 %v2768, 2147483648
    %v2796 = vor.u32 1.1754944e-38, %v2795
    %v2797 = vsel %vm2794, %v2796, %v2792
    %v2798 = vmul.f32 1.0, %v2797
    %v2799 = vmul.f32 %v2798, 2.0
    %v2800 = vsub.f32 %v2799, 1.0
    %2802 = vrot.lane.b32.xlu0 %v2709, 64
    %v2803 = vpop.permute.xlu0 %2802
    %v2805 = vmul.f32 %v2783, %v2803
    %v2806 = vmul.f32 %v2783, %v2800
    %2808 = vrot.lane.b32.xlu0 %v2806, 64
    %v2809 = vpop.permute.xlu0 %2808
    %v2811 = vadd.f32 %v2805, %v2809
    %v2812 = vtanh.pop %v2811
    %v2813 = vmul.f32 %v2798, %v2812
    %2815 = vrot.lane.b32.xlu0 %v2813, 64
    %v2816 = vpop.permute.xlu0 %2815
    %v2818 = vsel %vm604, %v2816, 0.0
    %2819 = vst.msk [vmem:[#allocation2 + $0x8] sm:$0xff] %vm257, %v2818
    %2820 = vst.msk [vmem:[#allocation2 + $0x30] sm:$0xff] %vm492, %v2818
    %v2821 = vsel %vm604, %v2816, %v2702
    %2823 = vrot.lane.b32.xlu0 %v2811, 64
    %v2824 = vpop.permute.xlu0 %2823
    %v2826 = vsel %vm604, %v2824, %v2709
    %v2827 = vld [vmem:[#allocation4 + $0x20] sm:$0xff]
    %v2828 = vld [vmem:[#allocation4 + $0x28] sm:$0xff]
    %v2829 = vld [vmem:[#allocation4 + $0x50] sm:$0xff]
    %v2830 = vld [vmem:[#allocation4 + $0x58] sm:$0xff]
    %v2831 = vsel %vm225, %v2827, %v2829
    %v2832 = vsel %vm226, %v2828, %v2830
    %v2834 = vsel %vm386, %v2821, 0
    %2836 = vmatpush.msra.mxu0 0.0
    %2837 = vmatpush.msra.mxu0 0.0
    %2838 = vmatpush.msra.mxu0 0.0
    %2839 = vmatpush.msra.mxu0 0.0
    %2840 = vmatpush.msra.mxu0 0.0
    %2841 = vmatpush.msra.mxu0 0.0
    %2842 = vmatpush.msra.mxu0 0.0
    %2843 = vmatpush.msra.mxu0 0.0
    %2844 = vmatpush.msra.mxu0 %v2455
    %2845 = vmatpush.msra.mxu0 %v2453
    %2846 = vmatpush.msra.mxu0 %v2451
    %2847 = vmatpush.msra.mxu0 %v2449
    %2848 = vmatpush.msra.mxu0 %v2447
    %2849 = vmatpush.msra.mxu0 %v2445
    %2850 = vmatpush.msra.mxu0 %v2443
    %2851 = vmatpush.msra.mxu0 %v2441
    %2852 = vmatmul.f32.gmra.mxu0 %v2834
    %v2853 = vpop.f32.mrf.mxu0
    %v2854 = vadd.f32 0.0, %v2853
    %2855 = vdwg.mxu0
    %2856 = vmatpush.msra.mxu0 0.0
    %2857 = vmatpush.msra.mxu0 0.0
    %2858 = vmatpush.msra.mxu0 0.0
    %2859 = vmatpush.msra.mxu0 0.0
    %2860 = vmatpush.msra.mxu0 0.0
    %2861 = vmatpush.msra.mxu0 0.0
    %2862 = vmatpush.msra.mxu0 0.0
    %2863 = vmatpush.msra.mxu0 0.0
    %2864 = vmatpush.msra.mxu0 %v2456
    %2865 = vmatpush.msra.mxu0 %v2454
    %2866 = vmatpush.msra.mxu0 %v2452
    %2867 = vmatpush.msra.mxu0 %v2450
    %2868 = vmatpush.msra.mxu0 %v2448
    %2869 = vmatpush.msra.mxu0 %v2446
    %2870 = vmatpush.msra.mxu0 %v2444
    %2871 = vmatpush.msra.mxu0 %v2442
    %2872 = vmatmul.f32.gmra.mxu0 %v2834
    %v2873 = vpop.f32.mrf.mxu0
    %v2874 = vadd.f32 0.0, %v2873
    %2875 = vdwg.mxu0
    %v2876 = vadd.f32 %v2831, %v2854
    %v2877 = vadd.f32 %v2832, %v2874
    %v2878 = vxor.u32 %v2876, 2147483648
    %v2879 = vxor.u32 %v2877, 2147483648
    %v2880 = vmul.f32 %v2878, 1.442695
    %v2881 = vpow.pop %v2880
    %v2882 = vmul.f32 %v2879, 1.442695
    %v2883 = vpow.pop %v2882
    %v2884 = vadd.f32 %v2881, 1.0
    %v2885 = vadd.f32 %v2883, 1.0
    %v2886 = vrcp.pop %v2884
    %v2887 = vmul.f32 %v2884, %v2886
    %v2888 = vsub.f32 1.0, %v2887
    %v2889 = vmul.f32 %v2886, %v2888
    %v2890 = vadd.f32 %v2886, %v2889
    %vm2891 = vweird.f32 %v2884
    %vm2892 = vweird.f32 %v2886
    %vm2893 = vmor %vm2891, %vm2892
    %v2894 = vsel %vm2893, %v2886, %v2890
    %v2895 = vand.u32 2147483647, %v2884
    %vm2896 = vcmp.eq.f32.partialorder %v2895, 8.507059e+37
    %v2897 = vand.u32 %v2884, 2147483648
    %v2898 = vor.u32 1.1754944e-38, %v2897
    %v2899 = vsel %vm2896, %v2898, %v2894
    %v2900 = vmul.f32 1.0, %v2899
    %v2901 = vrcp.pop %v2885
    %v2902 = vmul.f32 %v2885, %v2901
    %v2903 = vsub.f32 1.0, %v2902
    %v2904 = vmul.f32 %v2901, %v2903
    %v2905 = vadd.f32 %v2901, %v2904
    %vm2906 = vweird.f32 %v2885
    %vm2907 = vweird.f32 %v2901
    %vm2908 = vmor %vm2906, %vm2907
    %v2909 = vsel %vm2908, %v2901, %v2905
    %v2910 = vand.u32 2147483647, %v2885
    %vm2911 = vcmp.eq.f32.partialorder %v2910, 8.507059e+37
    %v2912 = vand.u32 %v2885, 2147483648
    %v2913 = vor.u32 1.1754944e-38, %v2912
    %v2914 = vsel %vm2911, %v2913, %v2909
    %v2915 = vmul.f32 1.0, %v2914
    %v2916 = vmul.f32 %v2915, 2.0
    %v2917 = vsub.f32 %v2916, 1.0
    %2919 = vrot.lane.b32.xlu0 %v2826, 64
    %v2920 = vpop.permute.xlu0 %2919
    %v2922 = vmul.f32 %v2900, %v2920
    %v2923 = vmul.f32 %v2900, %v2917
    %2925 = vrot.lane.b32.xlu0 %v2923, 64
    %v2926 = vpop.permute.xlu0 %2925
    %v2928 = vadd.f32 %v2922, %v2926
    %v2929 = vtanh.pop %v2928
    %v2930 = vmul.f32 %v2915, %v2929
    %2932 = vrot.lane.b32.xlu0 %v2930, 64
    %v2933 = vpop.permute.xlu0 %2932
    %v2935 = vsel %vm723, %v2933, 0.0
    %2936 = vst.msk [vmem:[#allocation2 + $0x10] sm:$0xff] %vm257, %v2935
    %2937 = vst.msk [vmem:[#allocation2 + $0x28] sm:$0xff] %vm492, %v2935
    %v2938 = vsel %vm723, %v2933, %v2821
    %2940 = vrot.lane.b32.xlu0 %v2928, 64
    %v2941 = vpop.permute.xlu0 %2940
    %v2943 = vsel %vm723, %v2941, %v2826
    %v2944 = vld [vmem:[#allocation4 + $0x30] sm:$0xff]
    %v2945 = vld [vmem:[#allocation4 + $0x38] sm:$0xff]
    %v2946 = vld [vmem:[#allocation4 + $0x40] sm:$0xff]
    %v2947 = vld [vmem:[#allocation4 + $0x48] sm:$0xff]
    %v2948 = vsel %vm225, %v2944, %v2946
    %v2949 = vsel %vm226, %v2945, %v2947
    %v2951 = vsel %vm386, %v2938, 0
    %2953 = vmatpush.msra.mxu0 0.0
    %2954 = vmatpush.msra.mxu0 0.0
    %2955 = vmatpush.msra.mxu0 0.0
    %2956 = vmatpush.msra.mxu0 0.0
    %2957 = vmatpush.msra.mxu0 0.0
    %2958 = vmatpush.msra.mxu0 0.0
    %2959 = vmatpush.msra.mxu0 0.0
    %2960 = vmatpush.msra.mxu0 0.0
    %2961 = vmatpush.msra.mxu0 %v2455
    %2962 = vmatpush.msra.mxu0 %v2453
    %2963 = vmatpush.msra.mxu0 %v2451
    %2964 = vmatpush.msra.mxu0 %v2449
    %2965 = vmatpush.msra.mxu0 %v2447
    %2966 = vmatpush.msra.mxu0 %v2445
    %2967 = vmatpush.msra.mxu0 %v2443
    %2968 = vmatpush.msra.mxu0 %v2441
    %2969 = vmatmul.f32.gmra.mxu0 %v2951
    %v2970 = vpop.f32.mrf.mxu0
    %v2971 = vadd.f32 0.0, %v2970
    %2972 = vdwg.mxu0
    %2973 = vmatpush.msra.mxu0 0.0
    %2974 = vmatpush.msra.mxu0 0.0
    %2975 = vmatpush.msra.mxu0 0.0
    %2976 = vmatpush.msra.mxu0 0.0
    %2977 = vmatpush.msra.mxu0 0.0
    %2978 = vmatpush.msra.mxu0 0.0
    %2979 = vmatpush.msra.mxu0 0.0
    %2980 = vmatpush.msra.mxu0 0.0
    %2981 = vmatpush.msra.mxu0 %v2456
    %2982 = vmatpush.msra.mxu0 %v2454
    %2983 = vmatpush.msra.mxu0 %v2452
    %2984 = vmatpush.msra.mxu0 %v2450
    %2985 = vmatpush.msra.mxu0 %v2448
    %2986 = vmatpush.msra.mxu0 %v2446
    %2987 = vmatpush.msra.mxu0 %v2444
    %2988 = vmatpush.msra.mxu0 %v2442
    %2989 = vmatmul.f32.gmra.mxu0 %v2951
    %v2990 = vpop.f32.mrf.mxu0
    %v2991 = vadd.f32 0.0, %v2990
    %2992 = vdwg.mxu0
    %v2993 = vadd.f32 %v2948, %v2971
    %v2994 = vadd.f32 %v2949, %v2991
    %v2995 = vxor.u32 %v2993, 2147483648
    %v2996 = vxor.u32 %v2994, 2147483648
    %v2997 = vmul.f32 %v2995, 1.442695
    %v2998 = vpow.pop %v2997
    %v2999 = vmul.f32 %v2996, 1.442695
    %v3000 = vpow.pop %v2999
    %v3001 = vadd.f32 %v2998, 1.0
    %v3002 = vadd.f32 %v3000, 1.0
    %v3003 = vrcp.pop %v3001
    %v3004 = vmul.f32 %v3001, %v3003
    %v3005 = vsub.f32 1.0, %v3004
    %v3006 = vmul.f32 %v3003, %v3005
    %v3007 = vadd.f32 %v3003, %v3006
    %vm3008 = vweird.f32 %v3001
    %vm3009 = vweird.f32 %v3003
    %vm3010 = vmor %vm3008, %vm3009
    %v3011 = vsel %vm3010, %v3003, %v3007
    %v3012 = vand.u32 2147483647, %v3001
    %vm3013 = vcmp.eq.f32.partialorder %v3012, 8.507059e+37
    %v3014 = vand.u32 %v3001, 2147483648
    %v3015 = vor.u32 1.1754944e-38, %v3014
    %v3016 = vsel %vm3013, %v3015, %v3011
    %v3017 = vmul.f32 1.0, %v3016
    %v3018 = vrcp.pop %v3002
    %v3019 = vmul.f32 %v3002, %v3018
    %v3020 = vsub.f32 1.0, %v3019
    %v3021 = vmul.f32 %v3018, %v3020
    %v3022 = vadd.f32 %v3018, %v3021
    %vm3023 = vweird.f32 %v3002
    %vm3024 = vweird.f32 %v3018
    %vm3025 = vmor %vm3023, %vm3024
    %v3026 = vsel %vm3025, %v3018, %v3022
    %v3027 = vand.u32 2147483647, %v3002
    %vm3028 = vcmp.eq.f32.partialorder %v3027, 8.507059e+37
    %v3029 = vand.u32 %v3002, 2147483648
    %v3030 = vor.u32 1.1754944e-38, %v3029
    %v3031 = vsel %vm3028, %v3030, %v3026
    %v3032 = vmul.f32 1.0, %v3031
    %v3033 = vmul.f32 %v3032, 2.0
    %v3034 = vsub.f32 %v3033, 1.0
    %3036 = vrot.lane.b32.xlu0 %v2943, 64
    %v3037 = vpop.permute.xlu0 %3036
    %v3039 = vmul.f32 %v3017, %v3037
    %v3040 = vmul.f32 %v3017, %v3034
    %3042 = vrot.lane.b32.xlu0 %v3040, 64
    %v3043 = vpop.permute.xlu0 %3042
    %v3045 = vadd.f32 %v3039, %v3043
    %v3046 = vtanh.pop %v3045
    %v3047 = vmul.f32 %v3032, %v3046
    %3049 = vrot.lane.b32.xlu0 %v3047, 64
    %v3050 = vpop.permute.xlu0 %3049
    %v3052 = vsel %vm842, %v3050, 0.0
    %3053 = vst.msk [vmem:[#allocation2 + $0x18] sm:$0xff] %vm257, %v3052
    %3054 = vst.msk [vmem:[#allocation2 + $0x20] sm:$0xff] %vm492, %v3052
    %v3055 = vsel %vm842, %v3050, %v2938
    %3057 = vrot.lane.b32.xlu0 %v3045, 64
    %v3058 = vpop.permute.xlu0 %3057
    %v3060 = vsel %vm842, %v3058, %v2943
    %v3061 = vld [vmem:[#allocation4 + $0x40] sm:$0xff]
    %v3062 = vld [vmem:[#allocation4 + $0x48] sm:$0xff]
    %v3063 = vld [vmem:[#allocation4 + $0x30] sm:$0xff]
    %v3064 = vld [vmem:[#allocation4 + $0x38] sm:$0xff]
    %v3065 = vsel %vm225, %v3061, %v3063
    %v3066 = vsel %vm226, %v3062, %v3064
    %v3068 = vsel %vm386, %v3055, 0
    %3070 = vmatpush.msra.mxu0 0.0
    %3071 = vmatpush.msra.mxu0 0.0
    %3072 = vmatpush.msra.mxu0 0.0
    %3073 = vmatpush.msra.mxu0 0.0
    %3074 = vmatpush.msra.mxu0 0.0
    %3075 = vmatpush.msra.mxu0 0.0
    %3076 = vmatpush.msra.mxu0 0.0
    %3077 = vmatpush.msra.mxu0 0.0
    %3078 = vmatpush.msra.mxu0 %v2455
    %3079 = vmatpush.msra.mxu0 %v2453
    %3080 = vmatpush.msra.mxu0 %v2451
    %3081 = vmatpush.msra.mxu0 %v2449
    %3082 = vmatpush.msra.mxu0 %v2447
    %3083 = vmatpush.msra.mxu0 %v2445
    %3084 = vmatpush.msra.mxu0 %v2443
    %3085 = vmatpush.msra.mxu0 %v2441
    %3086 = vmatmul.f32.gmra.mxu0 %v3068
    %v3087 = vpop.f32.mrf.mxu0
    %v3088 = vadd.f32 0.0, %v3087
    %3089 = vdwg.mxu0
    %3090 = vmatpush.msra.mxu0 0.0
    %3091 = vmatpush.msra.mxu0 0.0
    %3092 = vmatpush.msra.mxu0 0.0
    %3093 = vmatpush.msra.mxu0 0.0
    %3094 = vmatpush.msra.mxu0 0.0
    %3095 = vmatpush.msra.mxu0 0.0
    %3096 = vmatpush.msra.mxu0 0.0
    %3097 = vmatpush.msra.mxu0 0.0
    %3098 = vmatpush.msra.mxu0 %v2456
    %3099 = vmatpush.msra.mxu0 %v2454
    %3100 = vmatpush.msra.mxu0 %v2452
    %3101 = vmatpush.msra.mxu0 %v2450
    %3102 = vmatpush.msra.mxu0 %v2448
    %3103 = vmatpush.msra.mxu0 %v2446
    %3104 = vmatpush.msra.mxu0 %v2444
    %3105 = vmatpush.msra.mxu0 %v2442
    %3106 = vmatmul.f32.gmra.mxu0 %v3068
    %v3107 = vpop.f32.mrf.mxu0
    %v3108 = vadd.f32 0.0, %v3107
    %3109 = vdwg.mxu0
    %v3110 = vadd.f32 %v3065, %v3088
    %v3111 = vadd.f32 %v3066, %v3108
    %v3112 = vxor.u32 %v3110, 2147483648
    %v3113 = vxor.u32 %v3111, 2147483648
    %v3114 = vmul.f32 %v3112, 1.442695
    %v3115 = vpow.pop %v3114
    %v3116 = vmul.f32 %v3113, 1.442695
    %v3117 = vpow.pop %v3116
    %v3118 = vadd.f32 %v3115, 1.0
    %v3119 = vadd.f32 %v3117, 1.0
    %v3120 = vrcp.pop %v3118
    %v3121 = vmul.f32 %v3118, %v3120
    %v3122 = vsub.f32 1.0, %v3121
    %v3123 = vmul.f32 %v3120, %v3122
    %v3124 = vadd.f32 %v3120, %v3123
    %vm3125 = vweird.f32 %v3118
    %vm3126 = vweird.f32 %v3120
    %vm3127 = vmor %vm3125, %vm3126
    %v3128 = vsel %vm3127, %v3120, %v3124
    %v3129 = vand.u32 2147483647, %v3118
    %vm3130 = vcmp.eq.f32.partialorder %v3129, 8.507059e+37
    %v3131 = vand.u32 %v3118, 2147483648
    %v3132 = vor.u32 1.1754944e-38, %v3131
    %v3133 = vsel %vm3130, %v3132, %v3128
    %v3134 = vmul.f32 1.0, %v3133
    %v3135 = vrcp.pop %v3119
    %v3136 = vmul.f32 %v3119, %v3135
    %v3137 = vsub.f32 1.0, %v3136
    %v3138 = vmul.f32 %v3135, %v3137
    %v3139 = vadd.f32 %v3135, %v3138
    %vm3140 = vweird.f32 %v3119
    %vm3141 = vweird.f32 %v3135
    %vm3142 = vmor %vm3140, %vm3141
    %v3143 = vsel %vm3142, %v3135, %v3139
    %v3144 = vand.u32 2147483647, %v3119
    %vm3145 = vcmp.eq.f32.partialorder %v3144, 8.507059e+37
    %v3146 = vand.u32 %v3119, 2147483648
    %v3147 = vor.u32 1.1754944e-38, %v3146
    %v3148 = vsel %vm3145, %v3147, %v3143
    %v3149 = vmul.f32 1.0, %v3148
    %v3150 = vmul.f32 %v3149, 2.0
    %v3151 = vsub.f32 %v3150, 1.0
    %3153 = vrot.lane.b32.xlu0 %v3060, 64
    %v3154 = vpop.permute.xlu0 %3153
    %v3156 = vmul.f32 %v3134, %v3154
    %v3157 = vmul.f32 %v3134, %v3151
    %3159 = vrot.lane.b32.xlu0 %v3157, 64
    %v3160 = vpop.permute.xlu0 %3159
    %v3162 = vadd.f32 %v3156, %v3160
    %v3163 = vtanh.pop %v3162
    %v3164 = vmul.f32 %v3149, %v3163
    %3166 = vrot.lane.b32.xlu0 %v3164, 64
    %v3167 = vpop.permute.xlu0 %3166
    %v3169 = vsel %vm961, %v3167, 0.0
    %3170 = vst.msk [vmem:[#allocation2 + $0x20] sm:$0xff] %vm257, %v3169
    %3171 = vst.msk [vmem:[#allocation2 + $0x18] sm:$0xff] %vm492, %v3169
    %v3172 = vsel %vm961, %v3167, %v3055
    %3174 = vrot.lane.b32.xlu0 %v3162, 64
    %v3175 = vpop.permute.xlu0 %3174
    %v3177 = vsel %vm961, %v3175, %v3060
    %v3178 = vld [vmem:[#allocation4 + $0x50] sm:$0xff]
    %v3179 = vld [vmem:[#allocation4 + $0x58] sm:$0xff]
    %v3180 = vld [vmem:[#allocation4 + $0x20] sm:$0xff]
    %v3181 = vld [vmem:[#allocation4 + $0x28] sm:$0xff]
    %v3182 = vsel %vm225, %v3178, %v3180
    %v3183 = vsel %vm226, %v3179, %v3181
    %v3185 = vsel %vm386, %v3172, 0
    %3187 = vmatpush.msra.mxu0 0.0
    %3188 = vmatpush.msra.mxu0 0.0
    %3189 = vmatpush.msra.mxu0 0.0
    %3190 = vmatpush.msra.mxu0 0.0
    %3191 = vmatpush.msra.mxu0 0.0
    %3192 = vmatpush.msra.mxu0 0.0
    %3193 = vmatpush.msra.mxu0 0.0
    %3194 = vmatpush.msra.mxu0 0.0
    %3195 = vmatpush.msra.mxu0 %v2455
    %3196 = vmatpush.msra.mxu0 %v2453
    %3197 = vmatpush.msra.mxu0 %v2451
    %3198 = vmatpush.msra.mxu0 %v2449
    %3199 = vmatpush.msra.mxu0 %v2447
    %3200 = vmatpush.msra.mxu0 %v2445
    %3201 = vmatpush.msra.mxu0 %v2443
    %3202 = vmatpush.msra.mxu0 %v2441
    %3203 = vmatmul.f32.gmra.mxu0 %v3185
    %v3204 = vpop.f32.mrf.mxu0
    %v3205 = vadd.f32 0.0, %v3204
    %3206 = vdwg.mxu0
    %3207 = vmatpush.msra.mxu0 0.0
    %3208 = vmatpush.msra.mxu0 0.0
    %3209 = vmatpush.msra.mxu0 0.0
    %3210 = vmatpush.msra.mxu0 0.0
    %3211 = vmatpush.msra.mxu0 0.0
    %3212 = vmatpush.msra.mxu0 0.0
    %3213 = vmatpush.msra.mxu0 0.0
    %3214 = vmatpush.msra.mxu0 0.0
    %3215 = vmatpush.msra.mxu0 %v2456
    %3216 = vmatpush.msra.mxu0 %v2454
    %3217 = vmatpush.msra.mxu0 %v2452
    %3218 = vmatpush.msra.mxu0 %v2450
    %3219 = vmatpush.msra.mxu0 %v2448
    %3220 = vmatpush.msra.mxu0 %v2446
    %3221 = vmatpush.msra.mxu0 %v2444
    %3222 = vmatpush.msra.mxu0 %v2442
    %3223 = vmatmul.f32.gmra.mxu0 %v3185
    %v3224 = vpop.f32.mrf.mxu0
    %v3225 = vadd.f32 0.0, %v3224
    %3226 = vdwg.mxu0
    %v3227 = vadd.f32 %v3182, %v3205
    %v3228 = vadd.f32 %v3183, %v3225
    %v3229 = vxor.u32 %v3227, 2147483648
    %v3230 = vxor.u32 %v3228, 2147483648
    %v3231 = vmul.f32 %v3229, 1.442695
    %v3232 = vpow.pop %v3231
    %v3233 = vmul.f32 %v3230, 1.442695
    %v3234 = vpow.pop %v3233
    %v3235 = vadd.f32 %v3232, 1.0
    %v3236 = vadd.f32 %v3234, 1.0
    %v3237 = vrcp.pop %v3235
    %v3238 = vmul.f32 %v3235, %v3237
    %v3239 = vsub.f32 1.0, %v3238
    %v3240 = vmul.f32 %v3237, %v3239
    %v3241 = vadd.f32 %v3237, %v3240
    %vm3242 = vweird.f32 %v3235
    %vm3243 = vweird.f32 %v3237
    %vm3244 = vmor %vm3242, %vm3243
    %v3245 = vsel %vm3244, %v3237, %v3241
    %v3246 = vand.u32 2147483647, %v3235
    %vm3247 = vcmp.eq.f32.partialorder %v3246, 8.507059e+37
    %v3248 = vand.u32 %v3235, 2147483648
    %v3249 = vor.u32 1.1754944e-38, %v3248
    %v3250 = vsel %vm3247, %v3249, %v3245
    %v3251 = vmul.f32 1.0, %v3250
    %v3252 = vrcp.pop %v3236
    %v3253 = vmul.f32 %v3236, %v3252
    %v3254 = vsub.f32 1.0, %v3253
    %v3255 = vmul.f32 %v3252, %v3254
    %v3256 = vadd.f32 %v3252, %v3255
    %vm3257 = vweird.f32 %v3236
    %vm3258 = vweird.f32 %v3252
    %vm3259 = vmor %vm3257, %vm3258
    %v3260 = vsel %vm3259, %v3252, %v3256
    %v3261 = vand.u32 2147483647, %v3236
    %vm3262 = vcmp.eq.f32.partialorder %v3261, 8.507059e+37
    %v3263 = vand.u32 %v3236, 2147483648
    %v3264 = vor.u32 1.1754944e-38, %v3263
    %v3265 = vsel %vm3262, %v3264, %v3260
    %v3266 = vmul.f32 1.0, %v3265
    %v3267 = vmul.f32 %v3266, 2.0
    %v3268 = vsub.f32 %v3267, 1.0
    %3270 = vrot.lane.b32.xlu0 %v3177, 64
    %v3271 = vpop.permute.xlu0 %3270
    %v3273 = vmul.f32 %v3251, %v3271
    %v3274 = vmul.f32 %v3251, %v3268
    %3276 = vrot.lane.b32.xlu0 %v3274, 64
    %v3277 = vpop.permute.xlu0 %3276
    %v3279 = vadd.f32 %v3273, %v3277
    %v3280 = vtanh.pop %v3279
    %v3281 = vmul.f32 %v3266, %v3280
    %3283 = vrot.lane.b32.xlu0 %v3281, 64
    %v3284 = vpop.permute.xlu0 %3283
    %v3286 = vsel %vm1080, %v3284, 0.0
    %3287 = vst.msk [vmem:[#allocation2 + $0x28] sm:$0xff] %vm257, %v3286
    %3288 = vst.msk [vmem:[#allocation2 + $0x10] sm:$0xff] %vm492, %v3286
    %v3289 = vsel %vm1080, %v3284, %v3172
    %3291 = vrot.lane.b32.xlu0 %v3279, 64
    %v3292 = vpop.permute.xlu0 %3291
    %v3294 = vsel %vm1080, %v3292, %v3177
    %v3295 = vld [vmem:[#allocation4 + $0x60] sm:$0xff]
    %v3296 = vld [vmem:[#allocation4 + $0x68] sm:$0xff]
    %v3297 = vld [vmem:[#allocation4 + $0x10] sm:$0xff]
    %v3298 = vld [vmem:[#allocation4 + $0x18] sm:$0xff]
    %v3299 = vsel %vm225, %v3295, %v3297
    %v3300 = vsel %vm226, %v3296, %v3298
    %v3302 = vsel %vm386, %v3289, 0
    %3304 = vmatpush.msra.mxu0 0.0
    %3305 = vmatpush.msra.mxu0 0.0
    %3306 = vmatpush.msra.mxu0 0.0
    %3307 = vmatpush.msra.mxu0 0.0
    %3308 = vmatpush.msra.mxu0 0.0
    %3309 = vmatpush.msra.mxu0 0.0
    %3310 = vmatpush.msra.mxu0 0.0
    %3311 = vmatpush.msra.mxu0 0.0
    %3312 = vmatpush.msra.mxu0 %v2455
    %3313 = vmatpush.msra.mxu0 %v2453
    %3314 = vmatpush.msra.mxu0 %v2451
    %3315 = vmatpush.msra.mxu0 %v2449
    %3316 = vmatpush.msra.mxu0 %v2447
    %3317 = vmatpush.msra.mxu0 %v2445
    %3318 = vmatpush.msra.mxu0 %v2443
    %3319 = vmatpush.msra.mxu0 %v2441
    %3320 = vmatmul.f32.gmra.mxu0 %v3302
    %v3321 = vpop.f32.mrf.mxu0
    %v3322 = vadd.f32 0.0, %v3321
    %3323 = vdwg.mxu0
    %3324 = vmatpush.msra.mxu0 0.0
    %3325 = vmatpush.msra.mxu0 0.0
    %3326 = vmatpush.msra.mxu0 0.0
    %3327 = vmatpush.msra.mxu0 0.0
    %3328 = vmatpush.msra.mxu0 0.0
    %3329 = vmatpush.msra.mxu0 0.0
    %3330 = vmatpush.msra.mxu0 0.0
    %3331 = vmatpush.msra.mxu0 0.0
    %3332 = vmatpush.msra.mxu0 %v2456
    %3333 = vmatpush.msra.mxu0 %v2454
    %3334 = vmatpush.msra.mxu0 %v2452
    %3335 = vmatpush.msra.mxu0 %v2450
    %3336 = vmatpush.msra.mxu0 %v2448
    %3337 = vmatpush.msra.mxu0 %v2446
    %3338 = vmatpush.msra.mxu0 %v2444
    %3339 = vmatpush.msra.mxu0 %v2442
    %3340 = vmatmul.f32.gmra.mxu0 %v3302
    %v3341 = vpop.f32.mrf.mxu0
    %v3342 = vadd.f32 0.0, %v3341
    %3343 = vdwg.mxu0
    %v3344 = vadd.f32 %v3299, %v3322
    %v3345 = vadd.f32 %v3300, %v3342
    %v3346 = vxor.u32 %v3344, 2147483648
    %v3347 = vxor.u32 %v3345, 2147483648
    %v3348 = vmul.f32 %v3346, 1.442695
    %v3349 = vpow.pop %v3348
    %v3350 = vmul.f32 %v3347, 1.442695
    %v3351 = vpow.pop %v3350
    %v3352 = vadd.f32 %v3349, 1.0
    %v3353 = vadd.f32 %v3351, 1.0
    %v3354 = vrcp.pop %v3352
    %v3355 = vmul.f32 %v3352, %v3354
    %v3356 = vsub.f32 1.0, %v3355
    %v3357 = vmul.f32 %v3354, %v3356
    %v3358 = vadd.f32 %v3354, %v3357
    %vm3359 = vweird.f32 %v3352
    %vm3360 = vweird.f32 %v3354
    %vm3361 = vmor %vm3359, %vm3360
    %v3362 = vsel %vm3361, %v3354, %v3358
    %v3363 = vand.u32 2147483647, %v3352
    %vm3364 = vcmp.eq.f32.partialorder %v3363, 8.507059e+37
    %v3365 = vand.u32 %v3352, 2147483648
    %v3366 = vor.u32 1.1754944e-38, %v3365
    %v3367 = vsel %vm3364, %v3366, %v3362
    %v3368 = vmul.f32 1.0, %v3367
    %v3369 = vrcp.pop %v3353
    %v3370 = vmul.f32 %v3353, %v3369
    %v3371 = vsub.f32 1.0, %v3370
    %v3372 = vmul.f32 %v3369, %v3371
    %v3373 = vadd.f32 %v3369, %v3372
    %vm3374 = vweird.f32 %v3353
    %vm3375 = vweird.f32 %v3369
    %vm3376 = vmor %vm3374, %vm3375
    %v3377 = vsel %vm3376, %v3369, %v3373
    %v3378 = vand.u32 2147483647, %v3353
    %vm3379 = vcmp.eq.f32.partialorder %v3378, 8.507059e+37
    %v3380 = vand.u32 %v3353, 2147483648
    %v3381 = vor.u32 1.1754944e-38, %v3380
    %v3382 = vsel %vm3379, %v3381, %v3377
    %v3383 = vmul.f32 1.0, %v3382
    %v3384 = vmul.f32 %v3383, 2.0
    %v3385 = vsub.f32 %v3384, 1.0
    %3387 = vrot.lane.b32.xlu0 %v3294, 64
    %v3388 = vpop.permute.xlu0 %3387
    %v3390 = vmul.f32 %v3368, %v3388
    %v3391 = vmul.f32 %v3368, %v3385
    %3393 = vrot.lane.b32.xlu0 %v3391, 64
    %v3394 = vpop.permute.xlu0 %3393
    %v3396 = vadd.f32 %v3390, %v3394
    %v3397 = vtanh.pop %v3396
    %v3398 = vmul.f32 %v3383, %v3397
    %3400 = vrot.lane.b32.xlu0 %v3398, 64
    %v3401 = vpop.permute.xlu0 %3400
    %v3403 = vsel %vm1199, %v3401, 0.0
    %3404 = vst.msk [vmem:[#allocation2 + $0x30] sm:$0xff] %vm257, %v3403
    %3405 = vst.msk [vmem:[#allocation2 + $0x8] sm:$0xff] %vm492, %v3403
    %v3406 = vsel %vm1199, %v3401, %v3289
    %3408 = vrot.lane.b32.xlu0 %v3396, 64
    %v3409 = vpop.permute.xlu0 %3408
    %v3411 = vsel %vm1199, %v3409, %v3294
    %v3412 = vld [vmem:[#allocation4 + $0x70] sm:$0xff]
    %v3413 = vld [vmem:[#allocation4 + $0x78] sm:$0xff]
    %v3414 = vld [vmem:[#allocation4] sm:$0xff]
    %v3415 = vld [vmem:[#allocation4 + $0x8] sm:$0xff]
    %v3416 = vsel %vm225, %v3412, %v3414
    %v3417 = vsel %vm226, %v3413, %v3415
    %v3419 = vsel %vm386, %v3406, 0
    %3421 = vmatpush.msra.mxu0 0.0
    %3422 = vmatpush.msra.mxu0 0.0
    %3423 = vmatpush.msra.mxu0 0.0
    %3424 = vmatpush.msra.mxu0 0.0
    %3425 = vmatpush.msra.mxu0 0.0
    %3426 = vmatpush.msra.mxu0 0.0
    %3427 = vmatpush.msra.mxu0 0.0
    %3428 = vmatpush.msra.mxu0 0.0
    %3429 = vmatpush.msra.mxu0 %v2455
    %3430 = vmatpush.msra.mxu0 %v2453
    %3431 = vmatpush.msra.mxu0 %v2451
    %3432 = vmatpush.msra.mxu0 %v2449
    %3433 = vmatpush.msra.mxu0 %v2447
    %3434 = vmatpush.msra.mxu0 %v2445
    %3435 = vmatpush.msra.mxu0 %v2443
    %3436 = vmatpush.msra.mxu0 %v2441
    %3437 = vmatmul.f32.gmra.mxu0 %v3419
    %v3438 = vpop.f32.mrf.mxu0
    %v3439 = vadd.f32 0.0, %v3438
    %3440 = vdwg.mxu0
    %3441 = vmatpush.msra.mxu0 0.0
    %3442 = vmatpush.msra.mxu0 0.0
    %3443 = vmatpush.msra.mxu0 0.0
    %3444 = vmatpush.msra.mxu0 0.0
    %3445 = vmatpush.msra.mxu0 0.0
    %3446 = vmatpush.msra.mxu0 0.0
    %3447 = vmatpush.msra.mxu0 0.0
    %3448 = vmatpush.msra.mxu0 0.0
    %3449 = vmatpush.msra.mxu0 %v2456
    %3450 = vmatpush.msra.mxu0 %v2454
    %3451 = vmatpush.msra.mxu0 %v2452
    %3452 = vmatpush.msra.mxu0 %v2450
    %3453 = vmatpush.msra.mxu0 %v2448
    %3454 = vmatpush.msra.mxu0 %v2446
    %3455 = vmatpush.msra.mxu0 %v2444
    %3456 = vmatpush.msra.mxu0 %v2442
    %3457 = vmatmul.f32.gmra.mxu0 %v3419
    %v3458 = vpop.f32.mrf.mxu0
    %v3459 = vadd.f32 0.0, %v3458
    %3460 = vdwg.mxu0
    %v3461 = vadd.f32 %v3416, %v3439
    %v3462 = vadd.f32 %v3417, %v3459
    %v3463 = vxor.u32 %v3461, 2147483648
    %v3464 = vxor.u32 %v3462, 2147483648
    %v3465 = vmul.f32 %v3463, 1.442695
    %v3466 = vpow.pop %v3465
    %v3467 = vmul.f32 %v3464, 1.442695
    %v3468 = vpow.pop %v3467
    %v3469 = vadd.f32 %v3466, 1.0
    %v3470 = vadd.f32 %v3468, 1.0
    %v3471 = vrcp.pop %v3469
    %v3472 = vmul.f32 %v3469, %v3471
    %v3473 = vsub.f32 1.0, %v3472
    %v3474 = vmul.f32 %v3471, %v3473
    %v3475 = vadd.f32 %v3471, %v3474
    %vm3476 = vweird.f32 %v3469
    %vm3477 = vweird.f32 %v3471
    %vm3478 = vmor %vm3476, %vm3477
    %v3479 = vsel %vm3478, %v3471, %v3475
    %v3480 = vand.u32 2147483647, %v3469
    %vm3481 = vcmp.eq.f32.partialorder %v3480, 8.507059e+37
    %v3482 = vand.u32 %v3469, 2147483648
    %v3483 = vor.u32 1.1754944e-38, %v3482
    %v3484 = vsel %vm3481, %v3483, %v3479
    %v3485 = vmul.f32 1.0, %v3484
    %v3486 = vrcp.pop %v3470
    %v3487 = vmul.f32 %v3470, %v3486
    %v3488 = vsub.f32 1.0, %v3487
    %v3489 = vmul.f32 %v3486, %v3488
    %v3490 = vadd.f32 %v3486, %v3489
    %vm3491 = vweird.f32 %v3470
    %vm3492 = vweird.f32 %v3486
    %vm3493 = vmor %vm3491, %vm3492
    %v3494 = vsel %vm3493, %v3486, %v3490
    %v3495 = vand.u32 2147483647, %v3470
    %vm3496 = vcmp.eq.f32.partialorder %v3495, 8.507059e+37
    %v3497 = vand.u32 %v3470, 2147483648
    %v3498 = vor.u32 1.1754944e-38, %v3497
    %v3499 = vsel %vm3496, %v3498, %v3494
    %v3500 = vmul.f32 1.0, %v3499
    %v3501 = vmul.f32 %v3500, 2.0
    %v3502 = vsub.f32 %v3501, 1.0
    %3504 = vrot.lane.b32.xlu0 %v3411, 64
    %v3505 = vpop.permute.xlu0 %3504
    %v3507 = vmul.f32 %v3485, %v3505
    %v3508 = vmul.f32 %v3485, %v3502
    %3510 = vrot.lane.b32.xlu0 %v3508, 64
    %v3511 = vpop.permute.xlu0 %3510
    %v3513 = vadd.f32 %v3507, %v3511
    %v3514 = vtanh.pop %v3513
    %v3515 = vmul.f32 %v3500, %v3514
    %3517 = vrot.lane.b32.xlu0 %v3515, 64
    %v3518 = vpop.permute.xlu0 %3517
    %v3520 = vsel %vm1318, %v3518, 0.0
    %3521 = vst.msk [vmem:[#allocation2 + $0x38] sm:$0xff] %vm257, %v3520
    %3522 = vst.msk [vmem:[#allocation2] sm:$0xff] %vm492, %v3520
    %3524 = vrot.lane.b32.xlu0 %v3513, 64
    %v3525 = vpop.permute.xlu0 %3524
    %v3527 = vsel %vm1318, %v3525, %v3411
    %3528 = vst.msk [vmem:[#allocation5 + $0x8] sm:$0xff] %vm386, %v3527
    %v3529 = vld [vmem:[#allocation2] sm:$0xff]
    %v3530 = vld [vmem:[#allocation2 + $0x8] sm:$0xff]
    %v3531 = vld [vmem:[#allocation2 + $0x10] sm:$0xff]
    %v3532 = vld [vmem:[#allocation2 + $0x18] sm:$0xff]
    %v3533 = vld [vmem:[#allocation2 + $0x20] sm:$0xff]
    %v3534 = vld [vmem:[#allocation2 + $0x28] sm:$0xff]
    %v3535 = vld [vmem:[#allocation2 + $0x30] sm:$0xff]
    %v3536 = vld [vmem:[#allocation2 + $0x38] sm:$0xff]
    %v3537 = vmax.f32 %v3529, %v3530
    %v3538 = vadd.f32 %v3529, %v3530
    %v3539 = vmax.f32 %v3537, %v3531
    %v3540 = vadd.f32 %v3538, %v3531
    %v3541 = vmax.f32 %v3539, %v3532
    %v3542 = vadd.f32 %v3540, %v3532
    %v3543 = vmax.f32 %v3541, %v3533
    %v3544 = vadd.f32 %v3542, %v3533
    %v3545 = vmax.f32 %v3543, %v3534
    %v3546 = vadd.f32 %v3544, %v3534
    %v3547 = vmax.f32 %v3545, %v3535
    %v3548 = vadd.f32 %v3546, %v3535
    %v3549 = vmax.f32 %v3547, %v3536
    %v3550 = vadd.f32 %v3548, %v3536
    %3552 = vrot.lane.b32.xlu0 %v3549, 64
    %v3553 = vpop.permute.xlu0 %3552
    %3555 = vst.msk [vmem:[#allocation5 + $0x8] sm:$0xff] %vm2431, %v3553
    %v3556 = vmul.f32 %v3550, 0.125
    %3557 = vst.msk [vmem:[#allocation5 + $0x10] sm:$0xff] %vm386, %v3556
    %v3558 = vld [vmem:[#allocation5] sm:$0xff]
    %v3559 = vld [vmem:[#allocation5 + $0x8] sm:$0xff]
    %v3560 = vld [vmem:[#allocation5 + $0x10] sm:$0xff]
    %v3561 = vld [vmem:[%s12] sm:$0xff]
    %v3562 = vld [vmem:[%s12 + $0x8] sm:$0xff]
    %v3563 = vld [vmem:[%s12 + $0x10] sm:$0xff]
    %v3564 = vld [vmem:[%s12 + $0x18] sm:$0xff]
    %v3565 = vld [vmem:[%s12 + $0x20] sm:$0xff]
    %v3566 = vld [vmem:[%s12 + $0x28] sm:$0xff]
    %v3567 = vld [vmem:[%s12 + $0x30] sm:$0xff]
    %v3568 = vld [vmem:[%s12 + $0x38] sm:$0xff]
    %v3569 = vld [vmem:[%s12 + $0x40] sm:$0xff]
    %v3570 = vld [vmem:[%s12 + $0x48] sm:$0xff]
    %v3571 = vld [vmem:[%s12 + $0x50] sm:$0xff]
    %v3572 = vld [vmem:[%s12 + $0x58] sm:$0xff]
    %v3573 = vld [vmem:[%s12 + $0x60] sm:$0xff]
    %v3574 = vld [vmem:[%s12 + $0x68] sm:$0xff]
    %v3575 = vld [vmem:[%s12 + $0x70] sm:$0xff]
    %v3576 = vld [vmem:[%s12 + $0x78] sm:$0xff]
    %v3577 = vld [vmem:[%s12 + $0x80] sm:$0xff]
    %v3578 = vld [vmem:[%s12 + $0x88] sm:$0xff]
    %v3579 = vld [vmem:[%s12 + $0x90] sm:$0xff]
    %v3580 = vld [vmem:[%s12 + $0x98] sm:$0xff]
    %v3581 = vld [vmem:[%s12 + $0xa0] sm:$0xff]
    %v3582 = vld [vmem:[%s12 + $0xa8] sm:$0xff]
    %v3583 = vld [vmem:[%s12 + $0xb0] sm:$0xff]
    %v3584 = vld [vmem:[%s12 + $0xb8] sm:$0xff]
    %v3585 = vld [vmem:[%s12 + $0xc0] sm:$0xff]
    %v3586 = vld [vmem:[%s12 + $0xc8] sm:$0xff]
    %v3587 = vld [vmem:[%s12 + $0xd0] sm:$0xff]
    %v3588 = vld [vmem:[%s12 + $0xd8] sm:$0xff]
    %v3589 = vld [vmem:[%s12 + $0xe0] sm:$0xff]
    %v3590 = vld [vmem:[%s12 + $0xe8] sm:$0xff]
    %v3591 = vld [vmem:[%s12 + $0xf0] sm:$0xff]
    %v3592 = vld [vmem:[%s12 + $0xf8] sm:$0xff]
    %v3593 = vld [vmem:[%s12 + $0x100] sm:$0xff]
    %v3594 = vld [vmem:[%s12 + $0x108] sm:$0xff]
    %v3595 = vld [vmem:[%s12 + $0x110] sm:$0xff]
    %v3596 = vld [vmem:[%s12 + $0x118] sm:$0xff]
    %v3597 = vld [vmem:[%s12 + $0x120] sm:$0xff]
    %v3598 = vld [vmem:[%s12 + $0x128] sm:$0xff]
    %v3599 = vld [vmem:[%s12 + $0x130] sm:$0xff]
    %v3600 = vld [vmem:[%s12 + $0x138] sm:$0xff]
    %v3601 = vld [vmem:[%s13] sm:$0x1]
    %v3603 = vperm.slane %v3601, 0
    %v3606 = vsel %vm386, %v3560, 0
    %3608 = vmatpush.msra.mxu0 %v3576
    %3609 = vmatpush.msra.mxu0 %v3575
    %3610 = vmatpush.msra.mxu0 %v3574
    %3611 = vmatpush.msra.mxu0 %v3573
    %3612 = vmatpush.msra.mxu0 %v3572
    %3613 = vmatpush.msra.mxu0 %v3571
    %3614 = vmatpush.msra.mxu0 %v3570
    %3615 = vmatpush.msra.mxu0 %v3569
    %3616 = vmatpush.msra.mxu0 %v3568
    %3617 = vmatpush.msra.mxu0 %v3567
    %3618 = vmatpush.msra.mxu0 %v3566
    %3619 = vmatpush.msra.mxu0 %v3565
    %3620 = vmatpush.msra.mxu0 %v3564
    %3621 = vmatpush.msra.mxu0 %v3563
    %3622 = vmatpush.msra.mxu0 %v3562
    %3623 = vmatpush.msra.mxu0 %v3561
    %3624 = vmatmul.f32.gmra.mxu0 %v3558
    %v3625 = vpop.f32.mrf.mxu0
    %v3626 = vadd.f32 %v3603, %v3625
    %3627 = vdwg.mxu0
    %3628 = vmatpush.msra.mxu0 %v3592
    %3629 = vmatpush.msra.mxu0 %v3591
    %3630 = vmatpush.msra.mxu0 %v3590
    %3631 = vmatpush.msra.mxu0 %v3589
    %3632 = vmatpush.msra.mxu0 %v3588
    %3633 = vmatpush.msra.mxu0 %v3587
    %3634 = vmatpush.msra.mxu0 %v3586
    %3635 = vmatpush.msra.mxu0 %v3585
    %3636 = vmatpush.msra.mxu0 %v3584
    %3637 = vmatpush.msra.mxu0 %v3583
    %3638 = vmatpush.msra.mxu0 %v3582
    %3639 = vmatpush.msra.mxu0 %v3581
    %3640 = vmatpush.msra.mxu0 %v3580
    %3641 = vmatpush.msra.mxu0 %v3579
    %3642 = vmatpush.msra.mxu0 %v3578
    %3643 = vmatpush.msra.mxu0 %v3577
    %3644 = vmatmul.f32.gmra.mxu0 %v3559
    %v3645 = vpop.f32.mrf.mxu0
    %v3646 = vadd.f32 %v3626, %v3645
    %3647 = vdwg.mxu0
    %3648 = vmatpush.msra.mxu0 0.0
    %3649 = vmatpush.msra.mxu0 0.0
    %3650 = vmatpush.msra.mxu0 0.0
    %3651 = vmatpush.msra.mxu0 0.0
    %3652 = vmatpush.msra.mxu0 0.0
    %3653 = vmatpush.msra.mxu0 0.0
    %3654 = vmatpush.msra.mxu0 0.0
    %3655 = vmatpush.msra.mxu0 0.0
    %3656 = vmatpush.msra.mxu0 %v3600
    %3657 = vmatpush.msra.mxu0 %v3599
    %3658 = vmatpush.msra.mxu0 %v3598
    %3659 = vmatpush.msra.mxu0 %v3597
    %3660 = vmatpush.msra.mxu0 %v3596
    %3661 = vmatpush.msra.mxu0 %v3595
    %3662 = vmatpush.msra.mxu0 %v3594
    %3663 = vmatpush.msra.mxu0 %v3593
    %3664 = vmatmul.f32.gmra.mxu0 %v3606
    %v3665 = vpop.f32.mrf.mxu0
    %v3666 = vadd.f32 %v3646, %v3665
    %3667 = vdwg.mxu0
    %v3668 = vmax.f32 %v3666, 0.0
    %v3669 = vld [vmem:[%s14] sm:$0xff]
    %v3670 = vld [vmem:[%s14 + $0x8] sm:$0xff]
    %v3671 = vld [vmem:[%s14 + $0x10] sm:$0xff]
    %v3672 = vld [vmem:[%s14 + $0x18] sm:$0xff]
    %v3673 = vld [vmem:[%s14 + $0x20] sm:$0xff]
    %v3674 = vld [vmem:[%s14 + $0x28] sm:$0xff]
    %v3675 = vld [vmem:[%s14 + $0x30] sm:$0x3]
    %v3676 = vld [vmem:[%s15] sm:$0x1]
    %v3678 = vperm.slane %v3676, 0
    %v3681 = vsel %vm151, %v3668, 0
    %v3684 = vsel %vm176, %v3675, 0
    %3686 = vmatpush.msra.mxu0 0.0
    %3687 = vmatpush.msra.mxu0 0.0
    %3688 = vmatpush.msra.mxu0 0.0
    %3689 = vmatpush.msra.mxu0 0.0
    %3690 = vmatpush.msra.mxu0 0.0
    %3691 = vmatpush.msra.mxu0 0.0
    %3692 = vmatpush.msra.mxu0 0.0
    %3693 = vmatpush.msra.mxu0 0.0
    %3694 = vmatpush.msra.mxu0 0.0
    %3695 = vmatpush.msra.mxu0 %v3684
    %3696 = vmatpush.msra.mxu0 %v3674
    %3697 = vmatpush.msra.mxu0 %v3673
    %3698 = vmatpush.msra.mxu0 %v3672
    %3699 = vmatpush.msra.mxu0 %v3671
    %3700 = vmatpush.msra.mxu0 %v3670
    %3701 = vmatpush.msra.mxu0 %v3669
    %3702 = vmatmul.f32.gmra.mxu0 %v3681
    %v3703 = vpop.f32.mrf.mxu0
    %v3704 = vadd.f32 %v3678, %v3703
    %3705 = vdwg.mxu0
    %v3706 = vmax.f32 %v3704, 0.0
    %vm3707 = vcmask 15360
    %3708 = vst.msk [vmem:[%s16] sm:$0xff] %vm3707, %v3706
    // Predicated region
    $region74: #{tpu_custom_call.1} parent=1 // pred_check
      _
    $region75: #{tpu_custom_call.1} parent=1 // pred_check_branch
      %3710 = sbr.rel (0) target = $region77
    $region76: #{tpu_custom_call.1} parent=1 // pred_region
      _
    $region77: #{tpu_custom_call.1} parent=1 // pred_fallthru
      _
    // Predicated region
    $region78: #{tpu_custom_call.1} parent=1 // pred_check
      _
    $region79: #{tpu_custom_call.1} parent=1 // pred_check_branch
      %3712 = sbr.rel (0) target = $region81
    $region80: #{tpu_custom_call.1} parent=1 // pred_region
      _
    $region81: #{tpu_custom_call.1} parent=1 // pred_fallthru
      _
    %3713 = vsyncpa [#allocation7], 1
    %3714 = vsyncpa [#allocation9], 1

</llo_original>
